<compile_context>
chip_gen: v7x
topology: tpu7x:2x2x1
jax: 0.10.0
libtpu: 0.0.40
codegen_flags: <defaults>
</compile_context>

<pallas_src>
import math

import jax
import jax.numpy as jnp
from jax.experimental import pallas as pl
from jax.experimental.pallas import tpu as pltpu

# ---- small synthetic "BERT" config ----------------------------------------
B, S, H = 2, 8, 128
NUM_HEADS, HEAD_DIM = 2, 64
HEAD_PAD = 128                        # per-head width padded to one lane tile
QKV_PAD = NUM_HEADS * 3 * HEAD_PAD    # fused QKV width, lane-aligned per head
INTER = 512
LABEL_SIZE = 4
VOCAB, MAX_POS, N_TYPES = 32, 16, 2
N_LAYERS = 2
LN_EPS = 1e-12
NEG_INF = -1e9
LANE = 128            # classifier output padded to a full lane width
M = B * S             # matmul row dimension


# ---------------------------------------------------------------------------
# in-kernel helpers (operate on loaded values, not refs) — f32 math
# ---------------------------------------------------------------------------
def _layer_norm(x, gamma, beta):
    mu = jnp.mean(x, axis=-1, keepdims=True)
    var = jnp.mean((x - mu) ** 2, axis=-1, keepdims=True)
    inv = jax.lax.rsqrt(var + LN_EPS)
    return (x - mu) * inv * gamma + beta


def _gelu(x):
    # TODO(synk): tanh approximation of GELU (reference BERT uses exact erf GELU).
    c = math.sqrt(2.0 / math.pi)
    return 0.5 * x * (1.0 + jnp.tanh(c * (x + 0.044715 * x * x * x)))


# ---------------------------------------------------------------------------
# Fused kernel: single grid step — unrolled encoder stack + pooler + classifier
# ---------------------------------------------------------------------------
def bert_fused_kernel(x0_ref, mask_ref, labels_ref,
                      wqkv_ref, bqkv_ref, wo_ref, bo_ref, ln1g_ref, ln1b_ref,
                      w1_ref, b1_ref, w2_ref, b2_ref, ln2g_ref, ln2b_ref,
                      poolw_ref, poolb_ref, clsw_ref, clsb_ref,
                      out_ref, x_sc):
    x = x0_ref[...]                       # (M, H) f32 activation
    mask2d = mask_ref[...]                # (M, M) additive mask (block-diag + key padding)
    scale = 1.0 / math.sqrt(HEAD_DIM)

    # Fully unrolled layer loop inside ONE grid step (static weight indices).
    for l in range(N_LAYERS):
        # fused, head-padded QKV projection: every per-head slice below is a
        # 128-lane-aligned slice -> no lane shuffles / sublane concats.
        qkv = (jnp.dot(x.astype(jnp.bfloat16), wqkv_ref[l],
                       preferred_element_type=jnp.float32) + bqkv_ref[l])   # (M, QKV_PAD)
        wo_l = wo_ref[l]                                                    # (NH*128, H)

        attn = jnp.zeros((M, H), jnp.float32)
        for h in range(NUM_HEADS):
            base = h * 3 * HEAD_PAD
            qh = qkv[:, base:base + HEAD_PAD]                   # (M,128), top 64 lanes = 0
            kh = qkv[:, base + HEAD_PAD:base + 2 * HEAD_PAD]
            vh = qkv[:, base + 2 * HEAD_PAD:base + 3 * HEAD_PAD]
            # 2-D attention over all (batch, query) rows at once; the mask's
            # block-diagonal structure keeps batches independent.
            s = (jnp.einsum('qd,kd->qk',
                            qh.astype(jnp.bfloat16), kh.astype(jnp.bfloat16),
                            preferred_element_type=jnp.float32) * scale
                 + mask2d)                                                  # (M, M)
            mx = jnp.max(s, axis=-1, keepdims=True)
            p = jnp.exp(s - mx)
            p = p * pl.reciprocal(jnp.sum(p, axis=-1, keepdims=True), approx=True)
            ctx = jnp.dot(p.astype(jnp.bfloat16), vh.astype(jnp.bfloat16),
                          preferred_element_type=jnp.float32)               # (M, 128)
            attn = attn + jnp.dot(ctx.astype(jnp.bfloat16),
                                  wo_l[h * HEAD_PAD:(h + 1) * HEAD_PAD, :],
                                  preferred_element_type=jnp.float32)
        attn = attn + bo_ref[l]
        h1 = _layer_norm(x + attn, ln1g_ref[l], ln1b_ref[l])

        # ---- feed-forward ---------------------------------------------------
        ff = _gelu(jnp.dot(h1.astype(jnp.bfloat16), w1_ref[l],
                           preferred_element_type=jnp.float32) + b1_ref[l])
        ff = (jnp.dot(ff.astype(jnp.bfloat16), w2_ref[l],
                      preferred_element_type=jnp.float32) + b2_ref[l])
        x = _layer_norm(h1 + ff, ln2g_ref[l], ln2b_ref[l])                  # (M, H)

    # ---- pooler + dropout(eval) + cls_layer + argmax + CE loss ---------------
    x_sc[...] = x
    cls = x_sc[pl.ds(0, B, stride=S), :]          # strided CLS-row read: rows 0, S, ...
    pooled = jnp.tanh(
        jnp.dot(cls.astype(jnp.bfloat16), poolw_ref[...],
                preferred_element_type=jnp.float32) + poolb_ref[...])
    # dropout(p=0.5) is identity in eval mode
    logits = (jnp.dot(pooled.astype(jnp.bfloat16), clsw_ref[...],
                      preferred_element_type=jnp.float32)
              + clsb_ref[...])                    # (B, LANE); cols >= LABEL_SIZE are -1e9

    col = jax.lax.broadcasted_iota(jnp.int32, (B, LANE), 1)
    mx = jnp.max(logits, axis=-1, keepdims=True)                 # (B, 1)
    best = jnp.min(jnp.where(logits == mx, col, LANE),
                   axis=-1, keepdims=True)                       # (B, 1) int32

    labels = labels_ref[...]                                     # (B, 1) int32
    lse = mx + jnp.log(jnp.sum(jnp.exp(logits - mx), axis=-1, keepdims=True))
    onehot = (col == labels).astype(jnp.float32)                 # (B, LANE)
    picked = jnp.sum(logits * onehot, axis=-1, keepdims=True)
    valid = (labels != -1).astype(jnp.float32)                   # (B, 1)
    nll = (lse - picked) * valid
    loss = (jnp.sum(nll, axis=0, keepdims=True)
            / jnp.sum(valid, axis=0, keepdims=True))             # (1, 1)

    # pack: cols [0:LABEL_SIZE]=logits, [LABEL_SIZE]=best, [LABEL_SIZE+1]=loss
    slab = jnp.where(col == LABEL_SIZE, best.astype(jnp.float32), logits)
    slab = jnp.where(col == LABEL_SIZE + 1, loss, slab)
    out_ref[...] = slab


# ---------------------------------------------------------------------------
# pallas_call wrapper
# ---------------------------------------------------------------------------
def _const_spec(shape):
    nd = len(shape)
    return pl.BlockSpec(tuple(shape), lambda i, _nd=nd: (0,) * _nd)


def fused_bert_call(x2, mask2d, labels2, params):
    st = params['stacked']
    ins = [x2, mask2d, labels2,
           st['wqkv'], st['bqkv'], st['wo'], st['bo'], st['ln1g'], st['ln1b'],
           st['w1'], st['b1'], st['w2'], st['b2'], st['ln2g'], st['ln2b'],
           params['pool_w'], params['pool_b'],
           params['cls_w_pad'], params['cls_b_pad']]
    in_specs = [_const_spec(a.shape) for a in ins]

    flops = int(
        N_LAYERS * (2 * M * H * QKV_PAD
                    + NUM_HEADS * (2 * M * M * HEAD_PAD * 2
                                   + 2 * M * HEAD_PAD * H)
                    + 2 * 2 * M * H * INTER)
        + 2 * B * H * H + 2 * B * H * LANE)
    transcendentals = int(
        N_LAYERS * (NUM_HEADS * M * M + M * INTER + 4 * M)
        + B * H + B * LANE)
    bytes_accessed = int(sum(int(a.size) * a.dtype.itemsize for a in ins)
                         + B * LANE * 4)

    return pl.pallas_call(
        bert_fused_kernel,
        out_shape=jax.ShapeDtypeStruct((B, LANE), jnp.float32),
        grid=(1,),
        in_specs=in_specs,
        out_specs=pl.BlockSpec((B, LANE), lambda i: (0, 0)),
        scratch_shapes=[pltpu.VMEM((M, H), jnp.float32)],
        compiler_params=pltpu.CompilerParams(
            dimension_semantics=("arbitrary",)),
        cost_estimate=pl.CostEstimate(flops=flops,
                                      transcendentals=transcendentals,
                                      bytes_accessed=bytes_accessed),
    )(*ins)


def _ln_jax(x, g, b):
    mu = x.mean(-1, keepdims=True)
    var = ((x - mu) ** 2).mean(-1, keepdims=True)
    return (x - mu) * jax.lax.rsqrt(var + LN_EPS) * g + b


def bert_fc_forward(params, input_ids, attention_mask, labels,
                    token_type_ids=None):
    """Returns (best_labels[B], loss[], logits[B, LABEL_SIZE])."""
    if token_type_ids is None:
        token_type_ids = jnp.zeros_like(input_ids)

    # embeddings: table gathers have no clean BlockSpec form at this size -> JAX glue
    emb = (params['word_emb'][input_ids]
           + params['pos_emb'][jnp.arange(S)][None, :, :]
           + params['type_emb'][token_type_ids])
    x = _ln_jax(emb, params['emb_ln_g'], params['emb_ln_b']).astype(jnp.float32)
    x2 = x.reshape(M, H)                  # pre-reshaped once in the wrapper

    # 2-D additive attention mask: block-diagonal over batches + key padding
    batch_id = jnp.arange(M) // S
    same = batch_id[:, None] == batch_id[None, :]
    key_ok = attention_mask.reshape(M).astype(bool)
    mask2d = jnp.where(same & key_ok[None, :], 0.0, NEG_INF).astype(jnp.float32)

    labels2 = labels.astype(jnp.int32).reshape(B, 1)

    slab = fused_bert_call(x2, mask2d, labels2, params)                # (B, LANE)
    logits = slab[:, :LABEL_SIZE]
    best = slab[:, LABEL_SIZE].astype(jnp.int32)
    loss = slab[0, LABEL_SIZE + 1]
    return best, loss, logits


# ---------------------------------------------------------------------------
# deterministic parameter init (synthetic, no checkpoint loading)
# ---------------------------------------------------------------------------
def init_params(key):
    keys = iter(jax.random.split(key, 128))

    def w(shape, scale=0.02):
        return jax.random.normal(next(keys), shape, jnp.float32) * scale

    params = {
        'word_emb': w((VOCAB, H)),
        'pos_emb': w((MAX_POS, H)),
        'type_emb': w((N_TYPES, H)),
        'emb_ln_g': jnp.ones((H,), jnp.float32),
        'emb_ln_b': jnp.zeros((H,), jnp.float32),
        # BERT pooler (bf16 matmul operands)
        'pool_w': w((H, H)).astype(jnp.bfloat16),
        'pool_b': jnp.zeros((1, H), jnp.float32),
    }
    # cls_layer of BertFCModel, lane-padded to 128 output columns:
    # zero weight columns + NEG_INF bias so padded logits never win argmax
    # and contribute ~0 to the softmax/CE.
    cls_w = w((H, LABEL_SIZE))
    params['cls_w_pad'] = (jnp.zeros((H, LANE), jnp.float32)
                           .at[:, :LABEL_SIZE].set(cls_w)
                           .astype(jnp.bfloat16))
    params['cls_b_pad'] = (jnp.full((1, LANE), NEG_INF, jnp.float32)
                           .at[:, :LABEL_SIZE].set(0.0))

    # Head-padded fused QKV: per head h, columns
    #   [h*384 + 0   : +128) = Q_h (first 64 real, rest zero lanes)
    #   [h*384 + 128 : +256) = K_h
    #   [h*384 + 256 : +384) = V_h
    # Zero padding of weights (and biases) keeps the 128-wide contraction exact.
    def padded_qkv_layer():
        blocks = []
        for _h in range(NUM_HEADS):
            for _qkv in range(3):
                blk = jnp.zeros((H, HEAD_PAD), jnp.float32)
                blk = blk.at[:, :HEAD_DIM].set(w((H, HEAD_DIM)))
                blocks.append(blk)
        return jnp.concatenate(blocks, axis=1)            # (H, QKV_PAD)

    # Row-padded attention output projection: rows [h*128 : h*128+64) real.
    def padded_wo_layer():
        rows = []
        for _h in range(NUM_HEADS):
            blk = jnp.zeros((HEAD_PAD, H), jnp.float32)
            blk = blk.at[:HEAD_DIM, :].set(w((HEAD_DIM, H)))
            rows.append(blk)
        return jnp.concatenate(rows, axis=0)              # (NUM_HEADS*HEAD_PAD, H)

    params['stacked'] = {
        'wqkv': jnp.stack([padded_qkv_layer()
                           for _ in range(N_LAYERS)]).astype(jnp.bfloat16),
        'bqkv': jnp.zeros((N_LAYERS, 1, QKV_PAD), jnp.float32),
        'wo': jnp.stack([padded_wo_layer()
                         for _ in range(N_LAYERS)]).astype(jnp.bfloat16),
        'bo': jnp.zeros((N_LAYERS, 1, H), jnp.float32),
        'ln1g': jnp.ones((N_LAYERS, 1, H), jnp.float32),
        'ln1b': jnp.zeros((N_LAYERS, 1, H), jnp.float32),
        'w1': w((N_LAYERS, H, INTER)).astype(jnp.bfloat16),
        'b1': jnp.zeros((N_LAYERS, 1, INTER), jnp.float32),
        'w2': w((N_LAYERS, INTER, H)).astype(jnp.bfloat16),
        'b2': jnp.zeros((N_LAYERS, 1, H), jnp.float32),
        'ln2g': jnp.ones((N_LAYERS, 1, H), jnp.float32),
        'ln2b': jnp.zeros((N_LAYERS, 1, H), jnp.float32),
    }
    return params


if __name__ == "__main__":
    root = jax.random.PRNGKey(0)
    pkey, dkey = jax.random.split(root)
    params = init_params(pkey)

    input_ids = jax.random.randint(dkey, (B, S), 0, VOCAB, dtype=jnp.int32)
    attention_mask = jnp.array([[1] * S,
                                [1] * (S - 2) + [0] * 2], dtype=jnp.int32)
    labels = jnp.array([2, -1], dtype=jnp.int32)   # -1 exercises ignore_index

    best_labels, loss, logits = bert_fc_forward(params, input_ids,
                                                attention_mask, labels)
    jax.block_until_ready((best_labels, loss, logits))
    print("KERNEL_OK")
</pallas_src>

<mosaic_0001>
module attributes {stable_mosaic.version = 11 : i64} {
  func.func @bert_fused_kernel(%arg0: i32, %arg1: memref<16x128xf32, #tpu.memory_space<vmem>>, %arg2: memref<16x16xf32, #tpu.memory_space<vmem>>, %arg3: memref<2x1xi32, #tpu.memory_space<vmem>>, %arg4: memref<2x128x768xbf16, #tpu.memory_space<vmem>>, %arg5: memref<2x1x768xf32, #tpu.memory_space<vmem>>, %arg6: memref<2x256x128xbf16, #tpu.memory_space<vmem>>, %arg7: memref<2x1x128xf32, #tpu.memory_space<vmem>>, %arg8: memref<2x1x128xf32, #tpu.memory_space<vmem>>, %arg9: memref<2x1x128xf32, #tpu.memory_space<vmem>>, %arg10: memref<2x128x512xbf16, #tpu.memory_space<vmem>>, %arg11: memref<2x1x512xf32, #tpu.memory_space<vmem>>, %arg12: memref<2x512x128xbf16, #tpu.memory_space<vmem>>, %arg13: memref<2x1x128xf32, #tpu.memory_space<vmem>>, %arg14: memref<2x1x128xf32, #tpu.memory_space<vmem>>, %arg15: memref<2x1x128xf32, #tpu.memory_space<vmem>>, %arg16: memref<128x128xbf16, #tpu.memory_space<vmem>>, %arg17: memref<1x128xf32, #tpu.memory_space<vmem>>, %arg18: memref<128x128xbf16, #tpu.memory_space<vmem>>, %arg19: memref<1x128xf32, #tpu.memory_space<vmem>>, %arg20: memref<2x128xf32, #tpu.memory_space<vmem>>, %arg21: memref<16x128xf32, #tpu.memory_space<vmem>>) attributes {dimension_semantics = [#tpu.dimension_semantics<arbitrary>], iteration_bounds = array<i64: 1>, scalar_prefetch = 0 : i64, scratch_operands = 1 : i64, tpu.core_type = #tpu.core_type<tc>, window_params = [{pipeline_mode = #tpu.pipeline_mode<synchronous>, transform_indices = @transform_0, window_bounds = array<i64: 16, 128>}, {pipeline_mode = #tpu.pipeline_mode<synchronous>, transform_indices = @transform_1, window_bounds = array<i64: 16, 16>}, {pipeline_mode = #tpu.pipeline_mode<synchronous>, transform_indices = @transform_2, window_bounds = array<i64: 2, 1>}, {pipeline_mode = #tpu.pipeline_mode<synchronous>, transform_indices = @transform_3, window_bounds = array<i64: 2, 128, 768>}, {pipeline_mode = #tpu.pipeline_mode<synchronous>, transform_indices = @transform_4, window_bounds = array<i64: 2, 1, 768>}, {pipeline_mode = #tpu.pipeline_mode<synchronous>, transform_indices = @transform_5, window_bounds = array<i64: 2, 256, 128>}, {pipeline_mode = #tpu.pipeline_mode<synchronous>, transform_indices = @transform_6, window_bounds = array<i64: 2, 1, 128>}, {pipeline_mode = #tpu.pipeline_mode<synchronous>, transform_indices = @transform_7, window_bounds = array<i64: 2, 1, 128>}, {pipeline_mode = #tpu.pipeline_mode<synchronous>, transform_indices = @transform_8, window_bounds = array<i64: 2, 1, 128>}, {pipeline_mode = #tpu.pipeline_mode<synchronous>, transform_indices = @transform_9, window_bounds = array<i64: 2, 128, 512>}, {pipeline_mode = #tpu.pipeline_mode<synchronous>, transform_indices = @transform_10, window_bounds = array<i64: 2, 1, 512>}, {pipeline_mode = #tpu.pipeline_mode<synchronous>, transform_indices = @transform_11, window_bounds = array<i64: 2, 512, 128>}, {pipeline_mode = #tpu.pipeline_mode<synchronous>, transform_indices = @transform_12, window_bounds = array<i64: 2, 1, 128>}, {pipeline_mode = #tpu.pipeline_mode<synchronous>, transform_indices = @transform_13, window_bounds = array<i64: 2, 1, 128>}, {pipeline_mode = #tpu.pipeline_mode<synchronous>, transform_indices = @transform_14, window_bounds = array<i64: 2, 1, 128>}, {pipeline_mode = #tpu.pipeline_mode<synchronous>, transform_indices = @transform_15, window_bounds = array<i64: 128, 128>}, {pipeline_mode = #tpu.pipeline_mode<synchronous>, transform_indices = @transform_16, window_bounds = array<i64: 1, 128>}, {pipeline_mode = #tpu.pipeline_mode<synchronous>, transform_indices = @transform_17, window_bounds = array<i64: 128, 128>}, {pipeline_mode = #tpu.pipeline_mode<synchronous>, transform_indices = @transform_18, window_bounds = array<i64: 1, 128>}, {pipeline_mode = #tpu.pipeline_mode<synchronous>, transform_indices = @transform_19, window_bounds = array<i64: 2, 128>}]} {
    %c0 = arith.constant 0 : index
    %c0_0 = arith.constant 0 : index
    %0 = vector.load %arg1[%c0, %c0_0] : memref<16x128xf32, #tpu.memory_space<vmem>>, vector<16x128xf32>
    %c0_1 = arith.constant 0 : index
    %c0_2 = arith.constant 0 : index
    %1 = vector.load %arg2[%c0_1, %c0_2] : memref<16x16xf32, #tpu.memory_space<vmem>>, vector<16x16xf32>
    %2 = arith.truncf %0 : vector<16x128xf32> to vector<16x128xbf16>
    %c0_3 = arith.constant 0 : index
    %c0_4 = arith.constant 0 : index
    %c0_5 = arith.constant 0 : index
    %3 = vector.load %arg4[%c0_3, %c0_4, %c0_5] : memref<2x128x768xbf16, #tpu.memory_space<vmem>>, vector<1x128x768xbf16>
    %4 = vector.shape_cast %3 : vector<1x128x768xbf16> to vector<128x768xbf16>
    %cst = arith.constant dense<0.000000e+00> : vector<16x768xf32>
    %5 = tpu.matmul %2, %4, %cst {dimension_numbers = #tpu.dot_dimension_numbers<[1], [0], [0], [1], [0, 0, 1, 1], [], []>} : vector<16x128xbf16>, vector<128x768xbf16>, vector<16x768xf32> -> vector<16x768xf32>
    %c0_6 = arith.constant 0 : index
    %c0_7 = arith.constant 0 : index
    %c0_8 = arith.constant 0 : index
    %6 = vector.load %arg5[%c0_6, %c0_7, %c0_8] : memref<2x1x768xf32, #tpu.memory_space<vmem>>, vector<1x1x768xf32>
    %7 = vector.shape_cast %6 : vector<1x1x768xf32> to vector<1x768xf32>
    %8 = vector.broadcast %7 : vector<1x768xf32> to vector<16x768xf32>
    %9 = arith.addf %5, %8 : vector<16x768xf32>
    %c0_9 = arith.constant 0 : index
    %c0_10 = arith.constant 0 : index
    %c0_11 = arith.constant 0 : index
    %10 = vector.load %arg6[%c0_9, %c0_10, %c0_11] : memref<2x256x128xbf16, #tpu.memory_space<vmem>>, vector<1x256x128xbf16>
    %11 = vector.shape_cast %10 : vector<1x256x128xbf16> to vector<256x128xbf16>
    %cst_12 = arith.constant 0.000000e+00 : f32
    %12 = vector.broadcast %cst_12 : f32 to vector<16x128xf32>
    %13 = vector.extract_strided_slice %9 {offsets = [0, 0], sizes = [16, 128], strides = [1, 1]} : vector<16x768xf32> to vector<16x128xf32>
    %14 = vector.extract_strided_slice %9 {offsets = [0, 128], sizes = [16, 128], strides = [1, 1]} : vector<16x768xf32> to vector<16x128xf32>
    %15 = vector.extract_strided_slice %9 {offsets = [0, 256], sizes = [16, 128], strides = [1, 1]} : vector<16x768xf32> to vector<16x128xf32>
    %16 = arith.truncf %13 : vector<16x128xf32> to vector<16x128xbf16>
    %17 = arith.truncf %14 : vector<16x128xf32> to vector<16x128xbf16>
    "tpu.trace_start"() <{level = 10 : i32, message = "qd,kd->qk"}> : () -> ()
    %cst_13 = arith.constant dense<0.000000e+00> : vector<16x16xf32>
    %18 = tpu.matmul %16, %17, %cst_13 {dimension_numbers = #tpu.dot_dimension_numbers<[1], [1], [0], [0], [0, 0, 1, 0], [], []>} : vector<16x128xbf16>, vector<16x128xbf16>, vector<16x16xf32> -> vector<16x16xf32>
    "tpu.trace_stop"() : () -> ()
    %cst_14 = arith.constant 1.250000e-01 : f32
    %19 = vector.broadcast %cst_14 : f32 to vector<16x16xf32>
    %20 = arith.mulf %18, %19 : vector<16x16xf32>
    %21 = arith.addf %20, %1 : vector<16x16xf32>
    %cst_15 = arith.constant dense<0xFF800000> : vector<16xf32>
    %22 = vector.multi_reduction <maximumf>, %21, %cst_15 [1] : vector<16x16xf32> to vector<16xf32>
    %23 = vector.shape_cast %22 : vector<16xf32> to vector<16x1xf32>
    %24 = vector.broadcast %23 : vector<16x1xf32> to vector<16x16xf32>
    %25 = arith.subf %21, %24 : vector<16x16xf32>
    %26 = math.exp %25 : vector<16x16xf32>
    %cst_16 = arith.constant dense<0.000000e+00> : vector<16xf32>
    %27 = vector.multi_reduction <add>, %26, %cst_16 [1] : vector<16x16xf32> to vector<16xf32>
    %28 = vector.shape_cast %27 : vector<16xf32> to vector<16x1xf32>
    %29 = tpu.reciprocal %28 {approx = true} : vector<16x1xf32> -> vector<16x1xf32>
    %30 = vector.broadcast %29 : vector<16x1xf32> to vector<16x16xf32>
    %31 = arith.mulf %26, %30 : vector<16x16xf32>
    %32 = arith.truncf %31 : vector<16x16xf32> to vector<16x16xbf16>
    %33 = arith.truncf %15 : vector<16x128xf32> to vector<16x128xbf16>
    %cst_17 = arith.constant dense<0.000000e+00> : vector<16x128xf32>
    %34 = tpu.matmul %32, %33, %cst_17 {dimension_numbers = #tpu.dot_dimension_numbers<[1], [0], [0], [1], [0, 0, 1, 1], [], []>} : vector<16x16xbf16>, vector<16x128xbf16>, vector<16x128xf32> -> vector<16x128xf32>
    %35 = arith.truncf %34 : vector<16x128xf32> to vector<16x128xbf16>
    %36 = vector.extract_strided_slice %11 {offsets = [0, 0], sizes = [128, 128], strides = [1, 1]} : vector<256x128xbf16> to vector<128x128xbf16>
    %cst_18 = arith.constant dense<0.000000e+00> : vector<16x128xf32>
    %37 = tpu.matmul %35, %36, %cst_18 {dimension_numbers = #tpu.dot_dimension_numbers<[1], [0], [0], [1], [0, 0, 1, 1], [], []>} : vector<16x128xbf16>, vector<128x128xbf16>, vector<16x128xf32> -> vector<16x128xf32>
    %38 = arith.addf %12, %37 : vector<16x128xf32>
    %39 = vector.extract_strided_slice %9 {offsets = [0, 384], sizes = [16, 128], strides = [1, 1]} : vector<16x768xf32> to vector<16x128xf32>
    %40 = vector.extract_strided_slice %9 {offsets = [0, 512], sizes = [16, 128], strides = [1, 1]} : vector<16x768xf32> to vector<16x128xf32>
    %41 = vector.extract_strided_slice %9 {offsets = [0, 640], sizes = [16, 128], strides = [1, 1]} : vector<16x768xf32> to vector<16x128xf32>
    %42 = arith.truncf %39 : vector<16x128xf32> to vector<16x128xbf16>
    %43 = arith.truncf %40 : vector<16x128xf32> to vector<16x128xbf16>
    "tpu.trace_start"() <{level = 10 : i32, message = "qd,kd->qk"}> : () -> ()
    %cst_19 = arith.constant dense<0.000000e+00> : vector<16x16xf32>
    %44 = tpu.matmul %42, %43, %cst_19 {dimension_numbers = #tpu.dot_dimension_numbers<[1], [1], [0], [0], [0, 0, 1, 0], [], []>} : vector<16x128xbf16>, vector<16x128xbf16>, vector<16x16xf32> -> vector<16x16xf32>
    "tpu.trace_stop"() : () -> ()
    %cst_20 = arith.constant 1.250000e-01 : f32
    %45 = vector.broadcast %cst_20 : f32 to vector<16x16xf32>
    %46 = arith.mulf %44, %45 : vector<16x16xf32>
    %47 = arith.addf %46, %1 : vector<16x16xf32>
    %cst_21 = arith.constant dense<0xFF800000> : vector<16xf32>
    %48 = vector.multi_reduction <maximumf>, %47, %cst_21 [1] : vector<16x16xf32> to vector<16xf32>
    %49 = vector.shape_cast %48 : vector<16xf32> to vector<16x1xf32>
    %50 = vector.broadcast %49 : vector<16x1xf32> to vector<16x16xf32>
    %51 = arith.subf %47, %50 : vector<16x16xf32>
    %52 = math.exp %51 : vector<16x16xf32>
    %cst_22 = arith.constant dense<0.000000e+00> : vector<16xf32>
    %53 = vector.multi_reduction <add>, %52, %cst_22 [1] : vector<16x16xf32> to vector<16xf32>
    %54 = vector.shape_cast %53 : vector<16xf32> to vector<16x1xf32>
    %55 = tpu.reciprocal %54 {approx = true} : vector<16x1xf32> -> vector<16x1xf32>
    %56 = vector.broadcast %55 : vector<16x1xf32> to vector<16x16xf32>
    %57 = arith.mulf %52, %56 : vector<16x16xf32>
    %58 = arith.truncf %57 : vector<16x16xf32> to vector<16x16xbf16>
    %59 = arith.truncf %41 : vector<16x128xf32> to vector<16x128xbf16>
    %cst_23 = arith.constant dense<0.000000e+00> : vector<16x128xf32>
    %60 = tpu.matmul %58, %59, %cst_23 {dimension_numbers = #tpu.dot_dimension_numbers<[1], [0], [0], [1], [0, 0, 1, 1], [], []>} : vector<16x16xbf16>, vector<16x128xbf16>, vector<16x128xf32> -> vector<16x128xf32>
    %61 = arith.truncf %60 : vector<16x128xf32> to vector<16x128xbf16>
    %62 = vector.extract_strided_slice %11 {offsets = [128, 0], sizes = [128, 128], strides = [1, 1]} : vector<256x128xbf16> to vector<128x128xbf16>
    %cst_24 = arith.constant dense<0.000000e+00> : vector<16x128xf32>
    %63 = tpu.matmul %61, %62, %cst_24 {dimension_numbers = #tpu.dot_dimension_numbers<[1], [0], [0], [1], [0, 0, 1, 1], [], []>} : vector<16x128xbf16>, vector<128x128xbf16>, vector<16x128xf32> -> vector<16x128xf32>
    %64 = arith.addf %38, %63 : vector<16x128xf32>
    %c0_25 = arith.constant 0 : index
    %c0_26 = arith.constant 0 : index
    %c0_27 = arith.constant 0 : index
    %65 = vector.load %arg7[%c0_25, %c0_26, %c0_27] : memref<2x1x128xf32, #tpu.memory_space<vmem>>, vector<1x1x128xf32>
    %66 = vector.shape_cast %65 : vector<1x1x128xf32> to vector<1x128xf32>
    %67 = vector.broadcast %66 : vector<1x128xf32> to vector<16x128xf32>
    %68 = arith.addf %64, %67 : vector<16x128xf32>
    %69 = arith.addf %0, %68 : vector<16x128xf32>
    %c0_28 = arith.constant 0 : index
    %c0_29 = arith.constant 0 : index
    %c0_30 = arith.constant 0 : index
    %70 = vector.load %arg8[%c0_28, %c0_29, %c0_30] : memref<2x1x128xf32, #tpu.memory_space<vmem>>, vector<1x1x128xf32>
    %71 = vector.shape_cast %70 : vector<1x1x128xf32> to vector<1x128xf32>
    %c0_31 = arith.constant 0 : index
    %c0_32 = arith.constant 0 : index
    %c0_33 = arith.constant 0 : index
    %72 = vector.load %arg9[%c0_31, %c0_32, %c0_33] : memref<2x1x128xf32, #tpu.memory_space<vmem>>, vector<1x1x128xf32>
    %73 = vector.shape_cast %72 : vector<1x1x128xf32> to vector<1x128xf32>
    %cst_34 = arith.constant dense<0.000000e+00> : vector<16xf32>
    %74 = vector.multi_reduction <add>, %69, %cst_34 [1] : vector<16x128xf32> to vector<16xf32>
    %75 = vector.shape_cast %74 : vector<16xf32> to vector<16x1xf32>
    %cst_35 = arith.constant 1.280000e+02 : f32
    %76 = vector.broadcast %cst_35 : f32 to vector<16x1xf32>
    %77 = arith.divf %75, %76 : vector<16x1xf32>
    %78 = vector.broadcast %77 : vector<16x1xf32> to vector<16x128xf32>
    %79 = arith.subf %69, %78 : vector<16x128xf32>
    %80 = arith.mulf %79, %79 : vector<16x128xf32>
    %cst_36 = arith.constant dense<0.000000e+00> : vector<16xf32>
    %81 = vector.multi_reduction <add>, %80, %cst_36 [1] : vector<16x128xf32> to vector<16xf32>
    %82 = vector.shape_cast %81 : vector<16xf32> to vector<16x1xf32>
    %cst_37 = arith.constant 1.280000e+02 : f32
    %83 = vector.broadcast %cst_37 : f32 to vector<16x1xf32>
    %84 = arith.divf %82, %83 : vector<16x1xf32>
    %cst_38 = arith.constant 9.99999996E-13 : f32
    %85 = vector.broadcast %cst_38 : f32 to vector<16x1xf32>
    %86 = arith.addf %84, %85 : vector<16x1xf32>
    %87 = math.rsqrt %86 : vector<16x1xf32>
    %88 = vector.broadcast %77 : vector<16x1xf32> to vector<16x128xf32>
    %89 = arith.subf %69, %88 : vector<16x128xf32>
    %90 = vector.broadcast %87 : vector<16x1xf32> to vector<16x128xf32>
    %91 = arith.mulf %89, %90 : vector<16x128xf32>
    %92 = vector.broadcast %71 : vector<1x128xf32> to vector<16x128xf32>
    %93 = arith.mulf %91, %92 : vector<16x128xf32>
    %94 = vector.broadcast %73 : vector<1x128xf32> to vector<16x128xf32>
    %95 = arith.addf %93, %94 : vector<16x128xf32>
    %96 = arith.truncf %95 : vector<16x128xf32> to vector<16x128xbf16>
    %c0_39 = arith.constant 0 : index
    %c0_40 = arith.constant 0 : index
    %c0_41 = arith.constant 0 : index
    %97 = vector.load %arg10[%c0_39, %c0_40, %c0_41] : memref<2x128x512xbf16, #tpu.memory_space<vmem>>, vector<1x128x512xbf16>
    %98 = vector.shape_cast %97 : vector<1x128x512xbf16> to vector<128x512xbf16>
    %cst_42 = arith.constant dense<0.000000e+00> : vector<16x512xf32>
    %99 = tpu.matmul %96, %98, %cst_42 {dimension_numbers = #tpu.dot_dimension_numbers<[1], [0], [0], [1], [0, 0, 1, 1], [], []>} : vector<16x128xbf16>, vector<128x512xbf16>, vector<16x512xf32> -> vector<16x512xf32>
    %c0_43 = arith.constant 0 : index
    %c0_44 = arith.constant 0 : index
    %c0_45 = arith.constant 0 : index
    %100 = vector.load %arg11[%c0_43, %c0_44, %c0_45] : memref<2x1x512xf32, #tpu.memory_space<vmem>>, vector<1x1x512xf32>
    %101 = vector.shape_cast %100 : vector<1x1x512xf32> to vector<1x512xf32>
    %102 = vector.broadcast %101 : vector<1x512xf32> to vector<16x512xf32>
    %103 = arith.addf %99, %102 : vector<16x512xf32>
    %cst_46 = arith.constant 5.000000e-01 : f32
    %104 = vector.broadcast %cst_46 : f32 to vector<16x512xf32>
    %105 = arith.mulf %104, %103 : vector<16x512xf32>
    %cst_47 = arith.constant 4.471500e-02 : f32
    %106 = vector.broadcast %cst_47 : f32 to vector<16x512xf32>
    %107 = arith.mulf %106, %103 : vector<16x512xf32>
    %108 = arith.mulf %107, %103 : vector<16x512xf32>
    %109 = arith.mulf %108, %103 : vector<16x512xf32>
    %110 = arith.addf %103, %109 : vector<16x512xf32>
    %cst_48 = arith.constant 0.797884583 : f32
    %111 = vector.broadcast %cst_48 : f32 to vector<16x512xf32>
    %112 = arith.mulf %111, %110 : vector<16x512xf32>
    %113 = math.tanh %112 : vector<16x512xf32>
    %cst_49 = arith.constant 1.000000e+00 : f32
    %114 = vector.broadcast %cst_49 : f32 to vector<16x512xf32>
    %115 = arith.addf %114, %113 : vector<16x512xf32>
    %116 = arith.mulf %105, %115 : vector<16x512xf32>
    %117 = arith.truncf %116 : vector<16x512xf32> to vector<16x512xbf16>
    %c0_50 = arith.constant 0 : index
    %c0_51 = arith.constant 0 : index
    %c0_52 = arith.constant 0 : index
    %118 = vector.load %arg12[%c0_50, %c0_51, %c0_52] : memref<2x512x128xbf16, #tpu.memory_space<vmem>>, vector<1x512x128xbf16>
    %119 = vector.shape_cast %118 : vector<1x512x128xbf16> to vector<512x128xbf16>
    %cst_53 = arith.constant dense<0.000000e+00> : vector<16x128xf32>
    %120 = tpu.matmul %117, %119, %cst_53 {dimension_numbers = #tpu.dot_dimension_numbers<[1], [0], [0], [1], [0, 0, 1, 1], [], []>} : vector<16x512xbf16>, vector<512x128xbf16>, vector<16x128xf32> -> vector<16x128xf32>
    %c0_54 = arith.constant 0 : index
    %c0_55 = arith.constant 0 : index
    %c0_56 = arith.constant 0 : index
    %121 = vector.load %arg13[%c0_54, %c0_55, %c0_56] : memref<2x1x128xf32, #tpu.memory_space<vmem>>, vector<1x1x128xf32>
    %122 = vector.shape_cast %121 : vector<1x1x128xf32> to vector<1x128xf32>
    %123 = vector.broadcast %122 : vector<1x128xf32> to vector<16x128xf32>
    %124 = arith.addf %120, %123 : vector<16x128xf32>
    %125 = arith.addf %95, %124 : vector<16x128xf32>
    %c0_57 = arith.constant 0 : index
    %c0_58 = arith.constant 0 : index
    %c0_59 = arith.constant 0 : index
    %126 = vector.load %arg14[%c0_57, %c0_58, %c0_59] : memref<2x1x128xf32, #tpu.memory_space<vmem>>, vector<1x1x128xf32>
    %127 = vector.shape_cast %126 : vector<1x1x128xf32> to vector<1x128xf32>
    %c0_60 = arith.constant 0 : index
    %c0_61 = arith.constant 0 : index
    %c0_62 = arith.constant 0 : index
    %128 = vector.load %arg15[%c0_60, %c0_61, %c0_62] : memref<2x1x128xf32, #tpu.memory_space<vmem>>, vector<1x1x128xf32>
    %129 = vector.shape_cast %128 : vector<1x1x128xf32> to vector<1x128xf32>
    %cst_63 = arith.constant dense<0.000000e+00> : vector<16xf32>
    %130 = vector.multi_reduction <add>, %125, %cst_63 [1] : vector<16x128xf32> to vector<16xf32>
    %131 = vector.shape_cast %130 : vector<16xf32> to vector<16x1xf32>
    %cst_64 = arith.constant 1.280000e+02 : f32
    %132 = vector.broadcast %cst_64 : f32 to vector<16x1xf32>
    %133 = arith.divf %131, %132 : vector<16x1xf32>
    %134 = vector.broadcast %133 : vector<16x1xf32> to vector<16x128xf32>
    %135 = arith.subf %125, %134 : vector<16x128xf32>
    %136 = arith.mulf %135, %135 : vector<16x128xf32>
    %cst_65 = arith.constant dense<0.000000e+00> : vector<16xf32>
    %137 = vector.multi_reduction <add>, %136, %cst_65 [1] : vector<16x128xf32> to vector<16xf32>
    %138 = vector.shape_cast %137 : vector<16xf32> to vector<16x1xf32>
    %cst_66 = arith.constant 1.280000e+02 : f32
    %139 = vector.broadcast %cst_66 : f32 to vector<16x1xf32>
    %140 = arith.divf %138, %139 : vector<16x1xf32>
    %cst_67 = arith.constant 9.99999996E-13 : f32
    %141 = vector.broadcast %cst_67 : f32 to vector<16x1xf32>
    %142 = arith.addf %140, %141 : vector<16x1xf32>
    %143 = math.rsqrt %142 : vector<16x1xf32>
    %144 = vector.broadcast %133 : vector<16x1xf32> to vector<16x128xf32>
    %145 = arith.subf %125, %144 : vector<16x128xf32>
    %146 = vector.broadcast %143 : vector<16x1xf32> to vector<16x128xf32>
    %147 = arith.mulf %145, %146 : vector<16x128xf32>
    %148 = vector.broadcast %127 : vector<1x128xf32> to vector<16x128xf32>
    %149 = arith.mulf %147, %148 : vector<16x128xf32>
    %150 = vector.broadcast %129 : vector<1x128xf32> to vector<16x128xf32>
    %151 = arith.addf %149, %150 : vector<16x128xf32>
    %152 = arith.truncf %151 : vector<16x128xf32> to vector<16x128xbf16>
    %c1 = arith.constant 1 : index
    %c0_68 = arith.constant 0 : index
    %c0_69 = arith.constant 0 : index
    %153 = vector.load %arg4[%c1, %c0_68, %c0_69] : memref<2x128x768xbf16, #tpu.memory_space<vmem>>, vector<1x128x768xbf16>
    %154 = vector.shape_cast %153 : vector<1x128x768xbf16> to vector<128x768xbf16>
    %cst_70 = arith.constant dense<0.000000e+00> : vector<16x768xf32>
    %155 = tpu.matmul %152, %154, %cst_70 {dimension_numbers = #tpu.dot_dimension_numbers<[1], [0], [0], [1], [0, 0, 1, 1], [], []>} : vector<16x128xbf16>, vector<128x768xbf16>, vector<16x768xf32> -> vector<16x768xf32>
    %c1_71 = arith.constant 1 : index
    %c0_72 = arith.constant 0 : index
    %c0_73 = arith.constant 0 : index
    %156 = vector.load %arg5[%c1_71, %c0_72, %c0_73] : memref<2x1x768xf32, #tpu.memory_space<vmem>>, vector<1x1x768xf32>
    %157 = vector.shape_cast %156 : vector<1x1x768xf32> to vector<1x768xf32>
    %158 = vector.broadcast %157 : vector<1x768xf32> to vector<16x768xf32>
    %159 = arith.addf %155, %158 : vector<16x768xf32>
    %c1_74 = arith.constant 1 : index
    %c0_75 = arith.constant 0 : index
    %c0_76 = arith.constant 0 : index
    %160 = vector.load %arg6[%c1_74, %c0_75, %c0_76] : memref<2x256x128xbf16, #tpu.memory_space<vmem>>, vector<1x256x128xbf16>
    %161 = vector.shape_cast %160 : vector<1x256x128xbf16> to vector<256x128xbf16>
    %cst_77 = arith.constant 0.000000e+00 : f32
    %162 = vector.broadcast %cst_77 : f32 to vector<16x128xf32>
    %163 = vector.extract_strided_slice %159 {offsets = [0, 0], sizes = [16, 128], strides = [1, 1]} : vector<16x768xf32> to vector<16x128xf32>
    %164 = vector.extract_strided_slice %159 {offsets = [0, 128], sizes = [16, 128], strides = [1, 1]} : vector<16x768xf32> to vector<16x128xf32>
    %165 = vector.extract_strided_slice %159 {offsets = [0, 256], sizes = [16, 128], strides = [1, 1]} : vector<16x768xf32> to vector<16x128xf32>
    %166 = arith.truncf %163 : vector<16x128xf32> to vector<16x128xbf16>
    %167 = arith.truncf %164 : vector<16x128xf32> to vector<16x128xbf16>
    "tpu.trace_start"() <{level = 10 : i32, message = "qd,kd->qk"}> : () -> ()
    %cst_78 = arith.constant dense<0.000000e+00> : vector<16x16xf32>
    %168 = tpu.matmul %166, %167, %cst_78 {dimension_numbers = #tpu.dot_dimension_numbers<[1], [1], [0], [0], [0, 0, 1, 0], [], []>} : vector<16x128xbf16>, vector<16x128xbf16>, vector<16x16xf32> -> vector<16x16xf32>
    "tpu.trace_stop"() : () -> ()
    %cst_79 = arith.constant 1.250000e-01 : f32
    %169 = vector.broadcast %cst_79 : f32 to vector<16x16xf32>
    %170 = arith.mulf %168, %169 : vector<16x16xf32>
    %171 = arith.addf %170, %1 : vector<16x16xf32>
    %cst_80 = arith.constant dense<0xFF800000> : vector<16xf32>
    %172 = vector.multi_reduction <maximumf>, %171, %cst_80 [1] : vector<16x16xf32> to vector<16xf32>
    %173 = vector.shape_cast %172 : vector<16xf32> to vector<16x1xf32>
    %174 = vector.broadcast %173 : vector<16x1xf32> to vector<16x16xf32>
    %175 = arith.subf %171, %174 : vector<16x16xf32>
    %176 = math.exp %175 : vector<16x16xf32>
    %cst_81 = arith.constant dense<0.000000e+00> : vector<16xf32>
    %177 = vector.multi_reduction <add>, %176, %cst_81 [1] : vector<16x16xf32> to vector<16xf32>
    %178 = vector.shape_cast %177 : vector<16xf32> to vector<16x1xf32>
    %179 = tpu.reciprocal %178 {approx = true} : vector<16x1xf32> -> vector<16x1xf32>
    %180 = vector.broadcast %179 : vector<16x1xf32> to vector<16x16xf32>
    %181 = arith.mulf %176, %180 : vector<16x16xf32>
    %182 = arith.truncf %181 : vector<16x16xf32> to vector<16x16xbf16>
    %183 = arith.truncf %165 : vector<16x128xf32> to vector<16x128xbf16>
    %cst_82 = arith.constant dense<0.000000e+00> : vector<16x128xf32>
    %184 = tpu.matmul %182, %183, %cst_82 {dimension_numbers = #tpu.dot_dimension_numbers<[1], [0], [0], [1], [0, 0, 1, 1], [], []>} : vector<16x16xbf16>, vector<16x128xbf16>, vector<16x128xf32> -> vector<16x128xf32>
    %185 = arith.truncf %184 : vector<16x128xf32> to vector<16x128xbf16>
    %186 = vector.extract_strided_slice %161 {offsets = [0, 0], sizes = [128, 128], strides = [1, 1]} : vector<256x128xbf16> to vector<128x128xbf16>
    %cst_83 = arith.constant dense<0.000000e+00> : vector<16x128xf32>
    %187 = tpu.matmul %185, %186, %cst_83 {dimension_numbers = #tpu.dot_dimension_numbers<[1], [0], [0], [1], [0, 0, 1, 1], [], []>} : vector<16x128xbf16>, vector<128x128xbf16>, vector<16x128xf32> -> vector<16x128xf32>
    %188 = arith.addf %162, %187 : vector<16x128xf32>
    %189 = vector.extract_strided_slice %159 {offsets = [0, 384], sizes = [16, 128], strides = [1, 1]} : vector<16x768xf32> to vector<16x128xf32>
    %190 = vector.extract_strided_slice %159 {offsets = [0, 512], sizes = [16, 128], strides = [1, 1]} : vector<16x768xf32> to vector<16x128xf32>
    %191 = vector.extract_strided_slice %159 {offsets = [0, 640], sizes = [16, 128], strides = [1, 1]} : vector<16x768xf32> to vector<16x128xf32>
    %192 = arith.truncf %189 : vector<16x128xf32> to vector<16x128xbf16>
    %193 = arith.truncf %190 : vector<16x128xf32> to vector<16x128xbf16>
    "tpu.trace_start"() <{level = 10 : i32, message = "qd,kd->qk"}> : () -> ()
    %cst_84 = arith.constant dense<0.000000e+00> : vector<16x16xf32>
    %194 = tpu.matmul %192, %193, %cst_84 {dimension_numbers = #tpu.dot_dimension_numbers<[1], [1], [0], [0], [0, 0, 1, 0], [], []>} : vector<16x128xbf16>, vector<16x128xbf16>, vector<16x16xf32> -> vector<16x16xf32>
    "tpu.trace_stop"() : () -> ()
    %cst_85 = arith.constant 1.250000e-01 : f32
    %195 = vector.broadcast %cst_85 : f32 to vector<16x16xf32>
    %196 = arith.mulf %194, %195 : vector<16x16xf32>
    %197 = arith.addf %196, %1 : vector<16x16xf32>
    %cst_86 = arith.constant dense<0xFF800000> : vector<16xf32>
    %198 = vector.multi_reduction <maximumf>, %197, %cst_86 [1] : vector<16x16xf32> to vector<16xf32>
    %199 = vector.shape_cast %198 : vector<16xf32> to vector<16x1xf32>
    %200 = vector.broadcast %199 : vector<16x1xf32> to vector<16x16xf32>
    %201 = arith.subf %197, %200 : vector<16x16xf32>
    %202 = math.exp %201 : vector<16x16xf32>
    %cst_87 = arith.constant dense<0.000000e+00> : vector<16xf32>
    %203 = vector.multi_reduction <add>, %202, %cst_87 [1] : vector<16x16xf32> to vector<16xf32>
    %204 = vector.shape_cast %203 : vector<16xf32> to vector<16x1xf32>
    %205 = tpu.reciprocal %204 {approx = true} : vector<16x1xf32> -> vector<16x1xf32>
    %206 = vector.broadcast %205 : vector<16x1xf32> to vector<16x16xf32>
    %207 = arith.mulf %202, %206 : vector<16x16xf32>
    %208 = arith.truncf %207 : vector<16x16xf32> to vector<16x16xbf16>
    %209 = arith.truncf %191 : vector<16x128xf32> to vector<16x128xbf16>
    %cst_88 = arith.constant dense<0.000000e+00> : vector<16x128xf32>
    %210 = tpu.matmul %208, %209, %cst_88 {dimension_numbers = #tpu.dot_dimension_numbers<[1], [0], [0], [1], [0, 0, 1, 1], [], []>} : vector<16x16xbf16>, vector<16x128xbf16>, vector<16x128xf32> -> vector<16x128xf32>
    %211 = arith.truncf %210 : vector<16x128xf32> to vector<16x128xbf16>
    %212 = vector.extract_strided_slice %161 {offsets = [128, 0], sizes = [128, 128], strides = [1, 1]} : vector<256x128xbf16> to vector<128x128xbf16>
    %cst_89 = arith.constant dense<0.000000e+00> : vector<16x128xf32>
    %213 = tpu.matmul %211, %212, %cst_89 {dimension_numbers = #tpu.dot_dimension_numbers<[1], [0], [0], [1], [0, 0, 1, 1], [], []>} : vector<16x128xbf16>, vector<128x128xbf16>, vector<16x128xf32> -> vector<16x128xf32>
    %214 = arith.addf %188, %213 : vector<16x128xf32>
    %c1_90 = arith.constant 1 : index
    %c0_91 = arith.constant 0 : index
    %c0_92 = arith.constant 0 : index
    %215 = vector.load %arg7[%c1_90, %c0_91, %c0_92] : memref<2x1x128xf32, #tpu.memory_space<vmem>>, vector<1x1x128xf32>
    %216 = vector.shape_cast %215 : vector<1x1x128xf32> to vector<1x128xf32>
    %217 = vector.broadcast %216 : vector<1x128xf32> to vector<16x128xf32>
    %218 = arith.addf %214, %217 : vector<16x128xf32>
    %219 = arith.addf %151, %218 : vector<16x128xf32>
    %c1_93 = arith.constant 1 : index
    %c0_94 = arith.constant 0 : index
    %c0_95 = arith.constant 0 : index
    %220 = vector.load %arg8[%c1_93, %c0_94, %c0_95] : memref<2x1x128xf32, #tpu.memory_space<vmem>>, vector<1x1x128xf32>
    %221 = vector.shape_cast %220 : vector<1x1x128xf32> to vector<1x128xf32>
    %c1_96 = arith.constant 1 : index
    %c0_97 = arith.constant 0 : index
    %c0_98 = arith.constant 0 : index
    %222 = vector.load %arg9[%c1_96, %c0_97, %c0_98] : memref<2x1x128xf32, #tpu.memory_space<vmem>>, vector<1x1x128xf32>
    %223 = vector.shape_cast %222 : vector<1x1x128xf32> to vector<1x128xf32>
    %cst_99 = arith.constant dense<0.000000e+00> : vector<16xf32>
    %224 = vector.multi_reduction <add>, %219, %cst_99 [1] : vector<16x128xf32> to vector<16xf32>
    %225 = vector.shape_cast %224 : vector<16xf32> to vector<16x1xf32>
    %cst_100 = arith.constant 1.280000e+02 : f32
    %226 = vector.broadcast %cst_100 : f32 to vector<16x1xf32>
    %227 = arith.divf %225, %226 : vector<16x1xf32>
    %228 = vector.broadcast %227 : vector<16x1xf32> to vector<16x128xf32>
    %229 = arith.subf %219, %228 : vector<16x128xf32>
    %230 = arith.mulf %229, %229 : vector<16x128xf32>
    %cst_101 = arith.constant dense<0.000000e+00> : vector<16xf32>
    %231 = vector.multi_reduction <add>, %230, %cst_101 [1] : vector<16x128xf32> to vector<16xf32>
    %232 = vector.shape_cast %231 : vector<16xf32> to vector<16x1xf32>
    %cst_102 = arith.constant 1.280000e+02 : f32
    %233 = vector.broadcast %cst_102 : f32 to vector<16x1xf32>
    %234 = arith.divf %232, %233 : vector<16x1xf32>
    %cst_103 = arith.constant 9.99999996E-13 : f32
    %235 = vector.broadcast %cst_103 : f32 to vector<16x1xf32>
    %236 = arith.addf %234, %235 : vector<16x1xf32>
    %237 = math.rsqrt %236 : vector<16x1xf32>
    %238 = vector.broadcast %227 : vector<16x1xf32> to vector<16x128xf32>
    %239 = arith.subf %219, %238 : vector<16x128xf32>
    %240 = vector.broadcast %237 : vector<16x1xf32> to vector<16x128xf32>
    %241 = arith.mulf %239, %240 : vector<16x128xf32>
    %242 = vector.broadcast %221 : vector<1x128xf32> to vector<16x128xf32>
    %243 = arith.mulf %241, %242 : vector<16x128xf32>
    %244 = vector.broadcast %223 : vector<1x128xf32> to vector<16x128xf32>
    %245 = arith.addf %243, %244 : vector<16x128xf32>
    %246 = arith.truncf %245 : vector<16x128xf32> to vector<16x128xbf16>
    %c1_104 = arith.constant 1 : index
    %c0_105 = arith.constant 0 : index
    %c0_106 = arith.constant 0 : index
    %247 = vector.load %arg10[%c1_104, %c0_105, %c0_106] : memref<2x128x512xbf16, #tpu.memory_space<vmem>>, vector<1x128x512xbf16>
    %248 = vector.shape_cast %247 : vector<1x128x512xbf16> to vector<128x512xbf16>
    %cst_107 = arith.constant dense<0.000000e+00> : vector<16x512xf32>
    %249 = tpu.matmul %246, %248, %cst_107 {dimension_numbers = #tpu.dot_dimension_numbers<[1], [0], [0], [1], [0, 0, 1, 1], [], []>} : vector<16x128xbf16>, vector<128x512xbf16>, vector<16x512xf32> -> vector<16x512xf32>
    %c1_108 = arith.constant 1 : index
    %c0_109 = arith.constant 0 : index
    %c0_110 = arith.constant 0 : index
    %250 = vector.load %arg11[%c1_108, %c0_109, %c0_110] : memref<2x1x512xf32, #tpu.memory_space<vmem>>, vector<1x1x512xf32>
    %251 = vector.shape_cast %250 : vector<1x1x512xf32> to vector<1x512xf32>
    %252 = vector.broadcast %251 : vector<1x512xf32> to vector<16x512xf32>
    %253 = arith.addf %249, %252 : vector<16x512xf32>
    %cst_111 = arith.constant 5.000000e-01 : f32
    %254 = vector.broadcast %cst_111 : f32 to vector<16x512xf32>
    %255 = arith.mulf %254, %253 : vector<16x512xf32>
    %cst_112 = arith.constant 4.471500e-02 : f32
    %256 = vector.broadcast %cst_112 : f32 to vector<16x512xf32>
    %257 = arith.mulf %256, %253 : vector<16x512xf32>
    %258 = arith.mulf %257, %253 : vector<16x512xf32>
    %259 = arith.mulf %258, %253 : vector<16x512xf32>
    %260 = arith.addf %253, %259 : vector<16x512xf32>
    %cst_113 = arith.constant 0.797884583 : f32
    %261 = vector.broadcast %cst_113 : f32 to vector<16x512xf32>
    %262 = arith.mulf %261, %260 : vector<16x512xf32>
    %263 = math.tanh %262 : vector<16x512xf32>
    %cst_114 = arith.constant 1.000000e+00 : f32
    %264 = vector.broadcast %cst_114 : f32 to vector<16x512xf32>
    %265 = arith.addf %264, %263 : vector<16x512xf32>
    %266 = arith.mulf %255, %265 : vector<16x512xf32>
    %267 = arith.truncf %266 : vector<16x512xf32> to vector<16x512xbf16>
    %c1_115 = arith.constant 1 : index
    %c0_116 = arith.constant 0 : index
    %c0_117 = arith.constant 0 : index
    %268 = vector.load %arg12[%c1_115, %c0_116, %c0_117] : memref<2x512x128xbf16, #tpu.memory_space<vmem>>, vector<1x512x128xbf16>
    %269 = vector.shape_cast %268 : vector<1x512x128xbf16> to vector<512x128xbf16>
    %cst_118 = arith.constant dense<0.000000e+00> : vector<16x128xf32>
    %270 = tpu.matmul %267, %269, %cst_118 {dimension_numbers = #tpu.dot_dimension_numbers<[1], [0], [0], [1], [0, 0, 1, 1], [], []>} : vector<16x512xbf16>, vector<512x128xbf16>, vector<16x128xf32> -> vector<16x128xf32>
    %c1_119 = arith.constant 1 : index
    %c0_120 = arith.constant 0 : index
    %c0_121 = arith.constant 0 : index
    %271 = vector.load %arg13[%c1_119, %c0_120, %c0_121] : memref<2x1x128xf32, #tpu.memory_space<vmem>>, vector<1x1x128xf32>
    %272 = vector.shape_cast %271 : vector<1x1x128xf32> to vector<1x128xf32>
    %273 = vector.broadcast %272 : vector<1x128xf32> to vector<16x128xf32>
    %274 = arith.addf %270, %273 : vector<16x128xf32>
    %275 = arith.addf %245, %274 : vector<16x128xf32>
    %c1_122 = arith.constant 1 : index
    %c0_123 = arith.constant 0 : index
    %c0_124 = arith.constant 0 : index
    %276 = vector.load %arg14[%c1_122, %c0_123, %c0_124] : memref<2x1x128xf32, #tpu.memory_space<vmem>>, vector<1x1x128xf32>
    %277 = vector.shape_cast %276 : vector<1x1x128xf32> to vector<1x128xf32>
    %c1_125 = arith.constant 1 : index
    %c0_126 = arith.constant 0 : index
    %c0_127 = arith.constant 0 : index
    %278 = vector.load %arg15[%c1_125, %c0_126, %c0_127] : memref<2x1x128xf32, #tpu.memory_space<vmem>>, vector<1x1x128xf32>
    %279 = vector.shape_cast %278 : vector<1x1x128xf32> to vector<1x128xf32>
    %cst_128 = arith.constant dense<0.000000e+00> : vector<16xf32>
    %280 = vector.multi_reduction <add>, %275, %cst_128 [1] : vector<16x128xf32> to vector<16xf32>
    %281 = vector.shape_cast %280 : vector<16xf32> to vector<16x1xf32>
    %cst_129 = arith.constant 1.280000e+02 : f32
    %282 = vector.broadcast %cst_129 : f32 to vector<16x1xf32>
    %283 = arith.divf %281, %282 : vector<16x1xf32>
    %284 = vector.broadcast %283 : vector<16x1xf32> to vector<16x128xf32>
    %285 = arith.subf %275, %284 : vector<16x128xf32>
    %286 = arith.mulf %285, %285 : vector<16x128xf32>
    %cst_130 = arith.constant dense<0.000000e+00> : vector<16xf32>
    %287 = vector.multi_reduction <add>, %286, %cst_130 [1] : vector<16x128xf32> to vector<16xf32>
    %288 = vector.shape_cast %287 : vector<16xf32> to vector<16x1xf32>
    %cst_131 = arith.constant 1.280000e+02 : f32
    %289 = vector.broadcast %cst_131 : f32 to vector<16x1xf32>
    %290 = arith.divf %288, %289 : vector<16x1xf32>
    %cst_132 = arith.constant 9.99999996E-13 : f32
    %291 = vector.broadcast %cst_132 : f32 to vector<16x1xf32>
    %292 = arith.addf %290, %291 : vector<16x1xf32>
    %293 = math.rsqrt %292 : vector<16x1xf32>
    %294 = vector.broadcast %283 : vector<16x1xf32> to vector<16x128xf32>
    %295 = arith.subf %275, %294 : vector<16x128xf32>
    %296 = vector.broadcast %293 : vector<16x1xf32> to vector<16x128xf32>
    %297 = arith.mulf %295, %296 : vector<16x128xf32>
    %298 = vector.broadcast %277 : vector<1x128xf32> to vector<16x128xf32>
    %299 = arith.mulf %297, %298 : vector<16x128xf32>
    %300 = vector.broadcast %279 : vector<1x128xf32> to vector<16x128xf32>
    %301 = arith.addf %299, %300 : vector<16x128xf32>
    %c0_133 = arith.constant 0 : index
    %c0_134 = arith.constant 0 : index
    %302 = vector.load %arg21[%c0_133, %c0_134] : memref<16x128xf32, #tpu.memory_space<vmem>>, vector<16x128xf32>
    tpu.vector_store %arg21[%c0_133, %c0_134], %301 {strides = array<i32>} : memref<16x128xf32, #tpu.memory_space<vmem>>, vector<16x128xf32>,
    %c0_135 = arith.constant 0 : index
    %c0_136 = arith.constant 0 : index
    %303 = tpu.strided_load %arg21[%c0_135, %c0_136] {strides = array<i32: 8, 1>} : memref<16x128xf32, #tpu.memory_space<vmem>>, vector<2x128xf32>
    %304 = arith.truncf %303 : vector<2x128xf32> to vector<2x128xbf16>
    %c0_137 = arith.constant 0 : index
    %c0_138 = arith.constant 0 : index
    %305 = vector.load %arg16[%c0_137, %c0_138] : memref<128x128xbf16, #tpu.memory_space<vmem>>, vector<128x128xbf16>
    %cst_139 = arith.constant dense<0.000000e+00> : vector<2x128xf32>
    %306 = tpu.matmul %304, %305, %cst_139 {dimension_numbers = #tpu.dot_dimension_numbers<[1], [0], [0], [1], [0, 0, 1, 1], [], []>} : vector<2x128xbf16>, vector<128x128xbf16>, vector<2x128xf32> -> vector<2x128xf32>
    %c0_140 = arith.constant 0 : index
    %c0_141 = arith.constant 0 : index
    %307 = vector.load %arg17[%c0_140, %c0_141] : memref<1x128xf32, #tpu.memory_space<vmem>>, vector<1x128xf32>
    %308 = vector.broadcast %307 : vector<1x128xf32> to vector<2x128xf32>
    %309 = arith.addf %306, %308 : vector<2x128xf32>
    %310 = math.tanh %309 : vector<2x128xf32>
    %311 = arith.truncf %310 : vector<2x128xf32> to vector<2x128xbf16>
    %c0_142 = arith.constant 0 : index
    %c0_143 = arith.constant 0 : index
    %312 = vector.load %arg18[%c0_142, %c0_143] : memref<128x128xbf16, #tpu.memory_space<vmem>>, vector<128x128xbf16>
    %cst_144 = arith.constant dense<0.000000e+00> : vector<2x128xf32>
    %313 = tpu.matmul %311, %312, %cst_144 {dimension_numbers = #tpu.dot_dimension_numbers<[1], [0], [0], [1], [0, 0, 1, 1], [], []>} : vector<2x128xbf16>, vector<128x128xbf16>, vector<2x128xf32> -> vector<2x128xf32>
    %c0_145 = arith.constant 0 : index
    %c0_146 = arith.constant 0 : index
    %314 = vector.load %arg19[%c0_145, %c0_146] : memref<1x128xf32, #tpu.memory_space<vmem>>, vector<1x128xf32>
    %315 = vector.broadcast %314 : vector<1x128xf32> to vector<2x128xf32>
    %316 = arith.addf %313, %315 : vector<2x128xf32>
    %317 = tpu.iota {dimensions = array<i32: 1>} : vector<2x128xi32>
    %cst_147 = arith.constant dense<0xFF800000> : vector<2xf32>
    %318 = vector.multi_reduction <maximumf>, %316, %cst_147 [1] : vector<2x128xf32> to vector<2xf32>
    %319 = vector.shape_cast %318 : vector<2xf32> to vector<2x1xf32>
    %320 = vector.broadcast %319 : vector<2x1xf32> to vector<2x128xf32>
    %321 = arith.cmpf oeq, %316, %320 : vector<2x128xf32>
    %c128_i32 = arith.constant 128 : i32
    %322 = vector.broadcast %c128_i32 : i32 to vector<2x128xi32>
    %323 = arith.select %321, %317, %322 : vector<2x128xi1>, vector<2x128xi32>
    %cst_148 = arith.constant dense<2147483647> : vector<2xi32>
    %324 = vector.multi_reduction <minsi>, %323, %cst_148 [1] : vector<2x128xi32> to vector<2xi32>
    %325 = vector.shape_cast %324 : vector<2xi32> to vector<2x1xi32>
    %c0_149 = arith.constant 0 : index
    %c0_150 = arith.constant 0 : index
    %326 = vector.load %arg3[%c0_149, %c0_150] : memref<2x1xi32, #tpu.memory_space<vmem>>, vector<2x1xi32>
    %327 = vector.broadcast %319 : vector<2x1xf32> to vector<2x128xf32>
    %328 = arith.subf %316, %327 : vector<2x128xf32>
    %329 = math.exp %328 : vector<2x128xf32>
    %cst_151 = arith.constant dense<0.000000e+00> : vector<2xf32>
    %330 = vector.multi_reduction <add>, %329, %cst_151 [1] : vector<2x128xf32> to vector<2xf32>
    %331 = vector.shape_cast %330 : vector<2xf32> to vector<2x1xf32>
    %332 = math.log %331 : vector<2x1xf32>
    %333 = arith.addf %319, %332 : vector<2x1xf32>
    %334 = vector.broadcast %326 : vector<2x1xi32> to vector<2x128xi32>
    %335 = arith.cmpi eq, %317, %334 : vector<2x128xi32>
    %336 = arith.extui %335 : vector<2x128xi1> to vector<2x128xi32>
    %337 = arith.sitofp %336 : vector<2x128xi32> to vector<2x128xf32>
    %338 = arith.mulf %316, %337 : vector<2x128xf32>
    %cst_152 = arith.constant dense<0.000000e+00> : vector<2xf32>
    %339 = vector.multi_reduction <add>, %338, %cst_152 [1] : vector<2x128xf32> to vector<2xf32>
    %340 = vector.shape_cast %339 : vector<2xf32> to vector<2x1xf32>
    %c-1_i32 = arith.constant -1 : i32
    %341 = vector.broadcast %c-1_i32 : i32 to vector<2x1xi32>
    %342 = arith.cmpi ne, %326, %341 : vector<2x1xi32>
    %343 = arith.extui %342 : vector<2x1xi1> to vector<2x1xi32>
    %344 = arith.sitofp %343 : vector<2x1xi32> to vector<2x1xf32>
    %345 = arith.subf %333, %340 : vector<2x1xf32>
    %346 = arith.mulf %345, %344 : vector<2x1xf32>
    %cst_153 = arith.constant dense<0.000000e+00> : vector<1xf32>
    %347 = vector.multi_reduction <add>, %346, %cst_153 [0] : vector<2x1xf32> to vector<1xf32>
    %348 = vector.shape_cast %347 : vector<1xf32> to vector<1x1xf32>
    %cst_154 = arith.constant dense<0.000000e+00> : vector<1xf32>
    %349 = vector.multi_reduction <add>, %344, %cst_154 [0] : vector<2x1xf32> to vector<1xf32>
    %350 = vector.shape_cast %349 : vector<1xf32> to vector<1x1xf32>
    %351 = arith.divf %348, %350 : vector<1x1xf32>
    %c4_i32 = arith.constant 4 : i32
    %352 = vector.broadcast %c4_i32 : i32 to vector<2x128xi32>
    %353 = arith.cmpi eq, %317, %352 : vector<2x128xi32>
    %354 = arith.sitofp %325 : vector<2x1xi32> to vector<2x1xf32>
    %355 = vector.shape_cast %354 : vector<2x1xf32> to vector<2x1xf32>
    %356 = vector.broadcast %355 : vector<2x1xf32> to vector<2x128xf32>
    %357 = arith.select %353, %356, %316 : vector<2x128xi1>, vector<2x128xf32>
    %c5_i32 = arith.constant 5 : i32
    %358 = vector.broadcast %c5_i32 : i32 to vector<2x128xi32>
    %359 = arith.cmpi eq, %317, %358 : vector<2x128xi32>
    %360 = vector.shape_cast %351 : vector<1x1xf32> to vector<1x1xf32>
    %361 = vector.broadcast %360 : vector<1x1xf32> to vector<2x128xf32>
    %362 = arith.select %359, %361, %357 : vector<2x128xi1>, vector<2x128xf32>
    %c0_155 = arith.constant 0 : index
    %c0_156 = arith.constant 0 : index
    %363 = vector.load %arg20[%c0_155, %c0_156] : memref<2x128xf32, #tpu.memory_space<vmem>>, vector<2x128xf32>
    tpu.vector_store %arg20[%c0_155, %c0_156], %362 {strides = array<i32>} : memref<2x128xf32, #tpu.memory_space<vmem>>, vector<2x128xf32>,
    return
  }
  func.func @transform_0(%arg0: i32) -> (i32, i32) {
    %c0_i32 = arith.constant 0 : i32
    %c0_i32_0 = arith.constant 0 : i32
    %c0_i32_1 = arith.constant 0 : i32
    return %c0_i32, %c0_i32_0 : i32, i32
  }
  func.func @transform_1(%arg0: i32) -> (i32, i32) {
    %c0_i32 = arith.constant 0 : i32
    %c0_i32_0 = arith.constant 0 : i32
    %c0_i32_1 = arith.constant 0 : i32
    return %c0_i32, %c0_i32_0 : i32, i32
  }
  func.func @transform_2(%arg0: i32) -> (i32, i32) {
    %c0_i32 = arith.constant 0 : i32
    %c0_i32_0 = arith.constant 0 : i32
    %c0_i32_1 = arith.constant 0 : i32
    return %c0_i32, %c0_i32_0 : i32, i32
  }
  func.func @transform_3(%arg0: i32) -> (i32, i32, i32) {
    %c0_i32 = arith.constant 0 : i32
    %c0_i32_0 = arith.constant 0 : i32
    %c0_i32_1 = arith.constant 0 : i32
    %c0_i32_2 = arith.constant 0 : i32
    return %c0_i32, %c0_i32_0, %c0_i32_1 : i32, i32, i32
  }
  func.func @transform_4(%arg0: i32) -> (i32, i32, i32) {
    %c0_i32 = arith.constant 0 : i32
    %c0_i32_0 = arith.constant 0 : i32
    %c0_i32_1 = arith.constant 0 : i32
    %c0_i32_2 = arith.constant 0 : i32
    return %c0_i32, %c0_i32_0, %c0_i32_1 : i32, i32, i32
  }
  func.func @transform_5(%arg0: i32) -> (i32, i32, i32) {
    %c0_i32 = arith.constant 0 : i32
    %c0_i32_0 = arith.constant 0 : i32
    %c0_i32_1 = arith.constant 0 : i32
    %c0_i32_2 = arith.constant 0 : i32
    return %c0_i32, %c0_i32_0, %c0_i32_1 : i32, i32, i32
  }
  func.func @transform_6(%arg0: i32) -> (i32, i32, i32) {
    %c0_i32 = arith.constant 0 : i32
    %c0_i32_0 = arith.constant 0 : i32
    %c0_i32_1 = arith.constant 0 : i32
    %c0_i32_2 = arith.constant 0 : i32
    return %c0_i32, %c0_i32_0, %c0_i32_1 : i32, i32, i32
  }
  func.func @transform_7(%arg0: i32) -> (i32, i32, i32) {
    %c0_i32 = arith.constant 0 : i32
    %c0_i32_0 = arith.constant 0 : i32
    %c0_i32_1 = arith.constant 0 : i32
    %c0_i32_2 = arith.constant 0 : i32
    return %c0_i32, %c0_i32_0, %c0_i32_1 : i32, i32, i32
  }
  func.func @transform_8(%arg0: i32) -> (i32, i32, i32) {
    %c0_i32 = arith.constant 0 : i32
    %c0_i32_0 = arith.constant 0 : i32
    %c0_i32_1 = arith.constant 0 : i32
    %c0_i32_2 = arith.constant 0 : i32
    return %c0_i32, %c0_i32_0, %c0_i32_1 : i32, i32, i32
  }
  func.func @transform_9(%arg0: i32) -> (i32, i32, i32) {
    %c0_i32 = arith.constant 0 : i32
    %c0_i32_0 = arith.constant 0 : i32
    %c0_i32_1 = arith.constant 0 : i32
    %c0_i32_2 = arith.constant 0 : i32
    return %c0_i32, %c0_i32_0, %c0_i32_1 : i32, i32, i32
  }
  func.func @transform_10(%arg0: i32) -> (i32, i32, i32) {
    %c0_i32 = arith.constant 0 : i32
    %c0_i32_0 = arith.constant 0 : i32
    %c0_i32_1 = arith.constant 0 : i32
    %c0_i32_2 = arith.constant 0 : i32
    return %c0_i32, %c0_i32_0, %c0_i32_1 : i32, i32, i32
  }
  func.func @transform_11(%arg0: i32) -> (i32, i32, i32) {
    %c0_i32 = arith.constant 0 : i32
    %c0_i32_0 = arith.constant 0 : i32
    %c0_i32_1 = arith.constant 0 : i32
    %c0_i32_2 = arith.constant 0 : i32
    return %c0_i32, %c0_i32_0, %c0_i32_1 : i32, i32, i32
  }
  func.func @transform_12(%arg0: i32) -> (i32, i32, i32) {
    %c0_i32 = arith.constant 0 : i32
    %c0_i32_0 = arith.constant 0 : i32
    %c0_i32_1 = arith.constant 0 : i32
    %c0_i32_2 = arith.constant 0 : i32
    return %c0_i32, %c0_i32_0, %c0_i32_1 : i32, i32, i32
  }
  func.func @transform_13(%arg0: i32) -> (i32, i32, i32) {
    %c0_i32 = arith.constant 0 : i32
    %c0_i32_0 = arith.constant 0 : i32
    %c0_i32_1 = arith.constant 0 : i32
    %c0_i32_2 = arith.constant 0 : i32
    return %c0_i32, %c0_i32_0, %c0_i32_1 : i32, i32, i32
  }
  func.func @transform_14(%arg0: i32) -> (i32, i32, i32) {
    %c0_i32 = arith.constant 0 : i32
    %c0_i32_0 = arith.constant 0 : i32
    %c0_i32_1 = arith.constant 0 : i32
    %c0_i32_2 = arith.constant 0 : i32
    return %c0_i32, %c0_i32_0, %c0_i32_1 : i32, i32, i32
  }
  func.func @transform_15(%arg0: i32) -> (i32, i32) {
    %c0_i32 = arith.constant 0 : i32
    %c0_i32_0 = arith.constant 0 : i32
    %c0_i32_1 = arith.constant 0 : i32
    return %c0_i32, %c0_i32_0 : i32, i32
  }
  func.func @transform_16(%arg0: i32) -> (i32, i32) {
    %c0_i32 = arith.constant 0 : i32
    %c0_i32_0 = arith.constant 0 : i32
    %c0_i32_1 = arith.constant 0 : i32
    return %c0_i32, %c0_i32_0 : i32, i32
  }
  func.func @transform_17(%arg0: i32) -> (i32, i32) {
    %c0_i32 = arith.constant 0 : i32
    %c0_i32_0 = arith.constant 0 : i32
    %c0_i32_1 = arith.constant 0 : i32
    return %c0_i32, %c0_i32_0 : i32, i32
  }
  func.func @transform_18(%arg0: i32) -> (i32, i32) {
    %c0_i32 = arith.constant 0 : i32
    %c0_i32_0 = arith.constant 0 : i32
    %c0_i32_1 = arith.constant 0 : i32
    return %c0_i32, %c0_i32_0 : i32, i32
  }
  func.func @transform_19(%arg0: i32) -> (i32, i32) {
    %c0_i32 = arith.constant 0 : i32
    %c0_i32_0 = arith.constant 0 : i32
    %c0_i32_1 = arith.constant 0 : i32
    return %c0_i32, %c0_i32_0 : i32, i32
  }
}

</mosaic_0001>

<llo_original>
// kernel: tpu_custom_call.1
$region0: #{tpu_custom_call.1}
  #allocation0 [shape = 'u32[]', space=smem, size = 0x4, offset = 0x4, fixed_abs, tag = 'smem constant byte address 0x4 - core index']
  #allocation1 [shape = 'u32[144,128]{1,0:T(1,128)}', space=vmem, size = 0x12000, scoped, tag = 'internal scratch']
  #allocation2 [shape = 'f32[16,128]{1,0:T(8,128)}', space=vmem, size = 0x2000, scoped, tag = 'scratch operand']
  %s0 = inlined_call_operand.hbm [shape: f32[16,128], index: 0, kind: input, shape index: {}]
  %s1 = inlined_call_operand.hbm [shape: f32[16,16], index: 1, kind: input, shape index: {}]
  %s2 = inlined_call_operand.vmem [shape: s32[2,1], index: 2, kind: input, shape index: {}]
  %s3 = inlined_call_operand.hbm [shape: bf16[2,128,768], index: 3, kind: input, shape index: {}]
  %s4 = inlined_call_operand.hbm [shape: f32[2,1,768], index: 4, kind: input, shape index: {}]
  %s5 = inlined_call_operand.hbm [shape: bf16[2,256,128], index: 5, kind: input, shape index: {}]
  %s6 = inlined_call_operand.vmem [shape: f32[2,1,128], index: 6, kind: input, shape index: {}]
  %s7 = inlined_call_operand.vmem [shape: f32[2,1,128], index: 7, kind: input, shape index: {}]
  %s8 = inlined_call_operand.hbm [shape: f32[2,1,128], index: 8, kind: input, shape index: {}]
  %s9 = inlined_call_operand.hbm [shape: bf16[2,128,512], index: 9, kind: input, shape index: {}]
  %s10 = inlined_call_operand.hbm [shape: f32[2,1,512], index: 10, kind: input, shape index: {}]
  %s11 = inlined_call_operand.hbm [shape: bf16[2,512,128], index: 11, kind: input, shape index: {}]
  %s12 = inlined_call_operand.hbm [shape: f32[2,1,128], index: 12, kind: input, shape index: {}]
  %s13 = inlined_call_operand.hbm [shape: f32[2,1,128], index: 13, kind: input, shape index: {}]
  %s14 = inlined_call_operand.hbm [shape: f32[2,1,128], index: 14, kind: input, shape index: {}]
  %s15 = inlined_call_operand.hbm [shape: bf16[128,128], index: 15, kind: input, shape index: {}]
  %s16 = inlined_call_operand.hbm [shape: f32[1,128], index: 16, kind: input, shape index: {}]
  %s17 = inlined_call_operand.vmem [shape: bf16[128,128], index: 17, kind: input, shape index: {}]
  %s18 = inlined_call_operand.vmem [shape: f32[1,128], index: 18, kind: input, shape index: {}]
  %s19 = inlined_call_operand.hbm [shape: f32[2,128], index: 19, kind: output, shape index: {}]
  %s20 = sld [smem:[#allocation0]]
  $region142: #{tpu_custom_call.1} parent=0
    _
  %s22 = ssub.s32 1, %s20
  %s23 = scalar_select 0, %s22, %s20
  $region1: #{tpu_custom_call.1} parent=0
    #allocation3 [shape = 'u8[8192]{0}', space=vmem, size = 0x2000, scoped, tag = 'input window, operand 0, single buffered']
    #allocation4 [shape = 's32[1]{0}', space=sflag, size = 0x4, scoped, tag = 'scoped memory for tpu_custom_call.1']
    #allocation5 [shape = 's32[1]{0}', space=sflag, size = 0x4, scoped, tag = 'scoped memory for tpu_custom_call.1']
    #allocation6 [shape = 'u8[8192]{0}', space=vmem, size = 0x2000, scoped, tag = 'input window, operand 1, single buffered']
    #allocation7 [shape = 's32[1]{0}', space=sflag, size = 0x4, scoped, tag = 'scoped memory for tpu_custom_call.1']
    #allocation8 [shape = 'u8[393216]{0}', space=vmem, size = 0x60000, scoped, tag = 'input window, operand 3, single buffered']
    #allocation9 [shape = 'u8[6144]{0}', space=vmem, size = 0x1800, scoped, tag = 'input window, operand 4, single buffered']
    #allocation10 [shape = 's32[1]{0}', space=sflag, size = 0x4, scoped, tag = 'scoped memory for tpu_custom_call.1']
    #allocation11 [shape = 'u8[131072]{0}', space=vmem, size = 0x20000, scoped, tag = 'input window, operand 5, single buffered']
    #allocation12 [shape = 'u8[1024]{0}', space=vmem, size = 0x400, scoped, tag = 'input window, operand 8, single buffered']
    #allocation13 [shape = 's32[1]{0}', space=sflag, size = 0x4, scoped, tag = 'scoped memory for tpu_custom_call.1']
    #allocation14 [shape = 'u8[262144]{0}', space=vmem, size = 0x40000, scoped, tag = 'input window, operand 9, single buffered']
    #allocation15 [shape = 'u8[4096]{0}', space=vmem, size = 0x1000, scoped, tag = 'input window, operand 10, single buffered']
    #allocation16 [shape = 's32[1]{0}', space=sflag, size = 0x4, scoped, tag = 'scoped memory for tpu_custom_call.1']
    #allocation17 [shape = 'u8[262144]{0}', space=vmem, size = 0x40000, scoped, tag = 'input window, operand 11, single buffered']
    #allocation18 [shape = 'u8[1024]{0}', space=vmem, size = 0x400, scoped, tag = 'input window, operand 12, single buffered']
    #allocation19 [shape = 's32[1]{0}', space=sflag, size = 0x4, scoped, tag = 'scoped memory for tpu_custom_call.1']
    #allocation20 [shape = 'u8[1024]{0}', space=vmem, size = 0x400, scoped, tag = 'input window, operand 13, single buffered']
    #allocation21 [shape = 'u8[1024]{0}', space=vmem, size = 0x400, scoped, tag = 'input window, operand 14, single buffered']
    #allocation22 [shape = 's32[1]{0}', space=sflag, size = 0x4, scoped, tag = 'scoped memory for tpu_custom_call.1']
    #allocation23 [shape = 'u8[32768]{0}', space=vmem, size = 0x8000, scoped, tag = 'input window, operand 15, single buffered']
    #allocation24 [shape = 'u8[512]{0}', space=vmem, size = 0x400, scoped, tag = 'input window, operand 16, single buffered']
    #allocation25 [shape = 's32[1]{0}', space=sflag, size = 0x4, scoped, tag = 'scoped memory for tpu_custom_call.1']
    #allocation26 [shape = 'u8[1024]{0}', space=vmem, size = 0x400, scoped, tag = 'output window, operand 0, single buffered']
    %24 = vsyncpa [#allocation4], 0
    %25 = vsyncpa [#allocation7], 0
    %26 = vsyncpa [#allocation10], 0
    %27 = vsyncpa [#allocation13], 0
    %28 = vsyncpa [#allocation16], 0
    %29 = vsyncpa [#allocation19], 0
    %30 = vsyncpa [#allocation22], 0
    %31 = vsyncpa [#allocation25], 0
    %32 = vsyncpa [#allocation5], 0
    // Predicated region
    $region2: #{tpu_custom_call.1} parent=1 // pred_check
      _
    $region3: #{tpu_custom_call.1} parent=1 // pred_check_branch
      %34 = sbr.rel (0) target = $region5
    $region4: #{tpu_custom_call.1} parent=1 // pred_region
      %s36 = ssub.s32 256, 256
      %37 = vsyncadd [#allocation4], %s36
      %s38 = sshll.u32 [#allocation3], 4
      %s39 = int_to_ptr.vmem [resolvable:$true] %s38
      %44 = dma.hbm_to_vmem [thread:$0]  %s0, 256, %s39, [#allocation4], 128, 128, 8
    $region5: #{tpu_custom_call.1} parent=1 // pred_fallthru
      _
    // Predicated region
    $region6: #{tpu_custom_call.1} parent=1 // pred_check
      _
    $region7: #{tpu_custom_call.1} parent=1 // pred_check_branch
      %46 = sbr.rel (0) target = $region9
    $region8: #{tpu_custom_call.1} parent=1 // pred_region
      %s48 = ssub.s32 256, 256
      %49 = vsyncadd [#allocation7], %s48
      %s50 = sshll.u32 [#allocation6], 4
      %s51 = int_to_ptr.vmem [resolvable:$true] %s50
      %56 = dma.hbm_to_vmem [thread:$0]  %s1, 256, %s51, [#allocation7], 128, 128, 8
    $region9: #{tpu_custom_call.1} parent=1 // pred_fallthru
      _
    // Predicated region
    $region10: #{tpu_custom_call.1} parent=1 // pred_check
      _
    $region11: #{tpu_custom_call.1} parent=1 // pred_check_branch
      %58 = sbr.rel (0) target = $region13
    $region12: #{tpu_custom_call.1} parent=1 // pred_region
      _
    $region13: #{tpu_custom_call.1} parent=1 // pred_fallthru
      _
    // Predicated region
    $region14: #{tpu_custom_call.1} parent=1 // pred_check
      _
    $region15: #{tpu_custom_call.1} parent=1 // pred_check_branch
      %60 = sbr.rel (0) target = $region17
    $region16: #{tpu_custom_call.1} parent=1 // pred_region
      %s62 = ssub.s32 12288, 12288
      %63 = vsyncadd [#allocation7], %s62
      %s64 = sshll.u32 [#allocation8], 4
      %s65 = int_to_ptr.vmem [resolvable:$true] %s64
      %70 = dma.hbm_to_vmem [thread:$0]  %s3, 12288, %s65, [#allocation7], 384, 384, 24
    $region17: #{tpu_custom_call.1} parent=1 // pred_fallthru
      _
    // Predicated region
    $region18: #{tpu_custom_call.1} parent=1 // pred_check
      _
    $region19: #{tpu_custom_call.1} parent=1 // pred_check_branch
      %72 = sbr.rel (0) target = $region21
    $region20: #{tpu_custom_call.1} parent=1 // pred_region
      %s74 = ssub.s32 192, 192
      %75 = vsyncadd [#allocation10], %s74
      %s76 = sshll.u32 [#allocation9], 4
      %s77 = int_to_ptr.vmem [resolvable:$true] %s76
      %82 = dma.hbm_to_vmem [thread:$0]  %s4, 192, %s77, [#allocation10], 96, 96, 6
    $region21: #{tpu_custom_call.1} parent=1 // pred_fallthru
      _
    // Predicated region
    $region22: #{tpu_custom_call.1} parent=1 // pred_check
      _
    $region23: #{tpu_custom_call.1} parent=1 // pred_check_branch
      %84 = sbr.rel (0) target = $region25
    $region24: #{tpu_custom_call.1} parent=1 // pred_region
      %s86 = ssub.s32 4096, 4096
      %87 = vsyncadd [#allocation10], %s86
      %s88 = sshll.u32 [#allocation11], 4
      %s89 = int_to_ptr.vmem [resolvable:$true] %s88
      %94 = dma.hbm_to_vmem [thread:$0]  %s5, 4096, %s89, [#allocation10], 64, 64, 4
    $region25: #{tpu_custom_call.1} parent=1 // pred_fallthru
      _
    // Predicated region
    $region26: #{tpu_custom_call.1} parent=1 // pred_check
      _
    $region27: #{tpu_custom_call.1} parent=1 // pred_check_branch
      %96 = sbr.rel (0) target = $region29
    $region28: #{tpu_custom_call.1} parent=1 // pred_region
      _
    $region29: #{tpu_custom_call.1} parent=1 // pred_fallthru
      _
    // Predicated region
    $region30: #{tpu_custom_call.1} parent=1 // pred_check
      _
    $region31: #{tpu_custom_call.1} parent=1 // pred_check_branch
      %98 = sbr.rel (0) target = $region33
    $region32: #{tpu_custom_call.1} parent=1 // pred_region
      _
    $region33: #{tpu_custom_call.1} parent=1 // pred_fallthru
      _
    // Predicated region
    $region34: #{tpu_custom_call.1} parent=1 // pred_check
      _
    $region35: #{tpu_custom_call.1} parent=1 // pred_check_branch
      %100 = sbr.rel (0) target = $region37
    $region36: #{tpu_custom_call.1} parent=1 // pred_region
      %s102 = ssub.s32 32, 32
      %103 = vsyncadd [#allocation13], %s102
      %s104 = sshll.u32 [#allocation12], 4
      %s105 = int_to_ptr.vmem [resolvable:$true] %s104
      %110 = dma.hbm_to_vmem [thread:$0]  %s8, 32, %s105, [#allocation13], 16, 16, 1
    $region37: #{tpu_custom_call.1} parent=1 // pred_fallthru
      _
    // Predicated region
    $region38: #{tpu_custom_call.1} parent=1 // pred_check
      _
    $region39: #{tpu_custom_call.1} parent=1 // pred_check_branch
      %112 = sbr.rel (0) target = $region41
    $region40: #{tpu_custom_call.1} parent=1 // pred_region
      %s114 = ssub.s32 8192, 8192
      %115 = vsyncadd [#allocation13], %s114
      %s116 = sshll.u32 [#allocation14], 4
      %s117 = int_to_ptr.vmem [resolvable:$true] %s116
      %122 = dma.hbm_to_vmem [thread:$0]  %s9, 8192, %s117, [#allocation13], 256, 256, 16
    $region41: #{tpu_custom_call.1} parent=1 // pred_fallthru
      _
    // Predicated region
    $region42: #{tpu_custom_call.1} parent=1 // pred_check
      _
    $region43: #{tpu_custom_call.1} parent=1 // pred_check_branch
      %124 = sbr.rel (0) target = $region45
    $region44: #{tpu_custom_call.1} parent=1 // pred_region
      %s126 = ssub.s32 128, 128
      %127 = vsyncadd [#allocation16], %s126
      %s128 = sshll.u32 [#allocation15], 4
      %s129 = int_to_ptr.vmem [resolvable:$true] %s128
      %134 = dma.hbm_to_vmem [thread:$0]  %s10, 128, %s129, [#allocation16], 64, 64, 4
    $region45: #{tpu_custom_call.1} parent=1 // pred_fallthru
      _
    // Predicated region
    $region46: #{tpu_custom_call.1} parent=1 // pred_check
      _
    $region47: #{tpu_custom_call.1} parent=1 // pred_check_branch
      %136 = sbr.rel (0) target = $region49
    $region48: #{tpu_custom_call.1} parent=1 // pred_region
      %s138 = ssub.s32 8192, 8192
      %139 = vsyncadd [#allocation16], %s138
      %s140 = sshll.u32 [#allocation17], 4
      %s141 = int_to_ptr.vmem [resolvable:$true] %s140
      %146 = dma.hbm_to_vmem [thread:$0]  %s11, 8192, %s141, [#allocation16], 64, 64, 4
    $region49: #{tpu_custom_call.1} parent=1 // pred_fallthru
      _
    // Predicated region
    $region50: #{tpu_custom_call.1} parent=1 // pred_check
      _
    $region51: #{tpu_custom_call.1} parent=1 // pred_check_branch
      %148 = sbr.rel (0) target = $region53
    $region52: #{tpu_custom_call.1} parent=1 // pred_region
      %s150 = ssub.s32 32, 32
      %151 = vsyncadd [#allocation19], %s150
      %s152 = sshll.u32 [#allocation18], 4
      %s153 = int_to_ptr.vmem [resolvable:$true] %s152
      %158 = dma.hbm_to_vmem [thread:$0]  %s12, 32, %s153, [#allocation19], 16, 16, 1
    $region53: #{tpu_custom_call.1} parent=1 // pred_fallthru
      _
    // Predicated region
    $region54: #{tpu_custom_call.1} parent=1 // pred_check
      _
    $region55: #{tpu_custom_call.1} parent=1 // pred_check_branch
      %160 = sbr.rel (0) target = $region57
    $region56: #{tpu_custom_call.1} parent=1 // pred_region
      %s162 = ssub.s32 32, 32
      %163 = vsyncadd [#allocation19], %s162
      %s164 = sshll.u32 [#allocation20], 4
      %s165 = int_to_ptr.vmem [resolvable:$true] %s164
      %170 = dma.hbm_to_vmem [thread:$0]  %s13, 32, %s165, [#allocation19], 16, 16, 1
    $region57: #{tpu_custom_call.1} parent=1 // pred_fallthru
      _
    // Predicated region
    $region58: #{tpu_custom_call.1} parent=1 // pred_check
      _
    $region59: #{tpu_custom_call.1} parent=1 // pred_check_branch
      %172 = sbr.rel (0) target = $region61
    $region60: #{tpu_custom_call.1} parent=1 // pred_region
      %s174 = ssub.s32 32, 32
      %175 = vsyncadd [#allocation22], %s174
      %s176 = sshll.u32 [#allocation21], 4
      %s177 = int_to_ptr.vmem [resolvable:$true] %s176
      %182 = dma.hbm_to_vmem [thread:$0]  %s14, 32, %s177, [#allocation22], 16, 16, 1
    $region61: #{tpu_custom_call.1} parent=1 // pred_fallthru
      _
    // Predicated region
    $region62: #{tpu_custom_call.1} parent=1 // pred_check
      _
    $region63: #{tpu_custom_call.1} parent=1 // pred_check_branch
      %184 = sbr.rel (0) target = $region65
    $region64: #{tpu_custom_call.1} parent=1 // pred_region
      %s186 = ssub.s32 1024, 1024
      %187 = vsyncadd [#allocation22], %s186
      %s188 = sshll.u32 [#allocation23], 4
      %s189 = int_to_ptr.vmem [resolvable:$true] %s188
      %194 = dma.hbm_to_vmem [thread:$0]  %s15, 1024, %s189, [#allocation22], 64, 64, 4
    $region65: #{tpu_custom_call.1} parent=1 // pred_fallthru
      _
    // Predicated region
    $region66: #{tpu_custom_call.1} parent=1 // pred_check
      _
    $region67: #{tpu_custom_call.1} parent=1 // pred_check_branch
      %196 = sbr.rel (0) target = $region69
    $region68: #{tpu_custom_call.1} parent=1 // pred_region
      %s198 = ssub.s32 16, 16
      %199 = vsyncadd [#allocation25], %s198
      %s201 = sshll.u32 [#allocation24], 4
      %s202 = int_to_ptr.vmem [resolvable:$true] %s201
      %204 = dma.hbm_to_vmem [thread:$0]  %s16, 16, %s202, [#allocation25]
    $region69: #{tpu_custom_call.1} parent=1 // pred_fallthru
      _
    // Predicated region
    $region70: #{tpu_custom_call.1} parent=1 // pred_check
      _
    $region71: #{tpu_custom_call.1} parent=1 // pred_check_branch
      %206 = sbr.rel (0) target = $region73
    $region72: #{tpu_custom_call.1} parent=1 // pred_region
      _
    $region73: #{tpu_custom_call.1} parent=1 // pred_fallthru
      _
    // Predicated region
    $region74: #{tpu_custom_call.1} parent=1 // pred_check
      _
    $region75: #{tpu_custom_call.1} parent=1 // pred_check_branch
      %208 = sbr.rel (0) target = $region77
    $region76: #{tpu_custom_call.1} parent=1 // pred_region
      _
    $region77: #{tpu_custom_call.1} parent=1 // pred_fallthru
      _
    // Predicated region
    $region78: #{tpu_custom_call.1} parent=1 // pred_check
      _
    $region79: #{tpu_custom_call.1} parent=1 // pred_check_branch
      %210 = sbr.rel (0) target = $region81
    $region80: #{tpu_custom_call.1} parent=1 // pred_region
      %211 = dma.done [#allocation4], 256
    $region81: #{tpu_custom_call.1} parent=1 // pred_fallthru
      _
    // Predicated region
    $region82: #{tpu_custom_call.1} parent=1 // pred_check
      _
    $region83: #{tpu_custom_call.1} parent=1 // pred_check_branch
      %213 = sbr.rel (0) target = $region85
    $region84: #{tpu_custom_call.1} parent=1 // pred_region
      %214 = dma.done [#allocation7], 256
    $region85: #{tpu_custom_call.1} parent=1 // pred_fallthru
      _
    // Predicated region
    $region86: #{tpu_custom_call.1} parent=1 // pred_check
      _
    $region87: #{tpu_custom_call.1} parent=1 // pred_check_branch
      %216 = sbr.rel (0) target = $region89
    $region88: #{tpu_custom_call.1} parent=1 // pred_region
      %217 = dma.done [#allocation7], 12288
    $region89: #{tpu_custom_call.1} parent=1 // pred_fallthru
      _
    // Predicated region
    $region90: #{tpu_custom_call.1} parent=1 // pred_check
      _
    $region91: #{tpu_custom_call.1} parent=1 // pred_check_branch
      %219 = sbr.rel (0) target = $region93
    $region92: #{tpu_custom_call.1} parent=1 // pred_region
      %220 = dma.done [#allocation10], 192
    $region93: #{tpu_custom_call.1} parent=1 // pred_fallthru
      _
    // Predicated region
    $region94: #{tpu_custom_call.1} parent=1 // pred_check
      _
    $region95: #{tpu_custom_call.1} parent=1 // pred_check_branch
      %222 = sbr.rel (0) target = $region97
    $region96: #{tpu_custom_call.1} parent=1 // pred_region
      %223 = dma.done [#allocation10], 4096
    $region97: #{tpu_custom_call.1} parent=1 // pred_fallthru
      _
    // Predicated region
    $region98: #{tpu_custom_call.1} parent=1 // pred_check
      _
    $region99: #{tpu_custom_call.1} parent=1 // pred_check_branch
      %225 = sbr.rel (0) target = $region101
    $region100: #{tpu_custom_call.1} parent=1 // pred_region
      %226 = dma.done [#allocation13], 32
    $region101: #{tpu_custom_call.1} parent=1 // pred_fallthru
      _
    // Predicated region
    $region102: #{tpu_custom_call.1} parent=1 // pred_check
      _
    $region103: #{tpu_custom_call.1} parent=1 // pred_check_branch
      %228 = sbr.rel (0) target = $region105
    $region104: #{tpu_custom_call.1} parent=1 // pred_region
      %229 = dma.done [#allocation13], 8192
    $region105: #{tpu_custom_call.1} parent=1 // pred_fallthru
      _
    // Predicated region
    $region106: #{tpu_custom_call.1} parent=1 // pred_check
      _
    $region107: #{tpu_custom_call.1} parent=1 // pred_check_branch
      %231 = sbr.rel (0) target = $region109
    $region108: #{tpu_custom_call.1} parent=1 // pred_region
      %232 = dma.done [#allocation16], 128
    $region109: #{tpu_custom_call.1} parent=1 // pred_fallthru
      _
    // Predicated region
    $region110: #{tpu_custom_call.1} parent=1 // pred_check
      _
    $region111: #{tpu_custom_call.1} parent=1 // pred_check_branch
      %234 = sbr.rel (0) target = $region113
    $region112: #{tpu_custom_call.1} parent=1 // pred_region
      %235 = dma.done [#allocation16], 8192
    $region113: #{tpu_custom_call.1} parent=1 // pred_fallthru
      _
    // Predicated region
    $region114: #{tpu_custom_call.1} parent=1 // pred_check
      _
    $region115: #{tpu_custom_call.1} parent=1 // pred_check_branch
      %237 = sbr.rel (0) target = $region117
    $region116: #{tpu_custom_call.1} parent=1 // pred_region
      %238 = dma.done [#allocation19], 32
    $region117: #{tpu_custom_call.1} parent=1 // pred_fallthru
      _
    // Predicated region
    $region118: #{tpu_custom_call.1} parent=1 // pred_check
      _
    $region119: #{tpu_custom_call.1} parent=1 // pred_check_branch
      %240 = sbr.rel (0) target = $region121
    $region120: #{tpu_custom_call.1} parent=1 // pred_region
      %241 = dma.done [#allocation19], 32
    $region121: #{tpu_custom_call.1} parent=1 // pred_fallthru
      _
    // Predicated region
    $region122: #{tpu_custom_call.1} parent=1 // pred_check
      _
    $region123: #{tpu_custom_call.1} parent=1 // pred_check_branch
      %243 = sbr.rel (0) target = $region125
    $region124: #{tpu_custom_call.1} parent=1 // pred_region
      %244 = dma.done [#allocation22], 32
    $region125: #{tpu_custom_call.1} parent=1 // pred_fallthru
      _
    // Predicated region
    $region126: #{tpu_custom_call.1} parent=1 // pred_check
      _
    $region127: #{tpu_custom_call.1} parent=1 // pred_check_branch
      %246 = sbr.rel (0) target = $region129
    $region128: #{tpu_custom_call.1} parent=1 // pred_region
      %247 = dma.done [#allocation22], 1024
    $region129: #{tpu_custom_call.1} parent=1 // pred_fallthru
      _
    // Predicated region
    $region130: #{tpu_custom_call.1} parent=1 // pred_check
      _
    $region131: #{tpu_custom_call.1} parent=1 // pred_check_branch
      %249 = sbr.rel (0) target = $region133
    $region132: #{tpu_custom_call.1} parent=1 // pred_region
      %250 = dma.done [#allocation25], 16
    $region133: #{tpu_custom_call.1} parent=1 // pred_fallthru
      _
    %v252 = vld [vmem:[#allocation3] sm:$0xff]
    %v253 = vld [vmem:[#allocation3 + $0x8] sm:$0xff]
    %v254 = vld [vmem:[#allocation6] sm:$0xff]
    %v255 = vld [vmem:[#allocation6 + $0x8] sm:$0xff]
    %v256 = vpack.c.bf16 %v253, %v252
    %v257 = vld [vmem:[#allocation8] sm:$0xff]
    %v258 = vld [vmem:[#allocation8 + $0x8] sm:$0xff]
    %v259 = vld [vmem:[#allocation8 + $0x10] sm:$0xff]
    %v260 = vld [vmem:[#allocation8 + $0x18] sm:$0xff]
    %v261 = vld [vmem:[#allocation8 + $0x20] sm:$0xff]
    %v262 = vld [vmem:[#allocation8 + $0x28] sm:$0xff]
    %v263 = vld [vmem:[#allocation8 + $0x30] sm:$0xff]
    %v264 = vld [vmem:[#allocation8 + $0x38] sm:$0xff]
    %v265 = vld [vmem:[#allocation8 + $0x40] sm:$0xff]
    %v266 = vld [vmem:[#allocation8 + $0x48] sm:$0xff]
    %v267 = vld [vmem:[#allocation8 + $0x50] sm:$0xff]
    %v268 = vld [vmem:[#allocation8 + $0x58] sm:$0xff]
    %v269 = vld [vmem:[#allocation8 + $0x60] sm:$0xff]
    %v270 = vld [vmem:[#allocation8 + $0x68] sm:$0xff]
    %v271 = vld [vmem:[#allocation8 + $0x70] sm:$0xff]
    %v272 = vld [vmem:[#allocation8 + $0x78] sm:$0xff]
    %v273 = vld [vmem:[#allocation8 + $0x80] sm:$0xff]
    %v274 = vld [vmem:[#allocation8 + $0x88] sm:$0xff]
    %v275 = vld [vmem:[#allocation8 + $0x90] sm:$0xff]
    %v276 = vld [vmem:[#allocation8 + $0x98] sm:$0xff]
    %v277 = vld [vmem:[#allocation8 + $0xa0] sm:$0xff]
    %v278 = vld [vmem:[#allocation8 + $0xa8] sm:$0xff]
    %v279 = vld [vmem:[#allocation8 + $0xb0] sm:$0xff]
    %v280 = vld [vmem:[#allocation8 + $0xb8] sm:$0xff]
    %v281 = vld [vmem:[#allocation8 + $0xc0] sm:$0xff]
    %v282 = vld [vmem:[#allocation8 + $0xc8] sm:$0xff]
    %v283 = vld [vmem:[#allocation8 + $0xd0] sm:$0xff]
    %v284 = vld [vmem:[#allocation8 + $0xd8] sm:$0xff]
    %v285 = vld [vmem:[#allocation8 + $0xe0] sm:$0xff]
    %v286 = vld [vmem:[#allocation8 + $0xe8] sm:$0xff]
    %v287 = vld [vmem:[#allocation8 + $0xf0] sm:$0xff]
    %v288 = vld [vmem:[#allocation8 + $0xf8] sm:$0xff]
    %v289 = vld [vmem:[#allocation8 + $0x100] sm:$0xff]
    %v290 = vld [vmem:[#allocation8 + $0x108] sm:$0xff]
    %v291 = vld [vmem:[#allocation8 + $0x110] sm:$0xff]
    %v292 = vld [vmem:[#allocation8 + $0x118] sm:$0xff]
    %v293 = vld [vmem:[#allocation8 + $0x120] sm:$0xff]
    %v294 = vld [vmem:[#allocation8 + $0x128] sm:$0xff]
    %v295 = vld [vmem:[#allocation8 + $0x130] sm:$0xff]
    %v296 = vld [vmem:[#allocation8 + $0x138] sm:$0xff]
    %v297 = vld [vmem:[#allocation8 + $0x140] sm:$0xff]
    %v298 = vld [vmem:[#allocation8 + $0x148] sm:$0xff]
    %v299 = vld [vmem:[#allocation8 + $0x150] sm:$0xff]
    %v300 = vld [vmem:[#allocation8 + $0x158] sm:$0xff]
    %v301 = vld [vmem:[#allocation8 + $0x160] sm:$0xff]
    %v302 = vld [vmem:[#allocation8 + $0x168] sm:$0xff]
    %v303 = vld [vmem:[#allocation8 + $0x170] sm:$0xff]
    %v304 = vld [vmem:[#allocation8 + $0x178] sm:$0xff]
    %v305 = vld [vmem:[#allocation9] sm:$0x3f]
    %v307 = vlaneseq
    %v308 = vshrl.u32 %v307, 7
    %v309 = vsub.s32 0, %v308
    %v310 = vrot.slane %v305, %v309
    %v311 = vlaneseq
    %v312 = vshrl.u32 %v311, 7
    %v313 = vsub.s32 1, %v312
    %v314 = vrot.slane %v305, %v313
    %v315 = vlaneseq
    %v316 = vshrl.u32 %v315, 7
    %v317 = vsub.s32 2, %v316
    %v318 = vrot.slane %v305, %v317
    %v319 = vlaneseq
    %v320 = vshrl.u32 %v319, 7
    %v321 = vsub.s32 3, %v320
    %v322 = vrot.slane %v305, %v321
    %v323 = vlaneseq
    %v324 = vshrl.u32 %v323, 7
    %v325 = vsub.s32 4, %v324
    %v326 = vrot.slane %v305, %v325
    %v327 = vlaneseq
    %v328 = vshrl.u32 %v327, 7
    %v329 = vsub.s32 5, %v328
    %v330 = vrot.slane %v305, %v329
    %v385 = vunpack.c.l.b16 %v257
    %v386 = vunpack.c.h.b16 %v257
    %v387 = vunpack.c.l.b16 %v258
    %v388 = vunpack.c.h.b16 %v258
    %v389 = vunpack.c.l.b16 %v259
    %v390 = vunpack.c.h.b16 %v259
    %v391 = vunpack.c.l.b16 %v260
    %v392 = vunpack.c.h.b16 %v260
    %v393 = vunpack.c.l.b16 %v261
    %v394 = vunpack.c.h.b16 %v261
    %v395 = vunpack.c.l.b16 %v262
    %v396 = vunpack.c.h.b16 %v262
    %v397 = vunpack.c.l.b16 %v263
    %v398 = vunpack.c.h.b16 %v263
    %v399 = vunpack.c.l.b16 %v264
    %v400 = vunpack.c.h.b16 %v264
    %v401 = vunpack.c.l.b16 %v265
    %v402 = vunpack.c.h.b16 %v265
    %v403 = vunpack.c.l.b16 %v266
    %v404 = vunpack.c.h.b16 %v266
    %v405 = vunpack.c.l.b16 %v267
    %v406 = vunpack.c.h.b16 %v267
    %v407 = vunpack.c.l.b16 %v268
    %v408 = vunpack.c.h.b16 %v268
    %v409 = vunpack.c.l.b16 %v269
    %v410 = vunpack.c.h.b16 %v269
    %v411 = vunpack.c.l.b16 %v270
    %v412 = vunpack.c.h.b16 %v270
    %v413 = vunpack.c.l.b16 %v271
    %v414 = vunpack.c.h.b16 %v271
    %v415 = vunpack.c.l.b16 %v272
    %v416 = vunpack.c.h.b16 %v272
    %v417 = vunpack.c.l.b16 %v273
    %v418 = vunpack.c.h.b16 %v273
    %v419 = vunpack.c.l.b16 %v274
    %v420 = vunpack.c.h.b16 %v274
    %v421 = vunpack.c.l.b16 %v275
    %v422 = vunpack.c.h.b16 %v275
    %v423 = vunpack.c.l.b16 %v276
    %v424 = vunpack.c.h.b16 %v276
    %v425 = vunpack.c.l.b16 %v277
    %v426 = vunpack.c.h.b16 %v277
    %v427 = vunpack.c.l.b16 %v278
    %v428 = vunpack.c.h.b16 %v278
    %v429 = vunpack.c.l.b16 %v279
    %v430 = vunpack.c.h.b16 %v279
    %v431 = vunpack.c.l.b16 %v280
    %v432 = vunpack.c.h.b16 %v280
    %v433 = vunpack.c.l.b16 %v281
    %v434 = vunpack.c.h.b16 %v281
    %v435 = vunpack.c.l.b16 %v282
    %v436 = vunpack.c.h.b16 %v282
    %v437 = vunpack.c.l.b16 %v283
    %v438 = vunpack.c.h.b16 %v283
    %v439 = vunpack.c.l.b16 %v284
    %v440 = vunpack.c.h.b16 %v284
    %v441 = vunpack.c.l.b16 %v285
    %v442 = vunpack.c.h.b16 %v285
    %v443 = vunpack.c.l.b16 %v286
    %v444 = vunpack.c.h.b16 %v286
    %v445 = vunpack.c.l.b16 %v287
    %v446 = vunpack.c.h.b16 %v287
    %v447 = vunpack.c.l.b16 %v288
    %v448 = vunpack.c.h.b16 %v288
    %v449 = vunpack.c.l.b16 %v289
    %v450 = vunpack.c.h.b16 %v289
    %v451 = vunpack.c.l.b16 %v290
    %v452 = vunpack.c.h.b16 %v290
    %v453 = vunpack.c.l.b16 %v291
    %v454 = vunpack.c.h.b16 %v291
    %v455 = vunpack.c.l.b16 %v292
    %v456 = vunpack.c.h.b16 %v292
    %v457 = vunpack.c.l.b16 %v293
    %v458 = vunpack.c.h.b16 %v293
    %v459 = vunpack.c.l.b16 %v294
    %v460 = vunpack.c.h.b16 %v294
    %v461 = vunpack.c.l.b16 %v295
    %v462 = vunpack.c.h.b16 %v295
    %v463 = vunpack.c.l.b16 %v296
    %v464 = vunpack.c.h.b16 %v296
    %v465 = vunpack.c.l.b16 %v297
    %v466 = vunpack.c.h.b16 %v297
    %v467 = vunpack.c.l.b16 %v298
    %v468 = vunpack.c.h.b16 %v298
    %v469 = vunpack.c.l.b16 %v299
    %v470 = vunpack.c.h.b16 %v299
    %v471 = vunpack.c.l.b16 %v300
    %v472 = vunpack.c.h.b16 %v300
    %v473 = vunpack.c.l.b16 %v301
    %v474 = vunpack.c.h.b16 %v301
    %v475 = vunpack.c.l.b16 %v302
    %v476 = vunpack.c.h.b16 %v302
    %v477 = vunpack.c.l.b16 %v303
    %v478 = vunpack.c.h.b16 %v303
    %v479 = vunpack.c.l.b16 %v304
    %v480 = vunpack.c.h.b16 %v304
    %v481 = vpack.c.b16 %v391, %v385
    %v482 = vpack.c.b16 %v392, %v386
    %v483 = vpack.c.b16 %v393, %v387
    %v484 = vpack.c.b16 %v394, %v388
    %v485 = vpack.c.b16 %v395, %v389
    %v486 = vpack.c.b16 %v396, %v390
    %v487 = vpack.c.b16 %v403, %v397
    %v488 = vpack.c.b16 %v404, %v398
    %v489 = vpack.c.b16 %v405, %v399
    %v490 = vpack.c.b16 %v406, %v400
    %v491 = vpack.c.b16 %v407, %v401
    %v492 = vpack.c.b16 %v408, %v402
    %v493 = vpack.c.b16 %v415, %v409
    %v494 = vpack.c.b16 %v416, %v410
    %v495 = vpack.c.b16 %v417, %v411
    %v496 = vpack.c.b16 %v418, %v412
    %v497 = vpack.c.b16 %v419, %v413
    %v498 = vpack.c.b16 %v420, %v414
    %v499 = vpack.c.b16 %v427, %v421
    %v500 = vpack.c.b16 %v428, %v422
    %v501 = vpack.c.b16 %v429, %v423
    %v502 = vpack.c.b16 %v430, %v424
    %v503 = vpack.c.b16 %v431, %v425
    %v504 = vpack.c.b16 %v432, %v426
    %v505 = vpack.c.b16 %v439, %v433
    %v506 = vpack.c.b16 %v440, %v434
    %v507 = vpack.c.b16 %v441, %v435
    %v508 = vpack.c.b16 %v442, %v436
    %v509 = vpack.c.b16 %v443, %v437
    %v510 = vpack.c.b16 %v444, %v438
    %v511 = vpack.c.b16 %v451, %v445
    %v512 = vpack.c.b16 %v452, %v446
    %v513 = vpack.c.b16 %v453, %v447
    %v514 = vpack.c.b16 %v454, %v448
    %v515 = vpack.c.b16 %v455, %v449
    %v516 = vpack.c.b16 %v456, %v450
    %v517 = vpack.c.b16 %v463, %v457
    %v518 = vpack.c.b16 %v464, %v458
    %v519 = vpack.c.b16 %v465, %v459
    %v520 = vpack.c.b16 %v466, %v460
    %v521 = vpack.c.b16 %v467, %v461
    %v522 = vpack.c.b16 %v468, %v462
    %v523 = vpack.c.b16 %v475, %v469
    %v524 = vpack.c.b16 %v476, %v470
    %v525 = vpack.c.b16 %v477, %v471
    %v526 = vpack.c.b16 %v478, %v472
    %v527 = vpack.c.b16 %v479, %v473
    %v528 = vpack.c.b16 %v480, %v474
    %577 = vmatprep.subr.bf16.mxu0 %v482
    %578 = vmatpush1.bf16.msra.mxu0 %v481
    %579 = vmatprep.subr.bf16.mxu0 %v488
    %580 = vmatpush1.bf16.msra.mxu0 %v487
    %581 = vmatprep.subr.bf16.mxu0 %v494
    %582 = vmatpush1.bf16.msra.mxu0 %v493
    %583 = vmatprep.subr.bf16.mxu0 %v500
    %584 = vmatpush1.bf16.msra.mxu0 %v499
    %585 = vmatprep.subr.bf16.mxu0 %v506
    %586 = vmatpush1.bf16.msra.mxu0 %v505
    %587 = vmatprep.subr.bf16.mxu0 %v512
    %588 = vmatpush1.bf16.msra.mxu0 %v511
    %589 = vmatprep.subr.bf16.mxu0 %v518
    %590 = vmatpush1.bf16.msra.mxu0 %v517
    %591 = vmatprep.subr.bf16.mxu0 %v524
    %592 = vmatpush1.bf16.msra.mxu0 %v523
    %593 = vmatprep.subr.bf16.mxu0 0
    %594 = vmatpush1.bf16.msra.mxu0 0
    %595 = vmatprep.subr.bf16.mxu0 0
    %596 = vmatpush1.bf16.msra.mxu0 0
    %597 = vmatprep.subr.bf16.mxu0 0
    %598 = vmatpush1.bf16.msra.mxu0 0
    %599 = vmatprep.subr.bf16.mxu0 0
    %600 = vmatpush1.bf16.msra.mxu0 0
    %601 = vmatprep.subr.bf16.mxu0 0
    %602 = vmatpush1.bf16.msra.mxu0 0
    %603 = vmatprep.subr.bf16.mxu0 0
    %604 = vmatpush1.bf16.msra.mxu0 0
    %605 = vmatprep.subr.bf16.mxu0 0
    %606 = vmatpush1.bf16.msra.mxu0 0
    %607 = vmatprep.subr.bf16.mxu0 0
    %608 = vmatpush1.bf16.msra.mxu0 0
    %609 = vmatprep.mubr.bf16.mxu0 0
    %610 = vmatmul.mubr.bf16.gmra.mrb[0].mxu0 %v256
    %v611 = vpop.f32.mrb[0].mxu0
    %v612 = vadd.f32 %v310, %v611
    %v613 = vpop.f32.mrb[0].mxu0
    %v614 = vadd.f32 %v314, %v613
    %v615 = vpop.f32.mrb[0].mxu0
    %v616 = vadd.f32 %v310, %v615
    %v617 = vpop.f32.mrb[0].mxu0
    %v618 = vadd.f32 %v314, %v617
    %619 = vdwg.mxu0
    %620 = vmatprep.subr.bf16.mxu0 %v484
    %621 = vmatpush1.bf16.msra.mxu0 %v483
    %622 = vmatprep.subr.bf16.mxu0 %v490
    %623 = vmatpush1.bf16.msra.mxu0 %v489
    %624 = vmatprep.subr.bf16.mxu0 %v496
    %625 = vmatpush1.bf16.msra.mxu0 %v495
    %626 = vmatprep.subr.bf16.mxu0 %v502
    %627 = vmatpush1.bf16.msra.mxu0 %v501
    %628 = vmatprep.subr.bf16.mxu0 %v508
    %629 = vmatpush1.bf16.msra.mxu0 %v507
    %630 = vmatprep.subr.bf16.mxu0 %v514
    %631 = vmatpush1.bf16.msra.mxu0 %v513
    %632 = vmatprep.subr.bf16.mxu0 %v520
    %633 = vmatpush1.bf16.msra.mxu0 %v519
    %634 = vmatprep.subr.bf16.mxu0 %v526
    %635 = vmatpush1.bf16.msra.mxu0 %v525
    %636 = vmatprep.subr.bf16.mxu0 0
    %637 = vmatpush1.bf16.msra.mxu0 0
    %638 = vmatprep.subr.bf16.mxu0 0
    %639 = vmatpush1.bf16.msra.mxu0 0
    %640 = vmatprep.subr.bf16.mxu0 0
    %641 = vmatpush1.bf16.msra.mxu0 0
    %642 = vmatprep.subr.bf16.mxu0 0
    %643 = vmatpush1.bf16.msra.mxu0 0
    %644 = vmatprep.subr.bf16.mxu0 0
    %645 = vmatpush1.bf16.msra.mxu0 0
    %646 = vmatprep.subr.bf16.mxu0 0
    %647 = vmatpush1.bf16.msra.mxu0 0
    %648 = vmatprep.subr.bf16.mxu0 0
    %649 = vmatpush1.bf16.msra.mxu0 0
    %650 = vmatprep.subr.bf16.mxu0 0
    %651 = vmatpush1.bf16.msra.mxu0 0
    %652 = vmatprep.mubr.bf16.mxu0 0
    %653 = vmatmul.mubr.bf16.gmra.mrb[0].mxu0 %v256
    %v654 = vpop.f32.mrb[0].mxu0
    %v655 = vadd.f32 %v318, %v654
    %v656 = vpop.f32.mrb[0].mxu0
    %v657 = vadd.f32 %v322, %v656
    %v658 = vpop.f32.mrb[0].mxu0
    %v659 = vadd.f32 %v318, %v658
    %v660 = vpop.f32.mrb[0].mxu0
    %v661 = vadd.f32 %v322, %v660
    %662 = vdwg.mxu0
    %663 = vmatprep.subr.bf16.mxu0 %v486
    %664 = vmatpush1.bf16.msra.mxu0 %v485
    %665 = vmatprep.subr.bf16.mxu0 %v492
    %666 = vmatpush1.bf16.msra.mxu0 %v491
    %667 = vmatprep.subr.bf16.mxu0 %v498
    %668 = vmatpush1.bf16.msra.mxu0 %v497
    %669 = vmatprep.subr.bf16.mxu0 %v504
    %670 = vmatpush1.bf16.msra.mxu0 %v503
    %671 = vmatprep.subr.bf16.mxu0 %v510
    %672 = vmatpush1.bf16.msra.mxu0 %v509
    %673 = vmatprep.subr.bf16.mxu0 %v516
    %674 = vmatpush1.bf16.msra.mxu0 %v515
    %675 = vmatprep.subr.bf16.mxu0 %v522
    %676 = vmatpush1.bf16.msra.mxu0 %v521
    %677 = vmatprep.subr.bf16.mxu0 %v528
    %678 = vmatpush1.bf16.msra.mxu0 %v527
    %679 = vmatprep.subr.bf16.mxu0 0
    %680 = vmatpush1.bf16.msra.mxu0 0
    %681 = vmatprep.subr.bf16.mxu0 0
    %682 = vmatpush1.bf16.msra.mxu0 0
    %683 = vmatprep.subr.bf16.mxu0 0
    %684 = vmatpush1.bf16.msra.mxu0 0
    %685 = vmatprep.subr.bf16.mxu0 0
    %686 = vmatpush1.bf16.msra.mxu0 0
    %687 = vmatprep.subr.bf16.mxu0 0
    %688 = vmatpush1.bf16.msra.mxu0 0
    %689 = vmatprep.subr.bf16.mxu0 0
    %690 = vmatpush1.bf16.msra.mxu0 0
    %691 = vmatprep.subr.bf16.mxu0 0
    %692 = vmatpush1.bf16.msra.mxu0 0
    %693 = vmatprep.subr.bf16.mxu0 0
    %694 = vmatpush1.bf16.msra.mxu0 0
    %695 = vmatprep.mubr.bf16.mxu0 0
    %696 = vmatmul.mubr.bf16.gmra.mrb[0].mxu0 %v256
    %v697 = vpop.f32.mrb[0].mxu0
    %v698 = vadd.f32 %v326, %v697
    %v699 = vpop.f32.mrb[0].mxu0
    %v700 = vadd.f32 %v330, %v699
    %v701 = vpop.f32.mrb[0].mxu0
    %v702 = vadd.f32 %v326, %v701
    %v703 = vpop.f32.mrb[0].mxu0
    %v704 = vadd.f32 %v330, %v703
    %705 = vdwg.mxu0
    %v706 = vld [vmem:[#allocation11] sm:$0xf]
    %v707 = vld [vmem:[#allocation11 + $0x4] sm:$0xf]
    %v708 = vld [vmem:[#allocation11 + $0x8] sm:$0xf]
    %v709 = vld [vmem:[#allocation11 + $0xc] sm:$0xf]
    %v710 = vld [vmem:[#allocation11 + $0x10] sm:$0xf]
    %v711 = vld [vmem:[#allocation11 + $0x14] sm:$0xf]
    %v712 = vld [vmem:[#allocation11 + $0x18] sm:$0xf]
    %v713 = vld [vmem:[#allocation11 + $0x1c] sm:$0xf]
    %v714 = vld [vmem:[#allocation11 + $0x20] sm:$0xf]
    %v715 = vld [vmem:[#allocation11 + $0x24] sm:$0xf]
    %v716 = vld [vmem:[#allocation11 + $0x28] sm:$0xf]
    %v717 = vld [vmem:[#allocation11 + $0x2c] sm:$0xf]
    %v718 = vld [vmem:[#allocation11 + $0x30] sm:$0xf]
    %v719 = vld [vmem:[#allocation11 + $0x34] sm:$0xf]
    %v720 = vld [vmem:[#allocation11 + $0x38] sm:$0xf]
    %v721 = vld [vmem:[#allocation11 + $0x3c] sm:$0xf]
    %v722 = vld [vmem:[#allocation11 + $0x40] sm:$0xf]
    %v723 = vld [vmem:[#allocation11 + $0x44] sm:$0xf]
    %v724 = vld [vmem:[#allocation11 + $0x48] sm:$0xf]
    %v725 = vld [vmem:[#allocation11 + $0x4c] sm:$0xf]
    %v726 = vld [vmem:[#allocation11 + $0x50] sm:$0xf]
    %v727 = vld [vmem:[#allocation11 + $0x54] sm:$0xf]
    %v728 = vld [vmem:[#allocation11 + $0x58] sm:$0xf]
    %v729 = vld [vmem:[#allocation11 + $0x5c] sm:$0xf]
    %v730 = vld [vmem:[#allocation11 + $0x60] sm:$0xf]
    %v731 = vld [vmem:[#allocation11 + $0x64] sm:$0xf]
    %v732 = vld [vmem:[#allocation11 + $0x68] sm:$0xf]
    %v733 = vld [vmem:[#allocation11 + $0x6c] sm:$0xf]
    %v734 = vld [vmem:[#allocation11 + $0x70] sm:$0xf]
    %v735 = vld [vmem:[#allocation11 + $0x74] sm:$0xf]
    %v736 = vld [vmem:[#allocation11 + $0x78] sm:$0xf]
    %v737 = vld [vmem:[#allocation11 + $0x7c] sm:$0xf]
    %v738 = vpack.c.bf16 %v616, %v612
    %v739 = vpack.c.bf16 %v618, %v614
    %740 = vmatprep.subr.bf16.mxu0 0
    %741 = vmatpush1.bf16.xpose.msra.mxu0 %v739
    %742 = vmatprep.subr.bf16.mxu0 0
    %743 = vmatpush1.bf16.xpose.msra.mxu0 0
    %744 = vmatprep.subr.bf16.mxu0 0
    %745 = vmatpush1.bf16.xpose.msra.mxu0 0
    %746 = vmatprep.subr.bf16.mxu0 0
    %747 = vmatpush1.bf16.xpose.msra.mxu0 0
    %748 = vmatprep.subr.bf16.mxu0 0
    %749 = vmatpush1.bf16.xpose.msra.mxu0 0
    %750 = vmatprep.subr.bf16.mxu0 0
    %751 = vmatpush1.bf16.xpose.msra.mxu0 0
    %752 = vmatprep.subr.bf16.mxu0 0
    %753 = vmatpush1.bf16.xpose.msra.mxu0 0
    %754 = vmatprep.subr.bf16.mxu0 0
    %755 = vmatpush1.bf16.xpose.msra.mxu0 0
    %756 = vmatprep.subr.bf16.mxu0 0
    %757 = vmatpush1.bf16.xpose.msra.mxu0 0
    %758 = vmatprep.subr.bf16.mxu0 0
    %759 = vmatpush1.bf16.xpose.msra.mxu0 0
    %760 = vmatprep.subr.bf16.mxu0 0
    %761 = vmatpush1.bf16.xpose.msra.mxu0 0
    %762 = vmatprep.subr.bf16.mxu0 0
    %763 = vmatpush1.bf16.xpose.msra.mxu0 0
    %764 = vmatprep.subr.bf16.mxu0 0
    %765 = vmatpush1.bf16.xpose.msra.mxu0 0
    %766 = vmatprep.subr.bf16.mxu0 0
    %767 = vmatpush1.bf16.xpose.msra.mxu0 0
    %768 = vmatprep.subr.bf16.mxu0 0
    %769 = vmatpush1.bf16.xpose.msra.mxu0 0
    %770 = vmatprep.subr.bf16.mxu0 0
    %771 = vmatpush1.bf16.xpose.msra.mxu0 0
    %772 = vmatprep.mubr.bf16.mxu0 0
    %773 = vmatmul.mubr.bf16.gmra.mrb[0].mxu0 %v738
    %v774 = vpop.f32.mrb[0].mxu0
    %v775 = vadd.f32 0.0, %v774
    %v776 = vpop.f32.mrb[0].mxu0
    %v777 = vpop.f32.mrb[0].mxu0
    %v778 = vadd.f32 0.0, %v777
    %v779 = vpop.f32.mrb[0].mxu0
    %780 = vdwg.mxu0
    %v781 = vmul.f32 %v775, 0.125
    %v782 = vmul.f32 %v778, 0.125
    %v783 = vadd.f32 %v781, %v254
    %v784 = vadd.f32 %v782, %v255
    %vm785 = vcmask 130048
    %v786 = vsel %vm785, %v783, -inf
    %787 = vmax.xlane.f32.xlu0 %v786
    %v788 = vpop.xlane.xlu0 %787
    %v789 = vsel %vm785, %v784, -inf
    %790 = vmax.xlane.f32.xlu0 %v789
    %v791 = vpop.xlane.xlu0 %790
    %v792 = vsub.f32 %v783, %v788
    %v793 = vsub.f32 %v784, %v791
    %v794 = vmul.f32 %v792, 1.442695
    %v795 = vpow.pop %v794
    %v796 = vmul.f32 %v793, 1.442695
    %v797 = vpow.pop %v796
    %v798 = vsel %vm785, %v795, 0.0
    %799 = vadd.xlane.f32.xlu0 %v798
    %v800 = vpop.xlane.xlu0 %799
    %v801 = vsel %vm785, %v797, 0.0
    %802 = vadd.xlane.f32.xlu0 %v801
    %v803 = vpop.xlane.xlu0 %802
    %v804 = vrcp.pop %v800
    %v805 = vrcp.pop %v803
    %v806 = vmul.f32 %v795, %v804
    %v807 = vmul.f32 %v797, %v805
    %v808 = vpack.c.bf16 %v807, %v806
    %v809 = vpack.c.bf16 %v659, %v655
    %v811 = vsel %vm785, %v808, 0
    %813 = vmatprep.subr.bf16.mxu0 0
    %814 = vmatpush1.bf16.msra.mxu0 %v809
    %815 = vmatprep.subr.bf16.mxu0 0
    %816 = vmatpush1.bf16.msra.mxu0 0
    %817 = vmatprep.subr.bf16.mxu0 0
    %818 = vmatpush1.bf16.msra.mxu0 0
    %819 = vmatprep.subr.bf16.mxu0 0
    %820 = vmatpush1.bf16.msra.mxu0 0
    %821 = vmatprep.subr.bf16.mxu0 0
    %822 = vmatpush1.bf16.msra.mxu0 0
    %823 = vmatprep.subr.bf16.mxu0 0
    %824 = vmatpush1.bf16.msra.mxu0 0
    %825 = vmatprep.subr.bf16.mxu0 0
    %826 = vmatpush1.bf16.msra.mxu0 0
    %827 = vmatprep.subr.bf16.mxu0 0
    %828 = vmatpush1.bf16.msra.mxu0 0
    %829 = vmatprep.subr.bf16.mxu0 0
    %830 = vmatpush1.bf16.msra.mxu0 0
    %831 = vmatprep.subr.bf16.mxu0 0
    %832 = vmatpush1.bf16.msra.mxu0 0
    %833 = vmatprep.subr.bf16.mxu0 0
    %834 = vmatpush1.bf16.msra.mxu0 0
    %835 = vmatprep.subr.bf16.mxu0 0
    %836 = vmatpush1.bf16.msra.mxu0 0
    %837 = vmatprep.subr.bf16.mxu0 0
    %838 = vmatpush1.bf16.msra.mxu0 0
    %839 = vmatprep.subr.bf16.mxu0 0
    %840 = vmatpush1.bf16.msra.mxu0 0
    %841 = vmatprep.subr.bf16.mxu0 0
    %842 = vmatpush1.bf16.msra.mxu0 0
    %843 = vmatprep.subr.bf16.mxu0 0
    %844 = vmatpush1.bf16.msra.mxu0 0
    %845 = vmatprep.mubr.bf16.mxu0 0
    %846 = vmatmul.mubr.bf16.gmra.mrb[0].mxu0 %v811
    %v847 = vpop.f32.mrb[0].mxu0
    %v848 = vadd.f32 0.0, %v847
    %v849 = vpop.f32.mrb[0].mxu0
    %v850 = vpop.f32.mrb[0].mxu0
    %v851 = vadd.f32 0.0, %v850
    %v852 = vpop.f32.mrb[0].mxu0
    %853 = vdwg.mxu0
    %v854 = vpack.c.bf16 %v851, %v848
    %v855 = vpack.c.bf16 %v661, %v657
    %v856 = vpack.c.bf16 %v702, %v698
    %857 = vmatprep.subr.bf16.mxu0 0
    %858 = vmatpush1.bf16.xpose.msra.mxu0 %v856
    %859 = vmatprep.subr.bf16.mxu0 0
    %860 = vmatpush1.bf16.xpose.msra.mxu0 0
    %861 = vmatprep.subr.bf16.mxu0 0
    %862 = vmatpush1.bf16.xpose.msra.mxu0 0
    %863 = vmatprep.subr.bf16.mxu0 0
    %864 = vmatpush1.bf16.xpose.msra.mxu0 0
    %865 = vmatprep.subr.bf16.mxu0 0
    %866 = vmatpush1.bf16.xpose.msra.mxu0 0
    %867 = vmatprep.subr.bf16.mxu0 0
    %868 = vmatpush1.bf16.xpose.msra.mxu0 0
    %869 = vmatprep.subr.bf16.mxu0 0
    %870 = vmatpush1.bf16.xpose.msra.mxu0 0
    %871 = vmatprep.subr.bf16.mxu0 0
    %872 = vmatpush1.bf16.xpose.msra.mxu0 0
    %873 = vmatprep.subr.bf16.mxu0 0
    %874 = vmatpush1.bf16.xpose.msra.mxu0 0
    %875 = vmatprep.subr.bf16.mxu0 0
    %876 = vmatpush1.bf16.xpose.msra.mxu0 0
    %877 = vmatprep.subr.bf16.mxu0 0
    %878 = vmatpush1.bf16.xpose.msra.mxu0 0
    %879 = vmatprep.subr.bf16.mxu0 0
    %880 = vmatpush1.bf16.xpose.msra.mxu0 0
    %881 = vmatprep.subr.bf16.mxu0 0
    %882 = vmatpush1.bf16.xpose.msra.mxu0 0
    %883 = vmatprep.subr.bf16.mxu0 0
    %884 = vmatpush1.bf16.xpose.msra.mxu0 0
    %885 = vmatprep.subr.bf16.mxu0 0
    %886 = vmatpush1.bf16.xpose.msra.mxu0 0
    %887 = vmatprep.subr.bf16.mxu0 0
    %888 = vmatpush1.bf16.xpose.msra.mxu0 0
    %889 = vmatprep.mubr.bf16.mxu0 0
    %890 = vmatmul.mubr.bf16.gmra.mrb[0].mxu0 %v855
    %v891 = vpop.f32.mrb[0].mxu0
    %v892 = vadd.f32 0.0, %v891
    %v893 = vpop.f32.mrb[0].mxu0
    %v894 = vpop.f32.mrb[0].mxu0
    %v895 = vadd.f32 0.0, %v894
    %v896 = vpop.f32.mrb[0].mxu0
    %897 = vdwg.mxu0
    %v898 = vmul.f32 %v892, 0.125
    %v899 = vmul.f32 %v895, 0.125
    %v900 = vadd.f32 %v898, %v254
    %v901 = vadd.f32 %v899, %v255
    %v902 = vsel %vm785, %v900, -inf
    %903 = vmax.xlane.f32.xlu0 %v902
    %v904 = vpop.xlane.xlu0 %903
    %v905 = vsel %vm785, %v901, -inf
    %906 = vmax.xlane.f32.xlu0 %v905
    %v907 = vpop.xlane.xlu0 %906
    %v908 = vsub.f32 %v900, %v904
    %v909 = vsub.f32 %v901, %v907
    %v910 = vmul.f32 %v908, 1.442695
    %v911 = vpow.pop %v910
    %v912 = vmul.f32 %v909, 1.442695
    %v913 = vpow.pop %v912
    %v914 = vsel %vm785, %v911, 0.0
    %915 = vadd.xlane.f32.xlu0 %v914
    %v916 = vpop.xlane.xlu0 %915
    %v917 = vsel %vm785, %v913, 0.0
    %918 = vadd.xlane.f32.xlu0 %v917
    %v919 = vpop.xlane.xlu0 %918
    %v920 = vrcp.pop %v916
    %v921 = vrcp.pop %v919
    %v922 = vmul.f32 %v911, %v920
    %v923 = vmul.f32 %v913, %v921
    %v924 = vpack.c.bf16 %v923, %v922
    %v925 = vpack.c.bf16 %v704, %v700
    %v927 = vsel %vm785, %v924, 0
    %929 = vmatprep.subr.bf16.mxu0 0
    %930 = vmatpush1.bf16.msra.mxu0 %v925
    %931 = vmatprep.subr.bf16.mxu0 0
    %932 = vmatpush1.bf16.msra.mxu0 0
    %933 = vmatprep.subr.bf16.mxu0 0
    %934 = vmatpush1.bf16.msra.mxu0 0
    %935 = vmatprep.subr.bf16.mxu0 0
    %936 = vmatpush1.bf16.msra.mxu0 0
    %937 = vmatprep.subr.bf16.mxu0 0
    %938 = vmatpush1.bf16.msra.mxu0 0
    %939 = vmatprep.subr.bf16.mxu0 0
    %940 = vmatpush1.bf16.msra.mxu0 0
    %941 = vmatprep.subr.bf16.mxu0 0
    %942 = vmatpush1.bf16.msra.mxu0 0
    %943 = vmatprep.subr.bf16.mxu0 0
    %944 = vmatpush1.bf16.msra.mxu0 0
    %945 = vmatprep.subr.bf16.mxu0 0
    %946 = vmatpush1.bf16.msra.mxu0 0
    %947 = vmatprep.subr.bf16.mxu0 0
    %948 = vmatpush1.bf16.msra.mxu0 0
    %949 = vmatprep.subr.bf16.mxu0 0
    %950 = vmatpush1.bf16.msra.mxu0 0
    %951 = vmatprep.subr.bf16.mxu0 0
    %952 = vmatpush1.bf16.msra.mxu0 0
    %953 = vmatprep.subr.bf16.mxu0 0
    %954 = vmatpush1.bf16.msra.mxu0 0
    %955 = vmatprep.subr.bf16.mxu0 0
    %956 = vmatpush1.bf16.msra.mxu0 0
    %957 = vmatprep.subr.bf16.mxu0 0
    %958 = vmatpush1.bf16.msra.mxu0 0
    %959 = vmatprep.subr.bf16.mxu0 0
    %960 = vmatpush1.bf16.msra.mxu0 0
    %961 = vmatprep.mubr.bf16.mxu0 0
    %962 = vmatmul.mubr.bf16.gmra.mrb[0].mxu0 %v927
    %v963 = vpop.f32.mrb[0].mxu0
    %v964 = vadd.f32 0.0, %v963
    %v965 = vpop.f32.mrb[0].mxu0
    %v966 = vpop.f32.mrb[0].mxu0
    %v967 = vadd.f32 0.0, %v966
    %v968 = vpop.f32.mrb[0].mxu0
    %969 = vdwg.mxu0
    %v970 = vpack.c.bf16 %v967, %v964
    %v987 = vunpack.c.l.b16 %v722
    %v988 = vunpack.c.l.b16 %v723
    %v989 = vunpack.c.l.b16 %v724
    %v990 = vunpack.c.l.b16 %v725
    %v991 = vunpack.c.l.b16 %v726
    %v992 = vunpack.c.l.b16 %v727
    %v993 = vunpack.c.l.b16 %v728
    %v994 = vunpack.c.l.b16 %v729
    %v995 = vunpack.c.l.b16 %v730
    %v996 = vunpack.c.l.b16 %v731
    %v997 = vunpack.c.l.b16 %v732
    %v998 = vunpack.c.l.b16 %v733
    %v999 = vunpack.c.l.b16 %v734
    %v1000 = vunpack.c.l.b16 %v735
    %v1001 = vunpack.c.l.b16 %v736
    %v1002 = vunpack.c.l.b16 %v737
    %v1003 = vpack.c.b16 %v988, %v987
    %v1004 = vpack.c.b16 %v990, %v989
    %v1005 = vpack.c.b16 %v992, %v991
    %v1006 = vpack.c.b16 %v994, %v993
    %v1007 = vpack.c.b16 %v996, %v995
    %v1008 = vpack.c.b16 %v998, %v997
    %v1009 = vpack.c.b16 %v1000, %v999
    %v1010 = vpack.c.b16 %v1002, %v1001
    %1019 = vmatprep.subr.bf16.mxu0 0
    %1020 = vmatpush1.bf16.msra.mxu0 %v1003
    %1021 = vmatprep.subr.bf16.mxu0 0
    %1022 = vmatpush1.bf16.msra.mxu0 %v1004
    %1023 = vmatprep.subr.bf16.mxu0 0
    %1024 = vmatpush1.bf16.msra.mxu0 %v1005
    %1025 = vmatprep.subr.bf16.mxu0 0
    %1026 = vmatpush1.bf16.msra.mxu0 %v1006
    %1027 = vmatprep.subr.bf16.mxu0 0
    %1028 = vmatpush1.bf16.msra.mxu0 %v1007
    %1029 = vmatprep.subr.bf16.mxu0 0
    %1030 = vmatpush1.bf16.msra.mxu0 %v1008
    %1031 = vmatprep.subr.bf16.mxu0 0
    %1032 = vmatpush1.bf16.msra.mxu0 %v1009
    %1033 = vmatprep.subr.bf16.mxu0 0
    %1034 = vmatpush1.bf16.msra.mxu0 %v1010
    %1035 = vmatprep.subr.bf16.mxu0 0
    %1036 = vmatpush1.bf16.msra.mxu0 0
    %1037 = vmatprep.subr.bf16.mxu0 0
    %1038 = vmatpush1.bf16.msra.mxu0 0
    %1039 = vmatprep.subr.bf16.mxu0 0
    %1040 = vmatpush1.bf16.msra.mxu0 0
    %1041 = vmatprep.subr.bf16.mxu0 0
    %1042 = vmatpush1.bf16.msra.mxu0 0
    %1043 = vmatprep.subr.bf16.mxu0 0
    %1044 = vmatpush1.bf16.msra.mxu0 0
    %1045 = vmatprep.subr.bf16.mxu0 0
    %1046 = vmatpush1.bf16.msra.mxu0 0
    %1047 = vmatprep.subr.bf16.mxu0 0
    %1048 = vmatpush1.bf16.msra.mxu0 0
    %1049 = vmatprep.subr.bf16.mxu0 0
    %1050 = vmatpush1.bf16.msra.mxu0 0
    %1051 = vmatprep.mubr.bf16.mxu0 0
    %1052 = vmatmul.mubr.bf16.gmra.mrb[0].mxu0 %v970
    %v1053 = vpop.f32.mrb[0].mxu0
    %v1054 = vadd.f32 0.0, %v1053
    %v1055 = vpop.f32.mrb[0].mxu0
    %v1056 = vpop.f32.mrb[0].mxu0
    %v1057 = vadd.f32 0.0, %v1056
    %v1058 = vpop.f32.mrb[0].mxu0
    %1059 = vdwg.mxu0
    %v1076 = vunpack.c.l.b16 %v706
    %v1077 = vunpack.c.l.b16 %v707
    %v1078 = vunpack.c.l.b16 %v708
    %v1079 = vunpack.c.l.b16 %v709
    %v1080 = vunpack.c.l.b16 %v710
    %v1081 = vunpack.c.l.b16 %v711
    %v1082 = vunpack.c.l.b16 %v712
    %v1083 = vunpack.c.l.b16 %v713
    %v1084 = vunpack.c.l.b16 %v714
    %v1085 = vunpack.c.l.b16 %v715
    %v1086 = vunpack.c.l.b16 %v716
    %v1087 = vunpack.c.l.b16 %v717
    %v1088 = vunpack.c.l.b16 %v718
    %v1089 = vunpack.c.l.b16 %v719
    %v1090 = vunpack.c.l.b16 %v720
    %v1091 = vunpack.c.l.b16 %v721
    %v1092 = vpack.c.b16 %v1077, %v1076
    %v1093 = vpack.c.b16 %v1079, %v1078
    %v1094 = vpack.c.b16 %v1081, %v1080
    %v1095 = vpack.c.b16 %v1083, %v1082
    %v1096 = vpack.c.b16 %v1085, %v1084
    %v1097 = vpack.c.b16 %v1087, %v1086
    %v1098 = vpack.c.b16 %v1089, %v1088
    %v1099 = vpack.c.b16 %v1091, %v1090
    %1108 = vmatprep.subr.bf16.mxu0 0
    %1109 = vmatpush1.bf16.msra.mxu0 %v1092
    %1110 = vmatprep.subr.bf16.mxu0 0
    %1111 = vmatpush1.bf16.msra.mxu0 %v1093
    %1112 = vmatprep.subr.bf16.mxu0 0
    %1113 = vmatpush1.bf16.msra.mxu0 %v1094
    %1114 = vmatprep.subr.bf16.mxu0 0
    %1115 = vmatpush1.bf16.msra.mxu0 %v1095
    %1116 = vmatprep.subr.bf16.mxu0 0
    %1117 = vmatpush1.bf16.msra.mxu0 %v1096
    %1118 = vmatprep.subr.bf16.mxu0 0
    %1119 = vmatpush1.bf16.msra.mxu0 %v1097
    %1120 = vmatprep.subr.bf16.mxu0 0
    %1121 = vmatpush1.bf16.msra.mxu0 %v1098
    %1122 = vmatprep.subr.bf16.mxu0 0
    %1123 = vmatpush1.bf16.msra.mxu0 %v1099
    %1124 = vmatprep.subr.bf16.mxu0 0
    %1125 = vmatpush1.bf16.msra.mxu0 0
    %1126 = vmatprep.subr.bf16.mxu0 0
    %1127 = vmatpush1.bf16.msra.mxu0 0
    %1128 = vmatprep.subr.bf16.mxu0 0
    %1129 = vmatpush1.bf16.msra.mxu0 0
    %1130 = vmatprep.subr.bf16.mxu0 0
    %1131 = vmatpush1.bf16.msra.mxu0 0
    %1132 = vmatprep.subr.bf16.mxu0 0
    %1133 = vmatpush1.bf16.msra.mxu0 0
    %1134 = vmatprep.subr.bf16.mxu0 0
    %1135 = vmatpush1.bf16.msra.mxu0 0
    %1136 = vmatprep.subr.bf16.mxu0 0
    %1137 = vmatpush1.bf16.msra.mxu0 0
    %1138 = vmatprep.subr.bf16.mxu0 0
    %1139 = vmatpush1.bf16.msra.mxu0 0
    %1140 = vmatprep.mubr.bf16.mxu0 0
    %1141 = vmatmul.mubr.bf16.gmra.mrb[0].mxu0 %v854
    %v1142 = vpop.f32.mrb[0].mxu0
    %v1143 = vadd.f32 %v1054, %v1142
    %v1144 = vpop.f32.mrb[0].mxu0
    %v1145 = vpop.f32.mrb[0].mxu0
    %v1146 = vadd.f32 %v1057, %v1145
    %v1147 = vpop.f32.mrb[0].mxu0
    %1148 = vdwg.mxu0
    %v1149 = vld [vmem:[%s6] sm:$0x1]
    %v1151 = vlaneseq
    %v1152 = vshrl.u32 %v1151, 7
    %v1153 = vsub.s32 0, %v1152
    %v1154 = vrot.slane %v1149, %v1153
    %v1156 = vadd.f32 %v1143, %v1154
    %v1157 = vadd.f32 %v1146, %v1154
    %v1158 = vadd.f32 %v252, %v1156
    %v1159 = vadd.f32 %v253, %v1157
    %v1160 = vld [vmem:[%s7] sm:$0x1]
    %v1161 = vld [vmem:[#allocation12] sm:$0x1]
    %1162 = vadd.xlane.f32.xlu0 %v1158
    %v1163 = vpop.xlane.xlu0 %1162
    %1164 = vadd.xlane.f32.xlu0 %v1159
    %v1165 = vpop.xlane.xlu0 %1164
    %v1166 = vrcp.pop 128.0
    %v1167 = vmul.f32 %v1163, %v1166
    %v1168 = vmul.f32 %v1165, %v1166
    %v1169 = vsub.f32 %v1158, %v1167
    %v1170 = vsub.f32 %v1159, %v1168
    %v1171 = vmul.f32 %v1169, %v1169
    %v1172 = vmul.f32 %v1170, %v1170
    %1173 = vadd.xlane.f32.xlu0 %v1171
    %v1174 = vpop.xlane.xlu0 %1173
    %1175 = vadd.xlane.f32.xlu0 %v1172
    %v1176 = vpop.xlane.xlu0 %1175
    %v1177 = vmul.f32 %v1174, %v1166
    %v1178 = vmul.f32 %v1176, %v1166
    %v1179 = vadd.f32 %v1177, 1e-12
    %v1180 = vadd.f32 %v1178, 1e-12
    %v1181 = vrsqrt.pop %v1179
    %v1182 = vrsqrt.pop %v1180
    %v1183 = vmul.f32 %v1169, %v1181
    %v1184 = vmul.f32 %v1170, %v1182
    %v1186 = vlaneseq
    %v1187 = vshrl.u32 %v1186, 7
    %v1188 = vsub.s32 0, %v1187
    %v1189 = vrot.slane %v1160, %v1188
    %v1191 = vmul.f32 %v1183, %v1189
    %v1192 = vmul.f32 %v1184, %v1189
    %v1194 = vlaneseq
    %v1195 = vshrl.u32 %v1194, 7
    %v1196 = vsub.s32 0, %v1195
    %v1197 = vrot.slane %v1161, %v1196
    %v1199 = vadd.f32 %v1191, %v1197
    %v1200 = vadd.f32 %v1192, %v1197
    %v1201 = vpack.c.bf16 %v1200, %v1199
    %v1202 = vld [vmem:[#allocation14] sm:$0xff]
    %v1203 = vld [vmem:[#allocation14 + $0x8] sm:$0xff]
    %v1204 = vld [vmem:[#allocation14 + $0x10] sm:$0xff]
    %v1205 = vld [vmem:[#allocation14 + $0x18] sm:$0xff]
    %v1206 = vld [vmem:[#allocation14 + $0x20] sm:$0xff]
    %v1207 = vld [vmem:[#allocation14 + $0x28] sm:$0xff]
    %v1208 = vld [vmem:[#allocation14 + $0x30] sm:$0xff]
    %v1209 = vld [vmem:[#allocation14 + $0x38] sm:$0xff]
    %v1210 = vld [vmem:[#allocation14 + $0x40] sm:$0xff]
    %v1211 = vld [vmem:[#allocation14 + $0x48] sm:$0xff]
    %v1212 = vld [vmem:[#allocation14 + $0x50] sm:$0xff]
    %v1213 = vld [vmem:[#allocation14 + $0x58] sm:$0xff]
    %v1214 = vld [vmem:[#allocation14 + $0x60] sm:$0xff]
    %v1215 = vld [vmem:[#allocation14 + $0x68] sm:$0xff]
    %v1216 = vld [vmem:[#allocation14 + $0x70] sm:$0xff]
    %v1217 = vld [vmem:[#allocation14 + $0x78] sm:$0xff]
    %v1218 = vld [vmem:[#allocation14 + $0x80] sm:$0xff]
    %v1219 = vld [vmem:[#allocation14 + $0x88] sm:$0xff]
    %v1220 = vld [vmem:[#allocation14 + $0x90] sm:$0xff]
    %v1221 = vld [vmem:[#allocation14 + $0x98] sm:$0xff]
    %v1222 = vld [vmem:[#allocation14 + $0xa0] sm:$0xff]
    %v1223 = vld [vmem:[#allocation14 + $0xa8] sm:$0xff]
    %v1224 = vld [vmem:[#allocation14 + $0xb0] sm:$0xff]
    %v1225 = vld [vmem:[#allocation14 + $0xb8] sm:$0xff]
    %v1226 = vld [vmem:[#allocation14 + $0xc0] sm:$0xff]
    %v1227 = vld [vmem:[#allocation14 + $0xc8] sm:$0xff]
    %v1228 = vld [vmem:[#allocation14 + $0xd0] sm:$0xff]
    %v1229 = vld [vmem:[#allocation14 + $0xd8] sm:$0xff]
    %v1230 = vld [vmem:[#allocation14 + $0xe0] sm:$0xff]
    %v1231 = vld [vmem:[#allocation14 + $0xe8] sm:$0xff]
    %v1232 = vld [vmem:[#allocation14 + $0xf0] sm:$0xff]
    %v1233 = vld [vmem:[#allocation14 + $0xf8] sm:$0xff]
    %v1234 = vld [vmem:[#allocation15] sm:$0xf]
    %v1236 = vlaneseq
    %v1237 = vshrl.u32 %v1236, 7
    %v1238 = vsub.s32 0, %v1237
    %v1239 = vrot.slane %v1234, %v1238
    %v1240 = vlaneseq
    %v1241 = vshrl.u32 %v1240, 7
    %v1242 = vsub.s32 1, %v1241
    %v1243 = vrot.slane %v1234, %v1242
    %v1244 = vlaneseq
    %v1245 = vshrl.u32 %v1244, 7
    %v1246 = vsub.s32 2, %v1245
    %v1247 = vrot.slane %v1234, %v1246
    %v1248 = vlaneseq
    %v1249 = vshrl.u32 %v1248, 7
    %v1250 = vsub.s32 3, %v1249
    %v1251 = vrot.slane %v1234, %v1250
    %v1288 = vunpack.c.l.b16 %v1202
    %v1289 = vunpack.c.h.b16 %v1202
    %v1290 = vunpack.c.l.b16 %v1203
    %v1291 = vunpack.c.h.b16 %v1203
    %v1292 = vunpack.c.l.b16 %v1204
    %v1293 = vunpack.c.h.b16 %v1204
    %v1294 = vunpack.c.l.b16 %v1205
    %v1295 = vunpack.c.h.b16 %v1205
    %v1296 = vunpack.c.l.b16 %v1206
    %v1297 = vunpack.c.h.b16 %v1206
    %v1298 = vunpack.c.l.b16 %v1207
    %v1299 = vunpack.c.h.b16 %v1207
    %v1300 = vunpack.c.l.b16 %v1208
    %v1301 = vunpack.c.h.b16 %v1208
    %v1302 = vunpack.c.l.b16 %v1209
    %v1303 = vunpack.c.h.b16 %v1209
    %v1304 = vunpack.c.l.b16 %v1210
    %v1305 = vunpack.c.h.b16 %v1210
    %v1306 = vunpack.c.l.b16 %v1211
    %v1307 = vunpack.c.h.b16 %v1211
    %v1308 = vunpack.c.l.b16 %v1212
    %v1309 = vunpack.c.h.b16 %v1212
    %v1310 = vunpack.c.l.b16 %v1213
    %v1311 = vunpack.c.h.b16 %v1213
    %v1312 = vunpack.c.l.b16 %v1214
    %v1313 = vunpack.c.h.b16 %v1214
    %v1314 = vunpack.c.l.b16 %v1215
    %v1315 = vunpack.c.h.b16 %v1215
    %v1316 = vunpack.c.l.b16 %v1216
    %v1317 = vunpack.c.h.b16 %v1216
    %v1318 = vunpack.c.l.b16 %v1217
    %v1319 = vunpack.c.h.b16 %v1217
    %v1320 = vunpack.c.l.b16 %v1218
    %v1321 = vunpack.c.h.b16 %v1218
    %v1322 = vunpack.c.l.b16 %v1219
    %v1323 = vunpack.c.h.b16 %v1219
    %v1324 = vunpack.c.l.b16 %v1220
    %v1325 = vunpack.c.h.b16 %v1220
    %v1326 = vunpack.c.l.b16 %v1221
    %v1327 = vunpack.c.h.b16 %v1221
    %v1328 = vunpack.c.l.b16 %v1222
    %v1329 = vunpack.c.h.b16 %v1222
    %v1330 = vunpack.c.l.b16 %v1223
    %v1331 = vunpack.c.h.b16 %v1223
    %v1332 = vunpack.c.l.b16 %v1224
    %v1333 = vunpack.c.h.b16 %v1224
    %v1334 = vunpack.c.l.b16 %v1225
    %v1335 = vunpack.c.h.b16 %v1225
    %v1336 = vunpack.c.l.b16 %v1226
    %v1337 = vunpack.c.h.b16 %v1226
    %v1338 = vunpack.c.l.b16 %v1227
    %v1339 = vunpack.c.h.b16 %v1227
    %v1340 = vunpack.c.l.b16 %v1228
    %v1341 = vunpack.c.h.b16 %v1228
    %v1342 = vunpack.c.l.b16 %v1229
    %v1343 = vunpack.c.h.b16 %v1229
    %v1344 = vunpack.c.l.b16 %v1230
    %v1345 = vunpack.c.h.b16 %v1230
    %v1346 = vunpack.c.l.b16 %v1231
    %v1347 = vunpack.c.h.b16 %v1231
    %v1348 = vunpack.c.l.b16 %v1232
    %v1349 = vunpack.c.h.b16 %v1232
    %v1350 = vunpack.c.l.b16 %v1233
    %v1351 = vunpack.c.h.b16 %v1233
    %v1352 = vpack.c.b16 %v1292, %v1288
    %v1353 = vpack.c.b16 %v1293, %v1289
    %v1354 = vpack.c.b16 %v1294, %v1290
    %v1355 = vpack.c.b16 %v1295, %v1291
    %v1356 = vpack.c.b16 %v1300, %v1296
    %v1357 = vpack.c.b16 %v1301, %v1297
    %v1358 = vpack.c.b16 %v1302, %v1298
    %v1359 = vpack.c.b16 %v1303, %v1299
    %v1360 = vpack.c.b16 %v1308, %v1304
    %v1361 = vpack.c.b16 %v1309, %v1305
    %v1362 = vpack.c.b16 %v1310, %v1306
    %v1363 = vpack.c.b16 %v1311, %v1307
    %v1364 = vpack.c.b16 %v1316, %v1312
    %v1365 = vpack.c.b16 %v1317, %v1313
    %v1366 = vpack.c.b16 %v1318, %v1314
    %v1367 = vpack.c.b16 %v1319, %v1315
    %v1368 = vpack.c.b16 %v1324, %v1320
    %v1369 = vpack.c.b16 %v1325, %v1321
    %v1370 = vpack.c.b16 %v1326, %v1322
    %v1371 = vpack.c.b16 %v1327, %v1323
    %v1372 = vpack.c.b16 %v1332, %v1328
    %v1373 = vpack.c.b16 %v1333, %v1329
    %v1374 = vpack.c.b16 %v1334, %v1330
    %v1375 = vpack.c.b16 %v1335, %v1331
    %v1376 = vpack.c.b16 %v1340, %v1336
    %v1377 = vpack.c.b16 %v1341, %v1337
    %v1378 = vpack.c.b16 %v1342, %v1338
    %v1379 = vpack.c.b16 %v1343, %v1339
    %v1380 = vpack.c.b16 %v1348, %v1344
    %v1381 = vpack.c.b16 %v1349, %v1345
    %v1382 = vpack.c.b16 %v1350, %v1346
    %v1383 = vpack.c.b16 %v1351, %v1347
    %1416 = vmatprep.subr.bf16.mxu0 %v1353
    %1417 = vmatpush1.bf16.msra.mxu0 %v1352
    %1418 = vmatprep.subr.bf16.mxu0 %v1357
    %1419 = vmatpush1.bf16.msra.mxu0 %v1356
    %1420 = vmatprep.subr.bf16.mxu0 %v1361
    %1421 = vmatpush1.bf16.msra.mxu0 %v1360
    %1422 = vmatprep.subr.bf16.mxu0 %v1365
    %1423 = vmatpush1.bf16.msra.mxu0 %v1364
    %1424 = vmatprep.subr.bf16.mxu0 %v1369
    %1425 = vmatpush1.bf16.msra.mxu0 %v1368
    %1426 = vmatprep.subr.bf16.mxu0 %v1373
    %1427 = vmatpush1.bf16.msra.mxu0 %v1372
    %1428 = vmatprep.subr.bf16.mxu0 %v1377
    %1429 = vmatpush1.bf16.msra.mxu0 %v1376
    %1430 = vmatprep.subr.bf16.mxu0 %v1381
    %1431 = vmatpush1.bf16.msra.mxu0 %v1380
    %1432 = vmatprep.subr.bf16.mxu0 0
    %1433 = vmatpush1.bf16.msra.mxu0 0
    %1434 = vmatprep.subr.bf16.mxu0 0
    %1435 = vmatpush1.bf16.msra.mxu0 0
    %1436 = vmatprep.subr.bf16.mxu0 0
    %1437 = vmatpush1.bf16.msra.mxu0 0
    %1438 = vmatprep.subr.bf16.mxu0 0
    %1439 = vmatpush1.bf16.msra.mxu0 0
    %1440 = vmatprep.subr.bf16.mxu0 0
    %1441 = vmatpush1.bf16.msra.mxu0 0
    %1442 = vmatprep.subr.bf16.mxu0 0
    %1443 = vmatpush1.bf16.msra.mxu0 0
    %1444 = vmatprep.subr.bf16.mxu0 0
    %1445 = vmatpush1.bf16.msra.mxu0 0
    %1446 = vmatprep.subr.bf16.mxu0 0
    %1447 = vmatpush1.bf16.msra.mxu0 0
    %1448 = vmatprep.mubr.bf16.mxu0 0
    %1449 = vmatmul.mubr.bf16.gmra.mrb[0].mxu0 %v1201
    %v1450 = vpop.f32.mrb[0].mxu0
    %v1451 = vadd.f32 %v1239, %v1450
    %v1452 = vpop.f32.mrb[0].mxu0
    %v1453 = vadd.f32 %v1243, %v1452
    %v1454 = vpop.f32.mrb[0].mxu0
    %v1455 = vadd.f32 %v1239, %v1454
    %v1456 = vpop.f32.mrb[0].mxu0
    %v1457 = vadd.f32 %v1243, %v1456
    %1458 = vdwg.mxu0
    %1459 = vmatprep.subr.bf16.mxu0 %v1355
    %1460 = vmatpush1.bf16.msra.mxu0 %v1354
    %1461 = vmatprep.subr.bf16.mxu0 %v1359
    %1462 = vmatpush1.bf16.msra.mxu0 %v1358
    %1463 = vmatprep.subr.bf16.mxu0 %v1363
    %1464 = vmatpush1.bf16.msra.mxu0 %v1362
    %1465 = vmatprep.subr.bf16.mxu0 %v1367
    %1466 = vmatpush1.bf16.msra.mxu0 %v1366
    %1467 = vmatprep.subr.bf16.mxu0 %v1371
    %1468 = vmatpush1.bf16.msra.mxu0 %v1370
    %1469 = vmatprep.subr.bf16.mxu0 %v1375
    %1470 = vmatpush1.bf16.msra.mxu0 %v1374
    %1471 = vmatprep.subr.bf16.mxu0 %v1379
    %1472 = vmatpush1.bf16.msra.mxu0 %v1378
    %1473 = vmatprep.subr.bf16.mxu0 %v1383
    %1474 = vmatpush1.bf16.msra.mxu0 %v1382
    %1475 = vmatprep.subr.bf16.mxu0 0
    %1476 = vmatpush1.bf16.msra.mxu0 0
    %1477 = vmatprep.subr.bf16.mxu0 0
    %1478 = vmatpush1.bf16.msra.mxu0 0
    %1479 = vmatprep.subr.bf16.mxu0 0
    %1480 = vmatpush1.bf16.msra.mxu0 0
    %1481 = vmatprep.subr.bf16.mxu0 0
    %1482 = vmatpush1.bf16.msra.mxu0 0
    %1483 = vmatprep.subr.bf16.mxu0 0
    %1484 = vmatpush1.bf16.msra.mxu0 0
    %1485 = vmatprep.subr.bf16.mxu0 0
    %1486 = vmatpush1.bf16.msra.mxu0 0
    %1487 = vmatprep.subr.bf16.mxu0 0
    %1488 = vmatpush1.bf16.msra.mxu0 0
    %1489 = vmatprep.subr.bf16.mxu0 0
    %1490 = vmatpush1.bf16.msra.mxu0 0
    %1491 = vmatprep.mubr.bf16.mxu0 0
    %1492 = vmatmul.mubr.bf16.gmra.mrb[0].mxu0 %v1201
    %v1493 = vpop.f32.mrb[0].mxu0
    %v1494 = vadd.f32 %v1247, %v1493
    %v1495 = vpop.f32.mrb[0].mxu0
    %v1496 = vadd.f32 %v1251, %v1495
    %v1497 = vpop.f32.mrb[0].mxu0
    %v1498 = vadd.f32 %v1247, %v1497
    %v1499 = vpop.f32.mrb[0].mxu0
    %v1500 = vadd.f32 %v1251, %v1499
    %1501 = vdwg.mxu0
    %v1502 = vmul.f32 %v1451, 0.5
    %v1503 = vmul.f32 %v1453, 0.5
    %v1504 = vmul.f32 %v1494, 0.5
    %v1505 = vmul.f32 %v1496, 0.5
    %v1506 = vmul.f32 %v1455, 0.5
    %v1507 = vmul.f32 %v1457, 0.5
    %v1508 = vmul.f32 %v1498, 0.5
    %v1509 = vmul.f32 %v1500, 0.5
    %v1510 = vmul.f32 %v1451, 0.044715
    %v1511 = vmul.f32 %v1453, 0.044715
    %v1512 = vmul.f32 %v1494, 0.044715
    %v1513 = vmul.f32 %v1496, 0.044715
    %v1514 = vmul.f32 %v1455, 0.044715
    %v1515 = vmul.f32 %v1457, 0.044715
    %v1516 = vmul.f32 %v1498, 0.044715
    %v1517 = vmul.f32 %v1500, 0.044715
    %v1518 = vmul.f32 %v1510, %v1451
    %v1519 = vmul.f32 %v1511, %v1453
    %v1520 = vmul.f32 %v1512, %v1494
    %v1521 = vmul.f32 %v1513, %v1496
    %v1522 = vmul.f32 %v1514, %v1455
    %v1523 = vmul.f32 %v1515, %v1457
    %v1524 = vmul.f32 %v1516, %v1498
    %v1525 = vmul.f32 %v1517, %v1500
    %v1526 = vmul.f32 %v1518, %v1451
    %v1527 = vmul.f32 %v1519, %v1453
    %v1528 = vmul.f32 %v1520, %v1494
    %v1529 = vmul.f32 %v1521, %v1496
    %v1530 = vmul.f32 %v1522, %v1455
    %v1531 = vmul.f32 %v1523, %v1457
    %v1532 = vmul.f32 %v1524, %v1498
    %v1533 = vmul.f32 %v1525, %v1500
    %v1534 = vadd.f32 %v1451, %v1526
    %v1535 = vadd.f32 %v1453, %v1527
    %v1536 = vadd.f32 %v1494, %v1528
    %v1537 = vadd.f32 %v1496, %v1529
    %v1538 = vadd.f32 %v1455, %v1530
    %v1539 = vadd.f32 %v1457, %v1531
    %v1540 = vadd.f32 %v1498, %v1532
    %v1541 = vadd.f32 %v1500, %v1533
    %v1542 = vmul.f32 %v1534, 0.7978846
    %v1543 = vmul.f32 %v1535, 0.7978846
    %v1544 = vmul.f32 %v1536, 0.7978846
    %v1545 = vmul.f32 %v1537, 0.7978846
    %v1546 = vmul.f32 %v1538, 0.7978846
    %v1547 = vmul.f32 %v1539, 0.7978846
    %v1548 = vmul.f32 %v1540, 0.7978846
    %v1549 = vmul.f32 %v1541, 0.7978846
    %v1550 = vtanh.pop %v1542
    %v1551 = vtanh.pop %v1543
    %v1552 = vtanh.pop %v1544
    %v1553 = vtanh.pop %v1545
    %v1554 = vtanh.pop %v1546
    %v1555 = vtanh.pop %v1547
    %v1556 = vtanh.pop %v1548
    %v1557 = vtanh.pop %v1549
    %v1558 = vadd.f32 %v1550, 1.0
    %v1559 = vadd.f32 %v1551, 1.0
    %v1560 = vadd.f32 %v1552, 1.0
    %v1561 = vadd.f32 %v1553, 1.0
    %v1562 = vadd.f32 %v1554, 1.0
    %v1563 = vadd.f32 %v1555, 1.0
    %v1564 = vadd.f32 %v1556, 1.0
    %v1565 = vadd.f32 %v1557, 1.0
    %v1566 = vmul.f32 %v1502, %v1558
    %v1567 = vmul.f32 %v1503, %v1559
    %v1568 = vmul.f32 %v1504, %v1560
    %v1569 = vmul.f32 %v1505, %v1561
    %v1570 = vmul.f32 %v1506, %v1562
    %v1571 = vmul.f32 %v1507, %v1563
    %v1572 = vmul.f32 %v1508, %v1564
    %v1573 = vmul.f32 %v1509, %v1565
    %v1574 = vpack.c.bf16 %v1570, %v1566
    %v1575 = vpack.c.bf16 %v1571, %v1567
    %v1576 = vpack.c.bf16 %v1572, %v1568
    %v1577 = vpack.c.bf16 %v1573, %v1569
    %v1578 = vld [vmem:[#allocation17] sm:$0xf]
    %v1579 = vld [vmem:[#allocation17 + $0x4] sm:$0xf]
    %v1580 = vld [vmem:[#allocation17 + $0x8] sm:$0xf]
    %v1581 = vld [vmem:[#allocation17 + $0xc] sm:$0xf]
    %v1582 = vld [vmem:[#allocation17 + $0x10] sm:$0xf]
    %v1583 = vld [vmem:[#allocation17 + $0x14] sm:$0xf]
    %v1584 = vld [vmem:[#allocation17 + $0x18] sm:$0xf]
    %v1585 = vld [vmem:[#allocation17 + $0x1c] sm:$0xf]
    %v1586 = vld [vmem:[#allocation17 + $0x20] sm:$0xf]
    %v1587 = vld [vmem:[#allocation17 + $0x24] sm:$0xf]
    %v1588 = vld [vmem:[#allocation17 + $0x28] sm:$0xf]
    %v1589 = vld [vmem:[#allocation17 + $0x2c] sm:$0xf]
    %v1590 = vld [vmem:[#allocation17 + $0x30] sm:$0xf]
    %v1591 = vld [vmem:[#allocation17 + $0x34] sm:$0xf]
    %v1592 = vld [vmem:[#allocation17 + $0x38] sm:$0xf]
    %v1593 = vld [vmem:[#allocation17 + $0x3c] sm:$0xf]
    %v1594 = vld [vmem:[#allocation17 + $0x40] sm:$0xf]
    %v1595 = vld [vmem:[#allocation17 + $0x44] sm:$0xf]
    %v1596 = vld [vmem:[#allocation17 + $0x48] sm:$0xf]
    %v1597 = vld [vmem:[#allocation17 + $0x4c] sm:$0xf]
    %v1598 = vld [vmem:[#allocation17 + $0x50] sm:$0xf]
    %v1599 = vld [vmem:[#allocation17 + $0x54] sm:$0xf]
    %v1600 = vld [vmem:[#allocation17 + $0x58] sm:$0xf]
    %v1601 = vld [vmem:[#allocation17 + $0x5c] sm:$0xf]
    %v1602 = vld [vmem:[#allocation17 + $0x60] sm:$0xf]
    %v1603 = vld [vmem:[#allocation17 + $0x64] sm:$0xf]
    %v1604 = vld [vmem:[#allocation17 + $0x68] sm:$0xf]
    %v1605 = vld [vmem:[#allocation17 + $0x6c] sm:$0xf]
    %v1606 = vld [vmem:[#allocation17 + $0x70] sm:$0xf]
    %v1607 = vld [vmem:[#allocation17 + $0x74] sm:$0xf]
    %v1608 = vld [vmem:[#allocation17 + $0x78] sm:$0xf]
    %v1609 = vld [vmem:[#allocation17 + $0x7c] sm:$0xf]
    %v1610 = vld [vmem:[#allocation17 + $0x80] sm:$0xf]
    %v1611 = vld [vmem:[#allocation17 + $0x84] sm:$0xf]
    %v1612 = vld [vmem:[#allocation17 + $0x88] sm:$0xf]
    %v1613 = vld [vmem:[#allocation17 + $0x8c] sm:$0xf]
    %v1614 = vld [vmem:[#allocation17 + $0x90] sm:$0xf]
    %v1615 = vld [vmem:[#allocation17 + $0x94] sm:$0xf]
    %v1616 = vld [vmem:[#allocation17 + $0x98] sm:$0xf]
    %v1617 = vld [vmem:[#allocation17 + $0x9c] sm:$0xf]
    %v1618 = vld [vmem:[#allocation17 + $0xa0] sm:$0xf]
    %v1619 = vld [vmem:[#allocation17 + $0xa4] sm:$0xf]
    %v1620 = vld [vmem:[#allocation17 + $0xa8] sm:$0xf]
    %v1621 = vld [vmem:[#allocation17 + $0xac] sm:$0xf]
    %v1622 = vld [vmem:[#allocation17 + $0xb0] sm:$0xf]
    %v1623 = vld [vmem:[#allocation17 + $0xb4] sm:$0xf]
    %v1624 = vld [vmem:[#allocation17 + $0xb8] sm:$0xf]
    %v1625 = vld [vmem:[#allocation17 + $0xbc] sm:$0xf]
    %v1626 = vld [vmem:[#allocation17 + $0xc0] sm:$0xf]
    %v1627 = vld [vmem:[#allocation17 + $0xc4] sm:$0xf]
    %v1628 = vld [vmem:[#allocation17 + $0xc8] sm:$0xf]
    %v1629 = vld [vmem:[#allocation17 + $0xcc] sm:$0xf]
    %v1630 = vld [vmem:[#allocation17 + $0xd0] sm:$0xf]
    %v1631 = vld [vmem:[#allocation17 + $0xd4] sm:$0xf]
    %v1632 = vld [vmem:[#allocation17 + $0xd8] sm:$0xf]
    %v1633 = vld [vmem:[#allocation17 + $0xdc] sm:$0xf]
    %v1634 = vld [vmem:[#allocation17 + $0xe0] sm:$0xf]
    %v1635 = vld [vmem:[#allocation17 + $0xe4] sm:$0xf]
    %v1636 = vld [vmem:[#allocation17 + $0xe8] sm:$0xf]
    %v1637 = vld [vmem:[#allocation17 + $0xec] sm:$0xf]
    %v1638 = vld [vmem:[#allocation17 + $0xf0] sm:$0xf]
    %v1639 = vld [vmem:[#allocation17 + $0xf4] sm:$0xf]
    %v1640 = vld [vmem:[#allocation17 + $0xf8] sm:$0xf]
    %v1641 = vld [vmem:[#allocation17 + $0xfc] sm:$0xf]
    %v1642 = vld [vmem:[#allocation18] sm:$0x1]
    %v1644 = vlaneseq
    %v1645 = vshrl.u32 %v1644, 7
    %v1646 = vsub.s32 0, %v1645
    %v1647 = vrot.slane %v1642, %v1646
    %v1713 = vunpack.c.l.b16 %v1578
    %v1714 = vunpack.c.l.b16 %v1579
    %v1715 = vunpack.c.l.b16 %v1580
    %v1716 = vunpack.c.l.b16 %v1581
    %v1717 = vunpack.c.l.b16 %v1582
    %v1718 = vunpack.c.l.b16 %v1583
    %v1719 = vunpack.c.l.b16 %v1584
    %v1720 = vunpack.c.l.b16 %v1585
    %v1721 = vunpack.c.l.b16 %v1586
    %v1722 = vunpack.c.l.b16 %v1587
    %v1723 = vunpack.c.l.b16 %v1588
    %v1724 = vunpack.c.l.b16 %v1589
    %v1725 = vunpack.c.l.b16 %v1590
    %v1726 = vunpack.c.l.b16 %v1591
    %v1727 = vunpack.c.l.b16 %v1592
    %v1728 = vunpack.c.l.b16 %v1593
    %v1729 = vunpack.c.l.b16 %v1594
    %v1730 = vunpack.c.l.b16 %v1595
    %v1731 = vunpack.c.l.b16 %v1596
    %v1732 = vunpack.c.l.b16 %v1597
    %v1733 = vunpack.c.l.b16 %v1598
    %v1734 = vunpack.c.l.b16 %v1599
    %v1735 = vunpack.c.l.b16 %v1600
    %v1736 = vunpack.c.l.b16 %v1601
    %v1737 = vunpack.c.l.b16 %v1602
    %v1738 = vunpack.c.l.b16 %v1603
    %v1739 = vunpack.c.l.b16 %v1604
    %v1740 = vunpack.c.l.b16 %v1605
    %v1741 = vunpack.c.l.b16 %v1606
    %v1742 = vunpack.c.l.b16 %v1607
    %v1743 = vunpack.c.l.b16 %v1608
    %v1744 = vunpack.c.l.b16 %v1609
    %v1745 = vunpack.c.l.b16 %v1610
    %v1746 = vunpack.c.l.b16 %v1611
    %v1747 = vunpack.c.l.b16 %v1612
    %v1748 = vunpack.c.l.b16 %v1613
    %v1749 = vunpack.c.l.b16 %v1614
    %v1750 = vunpack.c.l.b16 %v1615
    %v1751 = vunpack.c.l.b16 %v1616
    %v1752 = vunpack.c.l.b16 %v1617
    %v1753 = vunpack.c.l.b16 %v1618
    %v1754 = vunpack.c.l.b16 %v1619
    %v1755 = vunpack.c.l.b16 %v1620
    %v1756 = vunpack.c.l.b16 %v1621
    %v1757 = vunpack.c.l.b16 %v1622
    %v1758 = vunpack.c.l.b16 %v1623
    %v1759 = vunpack.c.l.b16 %v1624
    %v1760 = vunpack.c.l.b16 %v1625
    %v1761 = vunpack.c.l.b16 %v1626
    %v1762 = vunpack.c.l.b16 %v1627
    %v1763 = vunpack.c.l.b16 %v1628
    %v1764 = vunpack.c.l.b16 %v1629
    %v1765 = vunpack.c.l.b16 %v1630
    %v1766 = vunpack.c.l.b16 %v1631
    %v1767 = vunpack.c.l.b16 %v1632
    %v1768 = vunpack.c.l.b16 %v1633
    %v1769 = vunpack.c.l.b16 %v1634
    %v1770 = vunpack.c.l.b16 %v1635
    %v1771 = vunpack.c.l.b16 %v1636
    %v1772 = vunpack.c.l.b16 %v1637
    %v1773 = vunpack.c.l.b16 %v1638
    %v1774 = vunpack.c.l.b16 %v1639
    %v1775 = vunpack.c.l.b16 %v1640
    %v1776 = vunpack.c.l.b16 %v1641
    %v1777 = vpack.c.b16 %v1714, %v1713
    %v1778 = vpack.c.b16 %v1716, %v1715
    %v1779 = vpack.c.b16 %v1718, %v1717
    %v1780 = vpack.c.b16 %v1720, %v1719
    %v1781 = vpack.c.b16 %v1722, %v1721
    %v1782 = vpack.c.b16 %v1724, %v1723
    %v1783 = vpack.c.b16 %v1726, %v1725
    %v1784 = vpack.c.b16 %v1728, %v1727
    %v1785 = vpack.c.b16 %v1730, %v1729
    %v1786 = vpack.c.b16 %v1732, %v1731
    %v1787 = vpack.c.b16 %v1734, %v1733
    %v1788 = vpack.c.b16 %v1736, %v1735
    %v1789 = vpack.c.b16 %v1738, %v1737
    %v1790 = vpack.c.b16 %v1740, %v1739
    %v1791 = vpack.c.b16 %v1742, %v1741
    %v1792 = vpack.c.b16 %v1744, %v1743
    %v1793 = vpack.c.b16 %v1746, %v1745
    %v1794 = vpack.c.b16 %v1748, %v1747
    %v1795 = vpack.c.b16 %v1750, %v1749
    %v1796 = vpack.c.b16 %v1752, %v1751
    %v1797 = vpack.c.b16 %v1754, %v1753
    %v1798 = vpack.c.b16 %v1756, %v1755
    %v1799 = vpack.c.b16 %v1758, %v1757
    %v1800 = vpack.c.b16 %v1760, %v1759
    %v1801 = vpack.c.b16 %v1762, %v1761
    %v1802 = vpack.c.b16 %v1764, %v1763
    %v1803 = vpack.c.b16 %v1766, %v1765
    %v1804 = vpack.c.b16 %v1768, %v1767
    %v1805 = vpack.c.b16 %v1770, %v1769
    %v1806 = vpack.c.b16 %v1772, %v1771
    %v1807 = vpack.c.b16 %v1774, %v1773
    %v1808 = vpack.c.b16 %v1776, %v1775
    %1841 = vmatprep.subr.bf16.mxu0 0
    %1842 = vmatpush1.bf16.msra.mxu0 %v1777
    %1843 = vmatprep.subr.bf16.mxu0 0
    %1844 = vmatpush1.bf16.msra.mxu0 %v1778
    %1845 = vmatprep.subr.bf16.mxu0 0
    %1846 = vmatpush1.bf16.msra.mxu0 %v1779
    %1847 = vmatprep.subr.bf16.mxu0 0
    %1848 = vmatpush1.bf16.msra.mxu0 %v1780
    %1849 = vmatprep.subr.bf16.mxu0 0
    %1850 = vmatpush1.bf16.msra.mxu0 %v1781
    %1851 = vmatprep.subr.bf16.mxu0 0
    %1852 = vmatpush1.bf16.msra.mxu0 %v1782
    %1853 = vmatprep.subr.bf16.mxu0 0
    %1854 = vmatpush1.bf16.msra.mxu0 %v1783
    %1855 = vmatprep.subr.bf16.mxu0 0
    %1856 = vmatpush1.bf16.msra.mxu0 %v1784
    %1857 = vmatprep.subr.bf16.mxu0 0
    %1858 = vmatpush1.bf16.msra.mxu0 %v1785
    %1859 = vmatprep.subr.bf16.mxu0 0
    %1860 = vmatpush1.bf16.msra.mxu0 %v1786
    %1861 = vmatprep.subr.bf16.mxu0 0
    %1862 = vmatpush1.bf16.msra.mxu0 %v1787
    %1863 = vmatprep.subr.bf16.mxu0 0
    %1864 = vmatpush1.bf16.msra.mxu0 %v1788
    %1865 = vmatprep.subr.bf16.mxu0 0
    %1866 = vmatpush1.bf16.msra.mxu0 %v1789
    %1867 = vmatprep.subr.bf16.mxu0 0
    %1868 = vmatpush1.bf16.msra.mxu0 %v1790
    %1869 = vmatprep.subr.bf16.mxu0 0
    %1870 = vmatpush1.bf16.msra.mxu0 %v1791
    %1871 = vmatprep.subr.bf16.mxu0 0
    %1872 = vmatpush1.bf16.msra.mxu0 %v1792
    %1873 = vmatprep.mubr.bf16.mxu0 %v1575
    %1874 = vmatmul.mubr.bf16.gmra.mrb[0].mxu0 %v1574
    %v1875 = vpop.f32.mrb[0].mxu0
    %v1876 = vadd.f32 %v1647, %v1875
    %v1877 = vpop.f32.mrb[0].mxu0
    %v1878 = vpop.f32.mrb[0].mxu0
    %v1879 = vadd.f32 %v1647, %v1878
    %v1880 = vpop.f32.mrb[0].mxu0
    %1881 = vdwg.mxu0
    %1882 = vmatprep.subr.bf16.mxu0 0
    %1883 = vmatpush1.bf16.msra.mxu0 %v1793
    %1884 = vmatprep.subr.bf16.mxu0 0
    %1885 = vmatpush1.bf16.msra.mxu0 %v1794
    %1886 = vmatprep.subr.bf16.mxu0 0
    %1887 = vmatpush1.bf16.msra.mxu0 %v1795
    %1888 = vmatprep.subr.bf16.mxu0 0
    %1889 = vmatpush1.bf16.msra.mxu0 %v1796
    %1890 = vmatprep.subr.bf16.mxu0 0
    %1891 = vmatpush1.bf16.msra.mxu0 %v1797
    %1892 = vmatprep.subr.bf16.mxu0 0
    %1893 = vmatpush1.bf16.msra.mxu0 %v1798
    %1894 = vmatprep.subr.bf16.mxu0 0
    %1895 = vmatpush1.bf16.msra.mxu0 %v1799
    %1896 = vmatprep.subr.bf16.mxu0 0
    %1897 = vmatpush1.bf16.msra.mxu0 %v1800
    %1898 = vmatprep.subr.bf16.mxu0 0
    %1899 = vmatpush1.bf16.msra.mxu0 %v1801
    %1900 = vmatprep.subr.bf16.mxu0 0
    %1901 = vmatpush1.bf16.msra.mxu0 %v1802
    %1902 = vmatprep.subr.bf16.mxu0 0
    %1903 = vmatpush1.bf16.msra.mxu0 %v1803
    %1904 = vmatprep.subr.bf16.mxu0 0
    %1905 = vmatpush1.bf16.msra.mxu0 %v1804
    %1906 = vmatprep.subr.bf16.mxu0 0
    %1907 = vmatpush1.bf16.msra.mxu0 %v1805
    %1908 = vmatprep.subr.bf16.mxu0 0
    %1909 = vmatpush1.bf16.msra.mxu0 %v1806
    %1910 = vmatprep.subr.bf16.mxu0 0
    %1911 = vmatpush1.bf16.msra.mxu0 %v1807
    %1912 = vmatprep.subr.bf16.mxu0 0
    %1913 = vmatpush1.bf16.msra.mxu0 %v1808
    %1914 = vmatprep.mubr.bf16.mxu0 %v1577
    %1915 = vmatmul.mubr.bf16.gmra.mrb[0].mxu0 %v1576
    %v1916 = vpop.f32.mrb[0].mxu0
    %v1917 = vadd.f32 %v1876, %v1916
    %v1918 = vpop.f32.mrb[0].mxu0
    %v1919 = vpop.f32.mrb[0].mxu0
    %v1920 = vadd.f32 %v1879, %v1919
    %v1921 = vpop.f32.mrb[0].mxu0
    %1922 = vdwg.mxu0
    %v1923 = vadd.f32 %v1199, %v1917
    %v1924 = vadd.f32 %v1200, %v1920
    %v1925 = vld [vmem:[#allocation20] sm:$0x1]
    %v1926 = vld [vmem:[#allocation21] sm:$0x1]
    %1927 = vadd.xlane.f32.xlu0 %v1923
    %v1928 = vpop.xlane.xlu0 %1927
    %1929 = vadd.xlane.f32.xlu0 %v1924
    %v1930 = vpop.xlane.xlu0 %1929
    %v1931 = vmul.f32 %v1928, %v1166
    %v1932 = vmul.f32 %v1930, %v1166
    %v1933 = vsub.f32 %v1923, %v1931
    %v1934 = vsub.f32 %v1924, %v1932
    %v1935 = vmul.f32 %v1933, %v1933
    %v1936 = vmul.f32 %v1934, %v1934
    %1937 = vadd.xlane.f32.xlu0 %v1935
    %v1938 = vpop.xlane.xlu0 %1937
    %1939 = vadd.xlane.f32.xlu0 %v1936
    %v1940 = vpop.xlane.xlu0 %1939
    %v1941 = vmul.f32 %v1938, %v1166
    %v1942 = vmul.f32 %v1940, %v1166
    %v1943 = vadd.f32 %v1941, 1e-12
    %v1944 = vadd.f32 %v1942, 1e-12
    %v1945 = vrsqrt.pop %v1943
    %v1946 = vrsqrt.pop %v1944
    %v1947 = vmul.f32 %v1933, %v1945
    %v1948 = vmul.f32 %v1934, %v1946
    %v1950 = vlaneseq
    %v1951 = vshrl.u32 %v1950, 7
    %v1952 = vsub.s32 0, %v1951
    %v1953 = vrot.slane %v1925, %v1952
    %v1955 = vmul.f32 %v1947, %v1953
    %v1956 = vmul.f32 %v1948, %v1953
    %v1958 = vlaneseq
    %v1959 = vshrl.u32 %v1958, 7
    %v1960 = vsub.s32 0, %v1959
    %v1961 = vrot.slane %v1926, %v1960
    %v1963 = vadd.f32 %v1955, %v1961
    %v1964 = vadd.f32 %v1956, %v1961
    %v1965 = vpack.c.bf16 %v1964, %v1963
    %s1966 = scalar_lea.vmem [#allocation8], 384
    %v1967 = vld [vmem:[%s1966] sm:$0xff]
    %v1968 = vld [vmem:[%s1966 + $0x8] sm:$0xff]
    %v1969 = vld [vmem:[%s1966 + $0x10] sm:$0xff]
    %v1970 = vld [vmem:[%s1966 + $0x18] sm:$0xff]
    %v1971 = vld [vmem:[%s1966 + $0x20] sm:$0xff]
    %v1972 = vld [vmem:[%s1966 + $0x28] sm:$0xff]
    %v1973 = vld [vmem:[%s1966 + $0x30] sm:$0xff]
    %v1974 = vld [vmem:[%s1966 + $0x38] sm:$0xff]
    %v1975 = vld [vmem:[%s1966 + $0x40] sm:$0xff]
    %v1976 = vld [vmem:[%s1966 + $0x48] sm:$0xff]
    %v1977 = vld [vmem:[%s1966 + $0x50] sm:$0xff]
    %v1978 = vld [vmem:[%s1966 + $0x58] sm:$0xff]
    %v1979 = vld [vmem:[%s1966 + $0x60] sm:$0xff]
    %v1980 = vld [vmem:[%s1966 + $0x68] sm:$0xff]
    %v1981 = vld [vmem:[%s1966 + $0x70] sm:$0xff]
    %v1982 = vld [vmem:[%s1966 + $0x78] sm:$0xff]
    %v1983 = vld [vmem:[%s1966 + $0x80] sm:$0xff]
    %v1984 = vld [vmem:[%s1966 + $0x88] sm:$0xff]
    %v1985 = vld [vmem:[%s1966 + $0x90] sm:$0xff]
    %v1986 = vld [vmem:[%s1966 + $0x98] sm:$0xff]
    %v1987 = vld [vmem:[%s1966 + $0xa0] sm:$0xff]
    %v1988 = vld [vmem:[%s1966 + $0xa8] sm:$0xff]
    %v1989 = vld [vmem:[%s1966 + $0xb0] sm:$0xff]
    %v1990 = vld [vmem:[%s1966 + $0xb8] sm:$0xff]
    %v1991 = vld [vmem:[%s1966 + $0xc0] sm:$0xff]
    %v1992 = vld [vmem:[%s1966 + $0xc8] sm:$0xff]
    %v1993 = vld [vmem:[%s1966 + $0xd0] sm:$0xff]
    %v1994 = vld [vmem:[%s1966 + $0xd8] sm:$0xff]
    %v1995 = vld [vmem:[%s1966 + $0xe0] sm:$0xff]
    %v1996 = vld [vmem:[%s1966 + $0xe8] sm:$0xff]
    %v1997 = vld [vmem:[%s1966 + $0xf0] sm:$0xff]
    %v1998 = vld [vmem:[%s1966 + $0xf8] sm:$0xff]
    %v1999 = vld [vmem:[%s1966 + $0x100] sm:$0xff]
    %v2000 = vld [vmem:[%s1966 + $0x108] sm:$0xff]
    %v2001 = vld [vmem:[%s1966 + $0x110] sm:$0xff]
    %v2002 = vld [vmem:[%s1966 + $0x118] sm:$0xff]
    %v2003 = vld [vmem:[%s1966 + $0x120] sm:$0xff]
    %v2004 = vld [vmem:[%s1966 + $0x128] sm:$0xff]
    %v2005 = vld [vmem:[%s1966 + $0x130] sm:$0xff]
    %v2006 = vld [vmem:[%s1966 + $0x138] sm:$0xff]
    %v2007 = vld [vmem:[%s1966 + $0x140] sm:$0xff]
    %v2008 = vld [vmem:[%s1966 + $0x148] sm:$0xff]
    %v2009 = vld [vmem:[%s1966 + $0x150] sm:$0xff]
    %v2010 = vld [vmem:[%s1966 + $0x158] sm:$0xff]
    %v2011 = vld [vmem:[%s1966 + $0x160] sm:$0xff]
    %v2012 = vld [vmem:[%s1966 + $0x168] sm:$0xff]
    %v2013 = vld [vmem:[%s1966 + $0x170] sm:$0xff]
    %v2014 = vld [vmem:[%s1966 + $0x178] sm:$0xff]
    %s2015 = scalar_lea.vmem [#allocation9], 6
    %v2016 = vld [vmem:[%s2015] sm:$0x3f]
    %v2018 = vlaneseq
    %v2019 = vshrl.u32 %v2018, 7
    %v2020 = vsub.s32 0, %v2019
    %v2021 = vrot.slane %v2016, %v2020
    %v2022 = vlaneseq
    %v2023 = vshrl.u32 %v2022, 7
    %v2024 = vsub.s32 1, %v2023
    %v2025 = vrot.slane %v2016, %v2024
    %v2026 = vlaneseq
    %v2027 = vshrl.u32 %v2026, 7
    %v2028 = vsub.s32 2, %v2027
    %v2029 = vrot.slane %v2016, %v2028
    %v2030 = vlaneseq
    %v2031 = vshrl.u32 %v2030, 7
    %v2032 = vsub.s32 3, %v2031
    %v2033 = vrot.slane %v2016, %v2032
    %v2034 = vlaneseq
    %v2035 = vshrl.u32 %v2034, 7
    %v2036 = vsub.s32 4, %v2035
    %v2037 = vrot.slane %v2016, %v2036
    %v2038 = vlaneseq
    %v2039 = vshrl.u32 %v2038, 7
    %v2040 = vsub.s32 5, %v2039
    %v2041 = vrot.slane %v2016, %v2040
    %v2096 = vunpack.c.l.b16 %v1967
    %v2097 = vunpack.c.h.b16 %v1967
    %v2098 = vunpack.c.l.b16 %v1968
    %v2099 = vunpack.c.h.b16 %v1968
    %v2100 = vunpack.c.l.b16 %v1969
    %v2101 = vunpack.c.h.b16 %v1969
    %v2102 = vunpack.c.l.b16 %v1970
    %v2103 = vunpack.c.h.b16 %v1970
    %v2104 = vunpack.c.l.b16 %v1971
    %v2105 = vunpack.c.h.b16 %v1971
    %v2106 = vunpack.c.l.b16 %v1972
    %v2107 = vunpack.c.h.b16 %v1972
    %v2108 = vunpack.c.l.b16 %v1973
    %v2109 = vunpack.c.h.b16 %v1973
    %v2110 = vunpack.c.l.b16 %v1974
    %v2111 = vunpack.c.h.b16 %v1974
    %v2112 = vunpack.c.l.b16 %v1975
    %v2113 = vunpack.c.h.b16 %v1975
    %v2114 = vunpack.c.l.b16 %v1976
    %v2115 = vunpack.c.h.b16 %v1976
    %v2116 = vunpack.c.l.b16 %v1977
    %v2117 = vunpack.c.h.b16 %v1977
    %v2118 = vunpack.c.l.b16 %v1978
    %v2119 = vunpack.c.h.b16 %v1978
    %v2120 = vunpack.c.l.b16 %v1979
    %v2121 = vunpack.c.h.b16 %v1979
    %v2122 = vunpack.c.l.b16 %v1980
    %v2123 = vunpack.c.h.b16 %v1980
    %v2124 = vunpack.c.l.b16 %v1981
    %v2125 = vunpack.c.h.b16 %v1981
    %v2126 = vunpack.c.l.b16 %v1982
    %v2127 = vunpack.c.h.b16 %v1982
    %v2128 = vunpack.c.l.b16 %v1983
    %v2129 = vunpack.c.h.b16 %v1983
    %v2130 = vunpack.c.l.b16 %v1984
    %v2131 = vunpack.c.h.b16 %v1984
    %v2132 = vunpack.c.l.b16 %v1985
    %v2133 = vunpack.c.h.b16 %v1985
    %v2134 = vunpack.c.l.b16 %v1986
    %v2135 = vunpack.c.h.b16 %v1986
    %v2136 = vunpack.c.l.b16 %v1987
    %v2137 = vunpack.c.h.b16 %v1987
    %v2138 = vunpack.c.l.b16 %v1988
    %v2139 = vunpack.c.h.b16 %v1988
    %v2140 = vunpack.c.l.b16 %v1989
    %v2141 = vunpack.c.h.b16 %v1989
    %v2142 = vunpack.c.l.b16 %v1990
    %v2143 = vunpack.c.h.b16 %v1990
    %v2144 = vunpack.c.l.b16 %v1991
    %v2145 = vunpack.c.h.b16 %v1991
    %v2146 = vunpack.c.l.b16 %v1992
    %v2147 = vunpack.c.h.b16 %v1992
    %v2148 = vunpack.c.l.b16 %v1993
    %v2149 = vunpack.c.h.b16 %v1993
    %v2150 = vunpack.c.l.b16 %v1994
    %v2151 = vunpack.c.h.b16 %v1994
    %v2152 = vunpack.c.l.b16 %v1995
    %v2153 = vunpack.c.h.b16 %v1995
    %v2154 = vunpack.c.l.b16 %v1996
    %v2155 = vunpack.c.h.b16 %v1996
    %v2156 = vunpack.c.l.b16 %v1997
    %v2157 = vunpack.c.h.b16 %v1997
    %v2158 = vunpack.c.l.b16 %v1998
    %v2159 = vunpack.c.h.b16 %v1998
    %v2160 = vunpack.c.l.b16 %v1999
    %v2161 = vunpack.c.h.b16 %v1999
    %v2162 = vunpack.c.l.b16 %v2000
    %v2163 = vunpack.c.h.b16 %v2000
    %v2164 = vunpack.c.l.b16 %v2001
    %v2165 = vunpack.c.h.b16 %v2001
    %v2166 = vunpack.c.l.b16 %v2002
    %v2167 = vunpack.c.h.b16 %v2002
    %v2168 = vunpack.c.l.b16 %v2003
    %v2169 = vunpack.c.h.b16 %v2003
    %v2170 = vunpack.c.l.b16 %v2004
    %v2171 = vunpack.c.h.b16 %v2004
    %v2172 = vunpack.c.l.b16 %v2005
    %v2173 = vunpack.c.h.b16 %v2005
    %v2174 = vunpack.c.l.b16 %v2006
    %v2175 = vunpack.c.h.b16 %v2006
    %v2176 = vunpack.c.l.b16 %v2007
    %v2177 = vunpack.c.h.b16 %v2007
    %v2178 = vunpack.c.l.b16 %v2008
    %v2179 = vunpack.c.h.b16 %v2008
    %v2180 = vunpack.c.l.b16 %v2009
    %v2181 = vunpack.c.h.b16 %v2009
    %v2182 = vunpack.c.l.b16 %v2010
    %v2183 = vunpack.c.h.b16 %v2010
    %v2184 = vunpack.c.l.b16 %v2011
    %v2185 = vunpack.c.h.b16 %v2011
    %v2186 = vunpack.c.l.b16 %v2012
    %v2187 = vunpack.c.h.b16 %v2012
    %v2188 = vunpack.c.l.b16 %v2013
    %v2189 = vunpack.c.h.b16 %v2013
    %v2190 = vunpack.c.l.b16 %v2014
    %v2191 = vunpack.c.h.b16 %v2014
    %v2192 = vpack.c.b16 %v2102, %v2096
    %v2193 = vpack.c.b16 %v2103, %v2097
    %v2194 = vpack.c.b16 %v2104, %v2098
    %v2195 = vpack.c.b16 %v2105, %v2099
    %v2196 = vpack.c.b16 %v2106, %v2100
    %v2197 = vpack.c.b16 %v2107, %v2101
    %v2198 = vpack.c.b16 %v2114, %v2108
    %v2199 = vpack.c.b16 %v2115, %v2109
    %v2200 = vpack.c.b16 %v2116, %v2110
    %v2201 = vpack.c.b16 %v2117, %v2111
    %v2202 = vpack.c.b16 %v2118, %v2112
    %v2203 = vpack.c.b16 %v2119, %v2113
    %v2204 = vpack.c.b16 %v2126, %v2120
    %v2205 = vpack.c.b16 %v2127, %v2121
    %v2206 = vpack.c.b16 %v2128, %v2122
    %v2207 = vpack.c.b16 %v2129, %v2123
    %v2208 = vpack.c.b16 %v2130, %v2124
    %v2209 = vpack.c.b16 %v2131, %v2125
    %v2210 = vpack.c.b16 %v2138, %v2132
    %v2211 = vpack.c.b16 %v2139, %v2133
    %v2212 = vpack.c.b16 %v2140, %v2134
    %v2213 = vpack.c.b16 %v2141, %v2135
    %v2214 = vpack.c.b16 %v2142, %v2136
    %v2215 = vpack.c.b16 %v2143, %v2137
    %v2216 = vpack.c.b16 %v2150, %v2144
    %v2217 = vpack.c.b16 %v2151, %v2145
    %v2218 = vpack.c.b16 %v2152, %v2146
    %v2219 = vpack.c.b16 %v2153, %v2147
    %v2220 = vpack.c.b16 %v2154, %v2148
    %v2221 = vpack.c.b16 %v2155, %v2149
    %v2222 = vpack.c.b16 %v2162, %v2156
    %v2223 = vpack.c.b16 %v2163, %v2157
    %v2224 = vpack.c.b16 %v2164, %v2158
    %v2225 = vpack.c.b16 %v2165, %v2159
    %v2226 = vpack.c.b16 %v2166, %v2160
    %v2227 = vpack.c.b16 %v2167, %v2161
    %v2228 = vpack.c.b16 %v2174, %v2168
    %v2229 = vpack.c.b16 %v2175, %v2169
    %v2230 = vpack.c.b16 %v2176, %v2170
    %v2231 = vpack.c.b16 %v2177, %v2171
    %v2232 = vpack.c.b16 %v2178, %v2172
    %v2233 = vpack.c.b16 %v2179, %v2173
    %v2234 = vpack.c.b16 %v2186, %v2180
    %v2235 = vpack.c.b16 %v2187, %v2181
    %v2236 = vpack.c.b16 %v2188, %v2182
    %v2237 = vpack.c.b16 %v2189, %v2183
    %v2238 = vpack.c.b16 %v2190, %v2184
    %v2239 = vpack.c.b16 %v2191, %v2185
    %2288 = vmatprep.subr.bf16.mxu0 %v2193
    %2289 = vmatpush1.bf16.msra.mxu0 %v2192
    %2290 = vmatprep.subr.bf16.mxu0 %v2199
    %2291 = vmatpush1.bf16.msra.mxu0 %v2198
    %2292 = vmatprep.subr.bf16.mxu0 %v2205
    %2293 = vmatpush1.bf16.msra.mxu0 %v2204
    %2294 = vmatprep.subr.bf16.mxu0 %v2211
    %2295 = vmatpush1.bf16.msra.mxu0 %v2210
    %2296 = vmatprep.subr.bf16.mxu0 %v2217
    %2297 = vmatpush1.bf16.msra.mxu0 %v2216
    %2298 = vmatprep.subr.bf16.mxu0 %v2223
    %2299 = vmatpush1.bf16.msra.mxu0 %v2222
    %2300 = vmatprep.subr.bf16.mxu0 %v2229
    %2301 = vmatpush1.bf16.msra.mxu0 %v2228
    %2302 = vmatprep.subr.bf16.mxu0 %v2235
    %2303 = vmatpush1.bf16.msra.mxu0 %v2234
    %2304 = vmatprep.subr.bf16.mxu0 0
    %2305 = vmatpush1.bf16.msra.mxu0 0
    %2306 = vmatprep.subr.bf16.mxu0 0
    %2307 = vmatpush1.bf16.msra.mxu0 0
    %2308 = vmatprep.subr.bf16.mxu0 0
    %2309 = vmatpush1.bf16.msra.mxu0 0
    %2310 = vmatprep.subr.bf16.mxu0 0
    %2311 = vmatpush1.bf16.msra.mxu0 0
    %2312 = vmatprep.subr.bf16.mxu0 0
    %2313 = vmatpush1.bf16.msra.mxu0 0
    %2314 = vmatprep.subr.bf16.mxu0 0
    %2315 = vmatpush1.bf16.msra.mxu0 0
    %2316 = vmatprep.subr.bf16.mxu0 0
    %2317 = vmatpush1.bf16.msra.mxu0 0
    %2318 = vmatprep.subr.bf16.mxu0 0
    %2319 = vmatpush1.bf16.msra.mxu0 0
    %2320 = vmatprep.mubr.bf16.mxu0 0
    %2321 = vmatmul.mubr.bf16.gmra.mrb[0].mxu0 %v1965
    %v2322 = vpop.f32.mrb[0].mxu0
    %v2323 = vadd.f32 %v2021, %v2322
    %v2324 = vpop.f32.mrb[0].mxu0
    %v2325 = vadd.f32 %v2025, %v2324
    %v2326 = vpop.f32.mrb[0].mxu0
    %v2327 = vadd.f32 %v2021, %v2326
    %v2328 = vpop.f32.mrb[0].mxu0
    %v2329 = vadd.f32 %v2025, %v2328
    %2330 = vdwg.mxu0
    %2331 = vmatprep.subr.bf16.mxu0 %v2195
    %2332 = vmatpush1.bf16.msra.mxu0 %v2194
    %2333 = vmatprep.subr.bf16.mxu0 %v2201
    %2334 = vmatpush1.bf16.msra.mxu0 %v2200
    %2335 = vmatprep.subr.bf16.mxu0 %v2207
    %2336 = vmatpush1.bf16.msra.mxu0 %v2206
    %2337 = vmatprep.subr.bf16.mxu0 %v2213
    %2338 = vmatpush1.bf16.msra.mxu0 %v2212
    %2339 = vmatprep.subr.bf16.mxu0 %v2219
    %2340 = vmatpush1.bf16.msra.mxu0 %v2218
    %2341 = vmatprep.subr.bf16.mxu0 %v2225
    %2342 = vmatpush1.bf16.msra.mxu0 %v2224
    %2343 = vmatprep.subr.bf16.mxu0 %v2231
    %2344 = vmatpush1.bf16.msra.mxu0 %v2230
    %2345 = vmatprep.subr.bf16.mxu0 %v2237
    %2346 = vmatpush1.bf16.msra.mxu0 %v2236
    %2347 = vmatprep.subr.bf16.mxu0 0
    %2348 = vmatpush1.bf16.msra.mxu0 0
    %2349 = vmatprep.subr.bf16.mxu0 0
    %2350 = vmatpush1.bf16.msra.mxu0 0
    %2351 = vmatprep.subr.bf16.mxu0 0
    %2352 = vmatpush1.bf16.msra.mxu0 0
    %2353 = vmatprep.subr.bf16.mxu0 0
    %2354 = vmatpush1.bf16.msra.mxu0 0
    %2355 = vmatprep.subr.bf16.mxu0 0
    %2356 = vmatpush1.bf16.msra.mxu0 0
    %2357 = vmatprep.subr.bf16.mxu0 0
    %2358 = vmatpush1.bf16.msra.mxu0 0
    %2359 = vmatprep.subr.bf16.mxu0 0
    %2360 = vmatpush1.bf16.msra.mxu0 0
    %2361 = vmatprep.subr.bf16.mxu0 0
    %2362 = vmatpush1.bf16.msra.mxu0 0
    %2363 = vmatprep.mubr.bf16.mxu0 0
    %2364 = vmatmul.mubr.bf16.gmra.mrb[0].mxu0 %v1965
    %v2365 = vpop.f32.mrb[0].mxu0
    %v2366 = vadd.f32 %v2029, %v2365
    %v2367 = vpop.f32.mrb[0].mxu0
    %v2368 = vadd.f32 %v2033, %v2367
    %v2369 = vpop.f32.mrb[0].mxu0
    %v2370 = vadd.f32 %v2029, %v2369
    %v2371 = vpop.f32.mrb[0].mxu0
    %v2372 = vadd.f32 %v2033, %v2371
    %2373 = vdwg.mxu0
    %2374 = vmatprep.subr.bf16.mxu0 %v2197
    %2375 = vmatpush1.bf16.msra.mxu0 %v2196
    %2376 = vmatprep.subr.bf16.mxu0 %v2203
    %2377 = vmatpush1.bf16.msra.mxu0 %v2202
    %2378 = vmatprep.subr.bf16.mxu0 %v2209
    %2379 = vmatpush1.bf16.msra.mxu0 %v2208
    %2380 = vmatprep.subr.bf16.mxu0 %v2215
    %2381 = vmatpush1.bf16.msra.mxu0 %v2214
    %2382 = vmatprep.subr.bf16.mxu0 %v2221
    %2383 = vmatpush1.bf16.msra.mxu0 %v2220
    %2384 = vmatprep.subr.bf16.mxu0 %v2227
    %2385 = vmatpush1.bf16.msra.mxu0 %v2226
    %2386 = vmatprep.subr.bf16.mxu0 %v2233
    %2387 = vmatpush1.bf16.msra.mxu0 %v2232
    %2388 = vmatprep.subr.bf16.mxu0 %v2239
    %2389 = vmatpush1.bf16.msra.mxu0 %v2238
    %2390 = vmatprep.subr.bf16.mxu0 0
    %2391 = vmatpush1.bf16.msra.mxu0 0
    %2392 = vmatprep.subr.bf16.mxu0 0
    %2393 = vmatpush1.bf16.msra.mxu0 0
    %2394 = vmatprep.subr.bf16.mxu0 0
    %2395 = vmatpush1.bf16.msra.mxu0 0
    %2396 = vmatprep.subr.bf16.mxu0 0
    %2397 = vmatpush1.bf16.msra.mxu0 0
    %2398 = vmatprep.subr.bf16.mxu0 0
    %2399 = vmatpush1.bf16.msra.mxu0 0
    %2400 = vmatprep.subr.bf16.mxu0 0
    %2401 = vmatpush1.bf16.msra.mxu0 0
    %2402 = vmatprep.subr.bf16.mxu0 0
    %2403 = vmatpush1.bf16.msra.mxu0 0
    %2404 = vmatprep.subr.bf16.mxu0 0
    %2405 = vmatpush1.bf16.msra.mxu0 0
    %2406 = vmatprep.mubr.bf16.mxu0 0
    %2407 = vmatmul.mubr.bf16.gmra.mrb[0].mxu0 %v1965
    %v2408 = vpop.f32.mrb[0].mxu0
    %v2409 = vadd.f32 %v2037, %v2408
    %v2410 = vpop.f32.mrb[0].mxu0
    %v2411 = vadd.f32 %v2041, %v2410
    %v2412 = vpop.f32.mrb[0].mxu0
    %v2413 = vadd.f32 %v2037, %v2412
    %v2414 = vpop.f32.mrb[0].mxu0
    %v2415 = vadd.f32 %v2041, %v2414
    %2416 = vdwg.mxu0
    %s2417 = scalar_lea.vmem [#allocation11], 128
    %v2418 = vld [vmem:[%s2417] sm:$0xf]
    %v2419 = vld [vmem:[%s2417 + $0x4] sm:$0xf]
    %v2420 = vld [vmem:[%s2417 + $0x8] sm:$0xf]
    %v2421 = vld [vmem:[%s2417 + $0xc] sm:$0xf]
    %v2422 = vld [vmem:[%s2417 + $0x10] sm:$0xf]
    %v2423 = vld [vmem:[%s2417 + $0x14] sm:$0xf]
    %v2424 = vld [vmem:[%s2417 + $0x18] sm:$0xf]
    %v2425 = vld [vmem:[%s2417 + $0x1c] sm:$0xf]
    %v2426 = vld [vmem:[%s2417 + $0x20] sm:$0xf]
    %v2427 = vld [vmem:[%s2417 + $0x24] sm:$0xf]
    %v2428 = vld [vmem:[%s2417 + $0x28] sm:$0xf]
    %v2429 = vld [vmem:[%s2417 + $0x2c] sm:$0xf]
    %v2430 = vld [vmem:[%s2417 + $0x30] sm:$0xf]
    %v2431 = vld [vmem:[%s2417 + $0x34] sm:$0xf]
    %v2432 = vld [vmem:[%s2417 + $0x38] sm:$0xf]
    %v2433 = vld [vmem:[%s2417 + $0x3c] sm:$0xf]
    %v2434 = vld [vmem:[%s2417 + $0x40] sm:$0xf]
    %v2435 = vld [vmem:[%s2417 + $0x44] sm:$0xf]
    %v2436 = vld [vmem:[%s2417 + $0x48] sm:$0xf]
    %v2437 = vld [vmem:[%s2417 + $0x4c] sm:$0xf]
    %v2438 = vld [vmem:[%s2417 + $0x50] sm:$0xf]
    %v2439 = vld [vmem:[%s2417 + $0x54] sm:$0xf]
    %v2440 = vld [vmem:[%s2417 + $0x58] sm:$0xf]
    %v2441 = vld [vmem:[%s2417 + $0x5c] sm:$0xf]
    %v2442 = vld [vmem:[%s2417 + $0x60] sm:$0xf]
    %v2443 = vld [vmem:[%s2417 + $0x64] sm:$0xf]
    %v2444 = vld [vmem:[%s2417 + $0x68] sm:$0xf]
    %v2445 = vld [vmem:[%s2417 + $0x6c] sm:$0xf]
    %v2446 = vld [vmem:[%s2417 + $0x70] sm:$0xf]
    %v2447 = vld [vmem:[%s2417 + $0x74] sm:$0xf]
    %v2448 = vld [vmem:[%s2417 + $0x78] sm:$0xf]
    %v2449 = vld [vmem:[%s2417 + $0x7c] sm:$0xf]
    %v2450 = vpack.c.bf16 %v2327, %v2323
    %v2451 = vpack.c.bf16 %v2329, %v2325
    %2452 = vmatprep.subr.bf16.mxu0 0
    %2453 = vmatpush1.bf16.xpose.msra.mxu0 %v2451
    %2454 = vmatprep.subr.bf16.mxu0 0
    %2455 = vmatpush1.bf16.xpose.msra.mxu0 0
    %2456 = vmatprep.subr.bf16.mxu0 0
    %2457 = vmatpush1.bf16.xpose.msra.mxu0 0
    %2458 = vmatprep.subr.bf16.mxu0 0
    %2459 = vmatpush1.bf16.xpose.msra.mxu0 0
    %2460 = vmatprep.subr.bf16.mxu0 0
    %2461 = vmatpush1.bf16.xpose.msra.mxu0 0
    %2462 = vmatprep.subr.bf16.mxu0 0
    %2463 = vmatpush1.bf16.xpose.msra.mxu0 0
    %2464 = vmatprep.subr.bf16.mxu0 0
    %2465 = vmatpush1.bf16.xpose.msra.mxu0 0
    %2466 = vmatprep.subr.bf16.mxu0 0
    %2467 = vmatpush1.bf16.xpose.msra.mxu0 0
    %2468 = vmatprep.subr.bf16.mxu0 0
    %2469 = vmatpush1.bf16.xpose.msra.mxu0 0
    %2470 = vmatprep.subr.bf16.mxu0 0
    %2471 = vmatpush1.bf16.xpose.msra.mxu0 0
    %2472 = vmatprep.subr.bf16.mxu0 0
    %2473 = vmatpush1.bf16.xpose.msra.mxu0 0
    %2474 = vmatprep.subr.bf16.mxu0 0
    %2475 = vmatpush1.bf16.xpose.msra.mxu0 0
    %2476 = vmatprep.subr.bf16.mxu0 0
    %2477 = vmatpush1.bf16.xpose.msra.mxu0 0
    %2478 = vmatprep.subr.bf16.mxu0 0
    %2479 = vmatpush1.bf16.xpose.msra.mxu0 0
    %2480 = vmatprep.subr.bf16.mxu0 0
    %2481 = vmatpush1.bf16.xpose.msra.mxu0 0
    %2482 = vmatprep.subr.bf16.mxu0 0
    %2483 = vmatpush1.bf16.xpose.msra.mxu0 0
    %2484 = vmatprep.mubr.bf16.mxu0 0
    %2485 = vmatmul.mubr.bf16.gmra.mrb[0].mxu0 %v2450
    %v2486 = vpop.f32.mrb[0].mxu0
    %v2487 = vadd.f32 0.0, %v2486
    %v2488 = vpop.f32.mrb[0].mxu0
    %v2489 = vpop.f32.mrb[0].mxu0
    %v2490 = vadd.f32 0.0, %v2489
    %v2491 = vpop.f32.mrb[0].mxu0
    %2492 = vdwg.mxu0
    %v2493 = vmul.f32 %v2487, 0.125
    %v2494 = vmul.f32 %v2490, 0.125
    %v2495 = vadd.f32 %v2493, %v254
    %v2496 = vadd.f32 %v2494, %v255
    %v2497 = vsel %vm785, %v2495, -inf
    %2498 = vmax.xlane.f32.xlu0 %v2497
    %v2499 = vpop.xlane.xlu0 %2498
    %v2500 = vsel %vm785, %v2496, -inf
    %2501 = vmax.xlane.f32.xlu0 %v2500
    %v2502 = vpop.xlane.xlu0 %2501
    %v2503 = vsub.f32 %v2495, %v2499
    %v2504 = vsub.f32 %v2496, %v2502
    %v2505 = vmul.f32 %v2503, 1.442695
    %v2506 = vpow.pop %v2505
    %v2507 = vmul.f32 %v2504, 1.442695
    %v2508 = vpow.pop %v2507
    %v2509 = vsel %vm785, %v2506, 0.0
    %2510 = vadd.xlane.f32.xlu0 %v2509
    %v2511 = vpop.xlane.xlu0 %2510
    %v2512 = vsel %vm785, %v2508, 0.0
    %2513 = vadd.xlane.f32.xlu0 %v2512
    %v2514 = vpop.xlane.xlu0 %2513
    %v2515 = vrcp.pop %v2511
    %v2516 = vrcp.pop %v2514
    %v2517 = vmul.f32 %v2506, %v2515
    %v2518 = vmul.f32 %v2508, %v2516
    %v2519 = vpack.c.bf16 %v2518, %v2517
    %v2520 = vpack.c.bf16 %v2370, %v2366
    %v2522 = vsel %vm785, %v2519, 0
    %2524 = vmatprep.subr.bf16.mxu0 0
    %2525 = vmatpush1.bf16.msra.mxu0 %v2520
    %2526 = vmatprep.subr.bf16.mxu0 0
    %2527 = vmatpush1.bf16.msra.mxu0 0
    %2528 = vmatprep.subr.bf16.mxu0 0
    %2529 = vmatpush1.bf16.msra.mxu0 0
    %2530 = vmatprep.subr.bf16.mxu0 0
    %2531 = vmatpush1.bf16.msra.mxu0 0
    %2532 = vmatprep.subr.bf16.mxu0 0
    %2533 = vmatpush1.bf16.msra.mxu0 0
    %2534 = vmatprep.subr.bf16.mxu0 0
    %2535 = vmatpush1.bf16.msra.mxu0 0
    %2536 = vmatprep.subr.bf16.mxu0 0
    %2537 = vmatpush1.bf16.msra.mxu0 0
    %2538 = vmatprep.subr.bf16.mxu0 0
    %2539 = vmatpush1.bf16.msra.mxu0 0
    %2540 = vmatprep.subr.bf16.mxu0 0
    %2541 = vmatpush1.bf16.msra.mxu0 0
    %2542 = vmatprep.subr.bf16.mxu0 0
    %2543 = vmatpush1.bf16.msra.mxu0 0
    %2544 = vmatprep.subr.bf16.mxu0 0
    %2545 = vmatpush1.bf16.msra.mxu0 0
    %2546 = vmatprep.subr.bf16.mxu0 0
    %2547 = vmatpush1.bf16.msra.mxu0 0
    %2548 = vmatprep.subr.bf16.mxu0 0
    %2549 = vmatpush1.bf16.msra.mxu0 0
    %2550 = vmatprep.subr.bf16.mxu0 0
    %2551 = vmatpush1.bf16.msra.mxu0 0
    %2552 = vmatprep.subr.bf16.mxu0 0
    %2553 = vmatpush1.bf16.msra.mxu0 0
    %2554 = vmatprep.subr.bf16.mxu0 0
    %2555 = vmatpush1.bf16.msra.mxu0 0
    %2556 = vmatprep.mubr.bf16.mxu0 0
    %2557 = vmatmul.mubr.bf16.gmra.mrb[0].mxu0 %v2522
    %v2558 = vpop.f32.mrb[0].mxu0
    %v2559 = vadd.f32 0.0, %v2558
    %v2560 = vpop.f32.mrb[0].mxu0
    %v2561 = vpop.f32.mrb[0].mxu0
    %v2562 = vadd.f32 0.0, %v2561
    %v2563 = vpop.f32.mrb[0].mxu0
    %2564 = vdwg.mxu0
    %v2565 = vpack.c.bf16 %v2562, %v2559
    %v2566 = vpack.c.bf16 %v2372, %v2368
    %v2567 = vpack.c.bf16 %v2413, %v2409
    %2568 = vmatprep.subr.bf16.mxu0 0
    %2569 = vmatpush1.bf16.xpose.msra.mxu0 %v2567
    %2570 = vmatprep.subr.bf16.mxu0 0
    %2571 = vmatpush1.bf16.xpose.msra.mxu0 0
    %2572 = vmatprep.subr.bf16.mxu0 0
    %2573 = vmatpush1.bf16.xpose.msra.mxu0 0
    %2574 = vmatprep.subr.bf16.mxu0 0
    %2575 = vmatpush1.bf16.xpose.msra.mxu0 0
    %2576 = vmatprep.subr.bf16.mxu0 0
    %2577 = vmatpush1.bf16.xpose.msra.mxu0 0
    %2578 = vmatprep.subr.bf16.mxu0 0
    %2579 = vmatpush1.bf16.xpose.msra.mxu0 0
    %2580 = vmatprep.subr.bf16.mxu0 0
    %2581 = vmatpush1.bf16.xpose.msra.mxu0 0
    %2582 = vmatprep.subr.bf16.mxu0 0
    %2583 = vmatpush1.bf16.xpose.msra.mxu0 0
    %2584 = vmatprep.subr.bf16.mxu0 0
    %2585 = vmatpush1.bf16.xpose.msra.mxu0 0
    %2586 = vmatprep.subr.bf16.mxu0 0
    %2587 = vmatpush1.bf16.xpose.msra.mxu0 0
    %2588 = vmatprep.subr.bf16.mxu0 0
    %2589 = vmatpush1.bf16.xpose.msra.mxu0 0
    %2590 = vmatprep.subr.bf16.mxu0 0
    %2591 = vmatpush1.bf16.xpose.msra.mxu0 0
    %2592 = vmatprep.subr.bf16.mxu0 0
    %2593 = vmatpush1.bf16.xpose.msra.mxu0 0
    %2594 = vmatprep.subr.bf16.mxu0 0
    %2595 = vmatpush1.bf16.xpose.msra.mxu0 0
    %2596 = vmatprep.subr.bf16.mxu0 0
    %2597 = vmatpush1.bf16.xpose.msra.mxu0 0
    %2598 = vmatprep.subr.bf16.mxu0 0
    %2599 = vmatpush1.bf16.xpose.msra.mxu0 0
    %2600 = vmatprep.mubr.bf16.mxu0 0
    %2601 = vmatmul.mubr.bf16.gmra.mrb[0].mxu0 %v2566
    %v2602 = vpop.f32.mrb[0].mxu0
    %v2603 = vadd.f32 0.0, %v2602
    %v2604 = vpop.f32.mrb[0].mxu0
    %v2605 = vpop.f32.mrb[0].mxu0
    %v2606 = vadd.f32 0.0, %v2605
    %v2607 = vpop.f32.mrb[0].mxu0
    %2608 = vdwg.mxu0
    %v2609 = vmul.f32 %v2603, 0.125
    %v2610 = vmul.f32 %v2606, 0.125
    %v2611 = vadd.f32 %v2609, %v254
    %v2612 = vadd.f32 %v2610, %v255
    %v2613 = vsel %vm785, %v2611, -inf
    %2614 = vmax.xlane.f32.xlu0 %v2613
    %v2615 = vpop.xlane.xlu0 %2614
    %v2616 = vsel %vm785, %v2612, -inf
    %2617 = vmax.xlane.f32.xlu0 %v2616
    %v2618 = vpop.xlane.xlu0 %2617
    %v2619 = vsub.f32 %v2611, %v2615
    %v2620 = vsub.f32 %v2612, %v2618
    %v2621 = vmul.f32 %v2619, 1.442695
    %v2622 = vpow.pop %v2621
    %v2623 = vmul.f32 %v2620, 1.442695
    %v2624 = vpow.pop %v2623
    %v2625 = vsel %vm785, %v2622, 0.0
    %2626 = vadd.xlane.f32.xlu0 %v2625
    %v2627 = vpop.xlane.xlu0 %2626
    %v2628 = vsel %vm785, %v2624, 0.0
    %2629 = vadd.xlane.f32.xlu0 %v2628
    %v2630 = vpop.xlane.xlu0 %2629
    %v2631 = vrcp.pop %v2627
    %v2632 = vrcp.pop %v2630
    %v2633 = vmul.f32 %v2622, %v2631
    %v2634 = vmul.f32 %v2624, %v2632
    %v2635 = vpack.c.bf16 %v2634, %v2633
    %v2636 = vpack.c.bf16 %v2415, %v2411
    %v2638 = vsel %vm785, %v2635, 0
    %2640 = vmatprep.subr.bf16.mxu0 0
    %2641 = vmatpush1.bf16.msra.mxu0 %v2636
    %2642 = vmatprep.subr.bf16.mxu0 0
    %2643 = vmatpush1.bf16.msra.mxu0 0
    %2644 = vmatprep.subr.bf16.mxu0 0
    %2645 = vmatpush1.bf16.msra.mxu0 0
    %2646 = vmatprep.subr.bf16.mxu0 0
    %2647 = vmatpush1.bf16.msra.mxu0 0
    %2648 = vmatprep.subr.bf16.mxu0 0
    %2649 = vmatpush1.bf16.msra.mxu0 0
    %2650 = vmatprep.subr.bf16.mxu0 0
    %2651 = vmatpush1.bf16.msra.mxu0 0
    %2652 = vmatprep.subr.bf16.mxu0 0
    %2653 = vmatpush1.bf16.msra.mxu0 0
    %2654 = vmatprep.subr.bf16.mxu0 0
    %2655 = vmatpush1.bf16.msra.mxu0 0
    %2656 = vmatprep.subr.bf16.mxu0 0
    %2657 = vmatpush1.bf16.msra.mxu0 0
    %2658 = vmatprep.subr.bf16.mxu0 0
    %2659 = vmatpush1.bf16.msra.mxu0 0
    %2660 = vmatprep.subr.bf16.mxu0 0
    %2661 = vmatpush1.bf16.msra.mxu0 0
    %2662 = vmatprep.subr.bf16.mxu0 0
    %2663 = vmatpush1.bf16.msra.mxu0 0
    %2664 = vmatprep.subr.bf16.mxu0 0
    %2665 = vmatpush1.bf16.msra.mxu0 0
    %2666 = vmatprep.subr.bf16.mxu0 0
    %2667 = vmatpush1.bf16.msra.mxu0 0
    %2668 = vmatprep.subr.bf16.mxu0 0
    %2669 = vmatpush1.bf16.msra.mxu0 0
    %2670 = vmatprep.subr.bf16.mxu0 0
    %2671 = vmatpush1.bf16.msra.mxu0 0
    %2672 = vmatprep.mubr.bf16.mxu0 0
    %2673 = vmatmul.mubr.bf16.gmra.mrb[0].mxu0 %v2638
    %v2674 = vpop.f32.mrb[0].mxu0
    %v2675 = vadd.f32 0.0, %v2674
    %v2676 = vpop.f32.mrb[0].mxu0
    %v2677 = vpop.f32.mrb[0].mxu0
    %v2678 = vadd.f32 0.0, %v2677
    %v2679 = vpop.f32.mrb[0].mxu0
    %2680 = vdwg.mxu0
    %v2681 = vpack.c.bf16 %v2678, %v2675
    %v2698 = vunpack.c.l.b16 %v2434
    %v2699 = vunpack.c.l.b16 %v2435
    %v2700 = vunpack.c.l.b16 %v2436
    %v2701 = vunpack.c.l.b16 %v2437
    %v2702 = vunpack.c.l.b16 %v2438
    %v2703 = vunpack.c.l.b16 %v2439
    %v2704 = vunpack.c.l.b16 %v2440
    %v2705 = vunpack.c.l.b16 %v2441
    %v2706 = vunpack.c.l.b16 %v2442
    %v2707 = vunpack.c.l.b16 %v2443
    %v2708 = vunpack.c.l.b16 %v2444
    %v2709 = vunpack.c.l.b16 %v2445
    %v2710 = vunpack.c.l.b16 %v2446
    %v2711 = vunpack.c.l.b16 %v2447
    %v2712 = vunpack.c.l.b16 %v2448
    %v2713 = vunpack.c.l.b16 %v2449
    %v2714 = vpack.c.b16 %v2699, %v2698
    %v2715 = vpack.c.b16 %v2701, %v2700
    %v2716 = vpack.c.b16 %v2703, %v2702
    %v2717 = vpack.c.b16 %v2705, %v2704
    %v2718 = vpack.c.b16 %v2707, %v2706
    %v2719 = vpack.c.b16 %v2709, %v2708
    %v2720 = vpack.c.b16 %v2711, %v2710
    %v2721 = vpack.c.b16 %v2713, %v2712
    %2730 = vmatprep.subr.bf16.mxu0 0
    %2731 = vmatpush1.bf16.msra.mxu0 %v2714
    %2732 = vmatprep.subr.bf16.mxu0 0
    %2733 = vmatpush1.bf16.msra.mxu0 %v2715
    %2734 = vmatprep.subr.bf16.mxu0 0
    %2735 = vmatpush1.bf16.msra.mxu0 %v2716
    %2736 = vmatprep.subr.bf16.mxu0 0
    %2737 = vmatpush1.bf16.msra.mxu0 %v2717
    %2738 = vmatprep.subr.bf16.mxu0 0
    %2739 = vmatpush1.bf16.msra.mxu0 %v2718
    %2740 = vmatprep.subr.bf16.mxu0 0
    %2741 = vmatpush1.bf16.msra.mxu0 %v2719
    %2742 = vmatprep.subr.bf16.mxu0 0
    %2743 = vmatpush1.bf16.msra.mxu0 %v2720
    %2744 = vmatprep.subr.bf16.mxu0 0
    %2745 = vmatpush1.bf16.msra.mxu0 %v2721
    %2746 = vmatprep.subr.bf16.mxu0 0
    %2747 = vmatpush1.bf16.msra.mxu0 0
    %2748 = vmatprep.subr.bf16.mxu0 0
    %2749 = vmatpush1.bf16.msra.mxu0 0
    %2750 = vmatprep.subr.bf16.mxu0 0
    %2751 = vmatpush1.bf16.msra.mxu0 0
    %2752 = vmatprep.subr.bf16.mxu0 0
    %2753 = vmatpush1.bf16.msra.mxu0 0
    %2754 = vmatprep.subr.bf16.mxu0 0
    %2755 = vmatpush1.bf16.msra.mxu0 0
    %2756 = vmatprep.subr.bf16.mxu0 0
    %2757 = vmatpush1.bf16.msra.mxu0 0
    %2758 = vmatprep.subr.bf16.mxu0 0
    %2759 = vmatpush1.bf16.msra.mxu0 0
    %2760 = vmatprep.subr.bf16.mxu0 0
    %2761 = vmatpush1.bf16.msra.mxu0 0
    %2762 = vmatprep.mubr.bf16.mxu0 0
    %2763 = vmatmul.mubr.bf16.gmra.mrb[0].mxu0 %v2681
    %v2764 = vpop.f32.mrb[0].mxu0
    %v2765 = vadd.f32 0.0, %v2764
    %v2766 = vpop.f32.mrb[0].mxu0
    %v2767 = vpop.f32.mrb[0].mxu0
    %v2768 = vadd.f32 0.0, %v2767
    %v2769 = vpop.f32.mrb[0].mxu0
    %2770 = vdwg.mxu0
    %v2787 = vunpack.c.l.b16 %v2418
    %v2788 = vunpack.c.l.b16 %v2419
    %v2789 = vunpack.c.l.b16 %v2420
    %v2790 = vunpack.c.l.b16 %v2421
    %v2791 = vunpack.c.l.b16 %v2422
    %v2792 = vunpack.c.l.b16 %v2423
    %v2793 = vunpack.c.l.b16 %v2424
    %v2794 = vunpack.c.l.b16 %v2425
    %v2795 = vunpack.c.l.b16 %v2426
    %v2796 = vunpack.c.l.b16 %v2427
    %v2797 = vunpack.c.l.b16 %v2428
    %v2798 = vunpack.c.l.b16 %v2429
    %v2799 = vunpack.c.l.b16 %v2430
    %v2800 = vunpack.c.l.b16 %v2431
    %v2801 = vunpack.c.l.b16 %v2432
    %v2802 = vunpack.c.l.b16 %v2433
    %v2803 = vpack.c.b16 %v2788, %v2787
    %v2804 = vpack.c.b16 %v2790, %v2789
    %v2805 = vpack.c.b16 %v2792, %v2791
    %v2806 = vpack.c.b16 %v2794, %v2793
    %v2807 = vpack.c.b16 %v2796, %v2795
    %v2808 = vpack.c.b16 %v2798, %v2797
    %v2809 = vpack.c.b16 %v2800, %v2799
    %v2810 = vpack.c.b16 %v2802, %v2801
    %2819 = vmatprep.subr.bf16.mxu0 0
    %2820 = vmatpush1.bf16.msra.mxu0 %v2803
    %2821 = vmatprep.subr.bf16.mxu0 0
    %2822 = vmatpush1.bf16.msra.mxu0 %v2804
    %2823 = vmatprep.subr.bf16.mxu0 0
    %2824 = vmatpush1.bf16.msra.mxu0 %v2805
    %2825 = vmatprep.subr.bf16.mxu0 0
    %2826 = vmatpush1.bf16.msra.mxu0 %v2806
    %2827 = vmatprep.subr.bf16.mxu0 0
    %2828 = vmatpush1.bf16.msra.mxu0 %v2807
    %2829 = vmatprep.subr.bf16.mxu0 0
    %2830 = vmatpush1.bf16.msra.mxu0 %v2808
    %2831 = vmatprep.subr.bf16.mxu0 0
    %2832 = vmatpush1.bf16.msra.mxu0 %v2809
    %2833 = vmatprep.subr.bf16.mxu0 0
    %2834 = vmatpush1.bf16.msra.mxu0 %v2810
    %2835 = vmatprep.subr.bf16.mxu0 0
    %2836 = vmatpush1.bf16.msra.mxu0 0
    %2837 = vmatprep.subr.bf16.mxu0 0
    %2838 = vmatpush1.bf16.msra.mxu0 0
    %2839 = vmatprep.subr.bf16.mxu0 0
    %2840 = vmatpush1.bf16.msra.mxu0 0
    %2841 = vmatprep.subr.bf16.mxu0 0
    %2842 = vmatpush1.bf16.msra.mxu0 0
    %2843 = vmatprep.subr.bf16.mxu0 0
    %2844 = vmatpush1.bf16.msra.mxu0 0
    %2845 = vmatprep.subr.bf16.mxu0 0
    %2846 = vmatpush1.bf16.msra.mxu0 0
    %2847 = vmatprep.subr.bf16.mxu0 0
    %2848 = vmatpush1.bf16.msra.mxu0 0
    %2849 = vmatprep.subr.bf16.mxu0 0
    %2850 = vmatpush1.bf16.msra.mxu0 0
    %2851 = vmatprep.mubr.bf16.mxu0 0
    %2852 = vmatmul.mubr.bf16.gmra.mrb[0].mxu0 %v2565
    %v2853 = vpop.f32.mrb[0].mxu0
    %v2854 = vadd.f32 %v2765, %v2853
    %v2855 = vpop.f32.mrb[0].mxu0
    %v2856 = vpop.f32.mrb[0].mxu0
    %v2857 = vadd.f32 %v2768, %v2856
    %v2858 = vpop.f32.mrb[0].mxu0
    %2859 = vdwg.mxu0
    %s2860 = scalar_lea.vmem %s6, 1
    %v2861 = vld [vmem:[%s2860] sm:$0x1]
    %v2863 = vlaneseq
    %v2864 = vshrl.u32 %v2863, 7
    %v2865 = vsub.s32 0, %v2864
    %v2866 = vrot.slane %v2861, %v2865
    %v2868 = vadd.f32 %v2854, %v2866
    %v2869 = vadd.f32 %v2857, %v2866
    %v2870 = vadd.f32 %v1963, %v2868
    %v2871 = vadd.f32 %v1964, %v2869
    %s2872 = scalar_lea.vmem %s7, 1
    %v2873 = vld [vmem:[%s2872] sm:$0x1]
    %s2874 = scalar_lea.vmem [#allocation12], 1
    %v2875 = vld [vmem:[%s2874] sm:$0x1]
    %2876 = vadd.xlane.f32.xlu0 %v2870
    %v2877 = vpop.xlane.xlu0 %2876
    %2878 = vadd.xlane.f32.xlu0 %v2871
    %v2879 = vpop.xlane.xlu0 %2878
    %v2880 = vmul.f32 %v2877, %v1166
    %v2881 = vmul.f32 %v2879, %v1166
    %v2882 = vsub.f32 %v2870, %v2880
    %v2883 = vsub.f32 %v2871, %v2881
    %v2884 = vmul.f32 %v2882, %v2882
    %v2885 = vmul.f32 %v2883, %v2883
    %2886 = vadd.xlane.f32.xlu0 %v2884
    %v2887 = vpop.xlane.xlu0 %2886
    %2888 = vadd.xlane.f32.xlu0 %v2885
    %v2889 = vpop.xlane.xlu0 %2888
    %v2890 = vmul.f32 %v2887, %v1166
    %v2891 = vmul.f32 %v2889, %v1166
    %v2892 = vadd.f32 %v2890, 1e-12
    %v2893 = vadd.f32 %v2891, 1e-12
    %v2894 = vrsqrt.pop %v2892
    %v2895 = vrsqrt.pop %v2893
    %v2896 = vmul.f32 %v2882, %v2894
    %v2897 = vmul.f32 %v2883, %v2895
    %v2899 = vlaneseq
    %v2900 = vshrl.u32 %v2899, 7
    %v2901 = vsub.s32 0, %v2900
    %v2902 = vrot.slane %v2873, %v2901
    %v2904 = vmul.f32 %v2896, %v2902
    %v2905 = vmul.f32 %v2897, %v2902
    %v2907 = vlaneseq
    %v2908 = vshrl.u32 %v2907, 7
    %v2909 = vsub.s32 0, %v2908
    %v2910 = vrot.slane %v2875, %v2909
    %v2912 = vadd.f32 %v2904, %v2910
    %v2913 = vadd.f32 %v2905, %v2910
    %v2914 = vpack.c.bf16 %v2913, %v2912
    %s2915 = scalar_lea.vmem [#allocation14], 256
    %v2916 = vld [vmem:[%s2915] sm:$0xff]
    %v2917 = vld [vmem:[%s2915 + $0x8] sm:$0xff]
    %v2918 = vld [vmem:[%s2915 + $0x10] sm:$0xff]
    %v2919 = vld [vmem:[%s2915 + $0x18] sm:$0xff]
    %v2920 = vld [vmem:[%s2915 + $0x20] sm:$0xff]
    %v2921 = vld [vmem:[%s2915 + $0x28] sm:$0xff]
    %v2922 = vld [vmem:[%s2915 + $0x30] sm:$0xff]
    %v2923 = vld [vmem:[%s2915 + $0x38] sm:$0xff]
    %v2924 = vld [vmem:[%s2915 + $0x40] sm:$0xff]
    %v2925 = vld [vmem:[%s2915 + $0x48] sm:$0xff]
    %v2926 = vld [vmem:[%s2915 + $0x50] sm:$0xff]
    %v2927 = vld [vmem:[%s2915 + $0x58] sm:$0xff]
    %v2928 = vld [vmem:[%s2915 + $0x60] sm:$0xff]
    %v2929 = vld [vmem:[%s2915 + $0x68] sm:$0xff]
    %v2930 = vld [vmem:[%s2915 + $0x70] sm:$0xff]
    %v2931 = vld [vmem:[%s2915 + $0x78] sm:$0xff]
    %v2932 = vld [vmem:[%s2915 + $0x80] sm:$0xff]
    %v2933 = vld [vmem:[%s2915 + $0x88] sm:$0xff]
    %v2934 = vld [vmem:[%s2915 + $0x90] sm:$0xff]
    %v2935 = vld [vmem:[%s2915 + $0x98] sm:$0xff]
    %v2936 = vld [vmem:[%s2915 + $0xa0] sm:$0xff]
    %v2937 = vld [vmem:[%s2915 + $0xa8] sm:$0xff]
    %v2938 = vld [vmem:[%s2915 + $0xb0] sm:$0xff]
    %v2939 = vld [vmem:[%s2915 + $0xb8] sm:$0xff]
    %v2940 = vld [vmem:[%s2915 + $0xc0] sm:$0xff]
    %v2941 = vld [vmem:[%s2915 + $0xc8] sm:$0xff]
    %v2942 = vld [vmem:[%s2915 + $0xd0] sm:$0xff]
    %v2943 = vld [vmem:[%s2915 + $0xd8] sm:$0xff]
    %v2944 = vld [vmem:[%s2915 + $0xe0] sm:$0xff]
    %v2945 = vld [vmem:[%s2915 + $0xe8] sm:$0xff]
    %v2946 = vld [vmem:[%s2915 + $0xf0] sm:$0xff]
    %v2947 = vld [vmem:[%s2915 + $0xf8] sm:$0xff]
    %s2948 = scalar_lea.vmem [#allocation15], 4
    %v2949 = vld [vmem:[%s2948] sm:$0xf]
    %v2951 = vlaneseq
    %v2952 = vshrl.u32 %v2951, 7
    %v2953 = vsub.s32 0, %v2952
    %v2954 = vrot.slane %v2949, %v2953
    %v2955 = vlaneseq
    %v2956 = vshrl.u32 %v2955, 7
    %v2957 = vsub.s32 1, %v2956
    %v2958 = vrot.slane %v2949, %v2957
    %v2959 = vlaneseq
    %v2960 = vshrl.u32 %v2959, 7
    %v2961 = vsub.s32 2, %v2960
    %v2962 = vrot.slane %v2949, %v2961
    %v2963 = vlaneseq
    %v2964 = vshrl.u32 %v2963, 7
    %v2965 = vsub.s32 3, %v2964
    %v2966 = vrot.slane %v2949, %v2965
    %v3003 = vunpack.c.l.b16 %v2916
    %v3004 = vunpack.c.h.b16 %v2916
    %v3005 = vunpack.c.l.b16 %v2917
    %v3006 = vunpack.c.h.b16 %v2917
    %v3007 = vunpack.c.l.b16 %v2918
    %v3008 = vunpack.c.h.b16 %v2918
    %v3009 = vunpack.c.l.b16 %v2919
    %v3010 = vunpack.c.h.b16 %v2919
    %v3011 = vunpack.c.l.b16 %v2920
    %v3012 = vunpack.c.h.b16 %v2920
    %v3013 = vunpack.c.l.b16 %v2921
    %v3014 = vunpack.c.h.b16 %v2921
    %v3015 = vunpack.c.l.b16 %v2922
    %v3016 = vunpack.c.h.b16 %v2922
    %v3017 = vunpack.c.l.b16 %v2923
    %v3018 = vunpack.c.h.b16 %v2923
    %v3019 = vunpack.c.l.b16 %v2924
    %v3020 = vunpack.c.h.b16 %v2924
    %v3021 = vunpack.c.l.b16 %v2925
    %v3022 = vunpack.c.h.b16 %v2925
    %v3023 = vunpack.c.l.b16 %v2926
    %v3024 = vunpack.c.h.b16 %v2926
    %v3025 = vunpack.c.l.b16 %v2927
    %v3026 = vunpack.c.h.b16 %v2927
    %v3027 = vunpack.c.l.b16 %v2928
    %v3028 = vunpack.c.h.b16 %v2928
    %v3029 = vunpack.c.l.b16 %v2929
    %v3030 = vunpack.c.h.b16 %v2929
    %v3031 = vunpack.c.l.b16 %v2930
    %v3032 = vunpack.c.h.b16 %v2930
    %v3033 = vunpack.c.l.b16 %v2931
    %v3034 = vunpack.c.h.b16 %v2931
    %v3035 = vunpack.c.l.b16 %v2932
    %v3036 = vunpack.c.h.b16 %v2932
    %v3037 = vunpack.c.l.b16 %v2933
    %v3038 = vunpack.c.h.b16 %v2933
    %v3039 = vunpack.c.l.b16 %v2934
    %v3040 = vunpack.c.h.b16 %v2934
    %v3041 = vunpack.c.l.b16 %v2935
    %v3042 = vunpack.c.h.b16 %v2935
    %v3043 = vunpack.c.l.b16 %v2936
    %v3044 = vunpack.c.h.b16 %v2936
    %v3045 = vunpack.c.l.b16 %v2937
    %v3046 = vunpack.c.h.b16 %v2937
    %v3047 = vunpack.c.l.b16 %v2938
    %v3048 = vunpack.c.h.b16 %v2938
    %v3049 = vunpack.c.l.b16 %v2939
    %v3050 = vunpack.c.h.b16 %v2939
    %v3051 = vunpack.c.l.b16 %v2940
    %v3052 = vunpack.c.h.b16 %v2940
    %v3053 = vunpack.c.l.b16 %v2941
    %v3054 = vunpack.c.h.b16 %v2941
    %v3055 = vunpack.c.l.b16 %v2942
    %v3056 = vunpack.c.h.b16 %v2942
    %v3057 = vunpack.c.l.b16 %v2943
    %v3058 = vunpack.c.h.b16 %v2943
    %v3059 = vunpack.c.l.b16 %v2944
    %v3060 = vunpack.c.h.b16 %v2944
    %v3061 = vunpack.c.l.b16 %v2945
    %v3062 = vunpack.c.h.b16 %v2945
    %v3063 = vunpack.c.l.b16 %v2946
    %v3064 = vunpack.c.h.b16 %v2946
    %v3065 = vunpack.c.l.b16 %v2947
    %v3066 = vunpack.c.h.b16 %v2947
    %v3067 = vpack.c.b16 %v3007, %v3003
    %v3068 = vpack.c.b16 %v3008, %v3004
    %v3069 = vpack.c.b16 %v3009, %v3005
    %v3070 = vpack.c.b16 %v3010, %v3006
    %v3071 = vpack.c.b16 %v3015, %v3011
    %v3072 = vpack.c.b16 %v3016, %v3012
    %v3073 = vpack.c.b16 %v3017, %v3013
    %v3074 = vpack.c.b16 %v3018, %v3014
    %v3075 = vpack.c.b16 %v3023, %v3019
    %v3076 = vpack.c.b16 %v3024, %v3020
    %v3077 = vpack.c.b16 %v3025, %v3021
    %v3078 = vpack.c.b16 %v3026, %v3022
    %v3079 = vpack.c.b16 %v3031, %v3027
    %v3080 = vpack.c.b16 %v3032, %v3028
    %v3081 = vpack.c.b16 %v3033, %v3029
    %v3082 = vpack.c.b16 %v3034, %v3030
    %v3083 = vpack.c.b16 %v3039, %v3035
    %v3084 = vpack.c.b16 %v3040, %v3036
    %v3085 = vpack.c.b16 %v3041, %v3037
    %v3086 = vpack.c.b16 %v3042, %v3038
    %v3087 = vpack.c.b16 %v3047, %v3043
    %v3088 = vpack.c.b16 %v3048, %v3044
    %v3089 = vpack.c.b16 %v3049, %v3045
    %v3090 = vpack.c.b16 %v3050, %v3046
    %v3091 = vpack.c.b16 %v3055, %v3051
    %v3092 = vpack.c.b16 %v3056, %v3052
    %v3093 = vpack.c.b16 %v3057, %v3053
    %v3094 = vpack.c.b16 %v3058, %v3054
    %v3095 = vpack.c.b16 %v3063, %v3059
    %v3096 = vpack.c.b16 %v3064, %v3060
    %v3097 = vpack.c.b16 %v3065, %v3061
    %v3098 = vpack.c.b16 %v3066, %v3062
    %3131 = vmatprep.subr.bf16.mxu0 %v3068
    %3132 = vmatpush1.bf16.msra.mxu0 %v3067
    %3133 = vmatprep.subr.bf16.mxu0 %v3072
    %3134 = vmatpush1.bf16.msra.mxu0 %v3071
    %3135 = vmatprep.subr.bf16.mxu0 %v3076
    %3136 = vmatpush1.bf16.msra.mxu0 %v3075
    %3137 = vmatprep.subr.bf16.mxu0 %v3080
    %3138 = vmatpush1.bf16.msra.mxu0 %v3079
    %3139 = vmatprep.subr.bf16.mxu0 %v3084
    %3140 = vmatpush1.bf16.msra.mxu0 %v3083
    %3141 = vmatprep.subr.bf16.mxu0 %v3088
    %3142 = vmatpush1.bf16.msra.mxu0 %v3087
    %3143 = vmatprep.subr.bf16.mxu0 %v3092
    %3144 = vmatpush1.bf16.msra.mxu0 %v3091
    %3145 = vmatprep.subr.bf16.mxu0 %v3096
    %3146 = vmatpush1.bf16.msra.mxu0 %v3095
    %3147 = vmatprep.subr.bf16.mxu0 0
    %3148 = vmatpush1.bf16.msra.mxu0 0
    %3149 = vmatprep.subr.bf16.mxu0 0
    %3150 = vmatpush1.bf16.msra.mxu0 0
    %3151 = vmatprep.subr.bf16.mxu0 0
    %3152 = vmatpush1.bf16.msra.mxu0 0
    %3153 = vmatprep.subr.bf16.mxu0 0
    %3154 = vmatpush1.bf16.msra.mxu0 0
    %3155 = vmatprep.subr.bf16.mxu0 0
    %3156 = vmatpush1.bf16.msra.mxu0 0
    %3157 = vmatprep.subr.bf16.mxu0 0
    %3158 = vmatpush1.bf16.msra.mxu0 0
    %3159 = vmatprep.subr.bf16.mxu0 0
    %3160 = vmatpush1.bf16.msra.mxu0 0
    %3161 = vmatprep.subr.bf16.mxu0 0
    %3162 = vmatpush1.bf16.msra.mxu0 0
    %3163 = vmatprep.mubr.bf16.mxu0 0
    %3164 = vmatmul.mubr.bf16.gmra.mrb[0].mxu0 %v2914
    %v3165 = vpop.f32.mrb[0].mxu0
    %v3166 = vadd.f32 %v2954, %v3165
    %v3167 = vpop.f32.mrb[0].mxu0
    %v3168 = vadd.f32 %v2958, %v3167
    %v3169 = vpop.f32.mrb[0].mxu0
    %v3170 = vadd.f32 %v2954, %v3169
    %v3171 = vpop.f32.mrb[0].mxu0
    %v3172 = vadd.f32 %v2958, %v3171
    %3173 = vdwg.mxu0
    %3174 = vmatprep.subr.bf16.mxu0 %v3070
    %3175 = vmatpush1.bf16.msra.mxu0 %v3069
    %3176 = vmatprep.subr.bf16.mxu0 %v3074
    %3177 = vmatpush1.bf16.msra.mxu0 %v3073
    %3178 = vmatprep.subr.bf16.mxu0 %v3078
    %3179 = vmatpush1.bf16.msra.mxu0 %v3077
    %3180 = vmatprep.subr.bf16.mxu0 %v3082
    %3181 = vmatpush1.bf16.msra.mxu0 %v3081
    %3182 = vmatprep.subr.bf16.mxu0 %v3086
    %3183 = vmatpush1.bf16.msra.mxu0 %v3085
    %3184 = vmatprep.subr.bf16.mxu0 %v3090
    %3185 = vmatpush1.bf16.msra.mxu0 %v3089
    %3186 = vmatprep.subr.bf16.mxu0 %v3094
    %3187 = vmatpush1.bf16.msra.mxu0 %v3093
    %3188 = vmatprep.subr.bf16.mxu0 %v3098
    %3189 = vmatpush1.bf16.msra.mxu0 %v3097
    %3190 = vmatprep.subr.bf16.mxu0 0
    %3191 = vmatpush1.bf16.msra.mxu0 0
    %3192 = vmatprep.subr.bf16.mxu0 0
    %3193 = vmatpush1.bf16.msra.mxu0 0
    %3194 = vmatprep.subr.bf16.mxu0 0
    %3195 = vmatpush1.bf16.msra.mxu0 0
    %3196 = vmatprep.subr.bf16.mxu0 0
    %3197 = vmatpush1.bf16.msra.mxu0 0
    %3198 = vmatprep.subr.bf16.mxu0 0
    %3199 = vmatpush1.bf16.msra.mxu0 0
    %3200 = vmatprep.subr.bf16.mxu0 0
    %3201 = vmatpush1.bf16.msra.mxu0 0
    %3202 = vmatprep.subr.bf16.mxu0 0
    %3203 = vmatpush1.bf16.msra.mxu0 0
    %3204 = vmatprep.subr.bf16.mxu0 0
    %3205 = vmatpush1.bf16.msra.mxu0 0
    %3206 = vmatprep.mubr.bf16.mxu0 0
    %3207 = vmatmul.mubr.bf16.gmra.mrb[0].mxu0 %v2914
    %v3208 = vpop.f32.mrb[0].mxu0
    %v3209 = vadd.f32 %v2962, %v3208
    %v3210 = vpop.f32.mrb[0].mxu0
    %v3211 = vadd.f32 %v2966, %v3210
    %v3212 = vpop.f32.mrb[0].mxu0
    %v3213 = vadd.f32 %v2962, %v3212
    %v3214 = vpop.f32.mrb[0].mxu0
    %v3215 = vadd.f32 %v2966, %v3214
    %3216 = vdwg.mxu0
    %v3217 = vmul.f32 %v3166, 0.5
    %v3218 = vmul.f32 %v3168, 0.5
    %v3219 = vmul.f32 %v3209, 0.5
    %v3220 = vmul.f32 %v3211, 0.5
    %v3221 = vmul.f32 %v3170, 0.5
    %v3222 = vmul.f32 %v3172, 0.5
    %v3223 = vmul.f32 %v3213, 0.5
    %v3224 = vmul.f32 %v3215, 0.5
    %v3225 = vmul.f32 %v3166, 0.044715
    %v3226 = vmul.f32 %v3168, 0.044715
    %v3227 = vmul.f32 %v3209, 0.044715
    %v3228 = vmul.f32 %v3211, 0.044715
    %v3229 = vmul.f32 %v3170, 0.044715
    %v3230 = vmul.f32 %v3172, 0.044715
    %v3231 = vmul.f32 %v3213, 0.044715
    %v3232 = vmul.f32 %v3215, 0.044715
    %v3233 = vmul.f32 %v3225, %v3166
    %v3234 = vmul.f32 %v3226, %v3168
    %v3235 = vmul.f32 %v3227, %v3209
    %v3236 = vmul.f32 %v3228, %v3211
    %v3237 = vmul.f32 %v3229, %v3170
    %v3238 = vmul.f32 %v3230, %v3172
    %v3239 = vmul.f32 %v3231, %v3213
    %v3240 = vmul.f32 %v3232, %v3215
    %v3241 = vmul.f32 %v3233, %v3166
    %v3242 = vmul.f32 %v3234, %v3168
    %v3243 = vmul.f32 %v3235, %v3209
    %v3244 = vmul.f32 %v3236, %v3211
    %v3245 = vmul.f32 %v3237, %v3170
    %v3246 = vmul.f32 %v3238, %v3172
    %v3247 = vmul.f32 %v3239, %v3213
    %v3248 = vmul.f32 %v3240, %v3215
    %v3249 = vadd.f32 %v3166, %v3241
    %v3250 = vadd.f32 %v3168, %v3242
    %v3251 = vadd.f32 %v3209, %v3243
    %v3252 = vadd.f32 %v3211, %v3244
    %v3253 = vadd.f32 %v3170, %v3245
    %v3254 = vadd.f32 %v3172, %v3246
    %v3255 = vadd.f32 %v3213, %v3247
    %v3256 = vadd.f32 %v3215, %v3248
    %v3257 = vmul.f32 %v3249, 0.7978846
    %v3258 = vmul.f32 %v3250, 0.7978846
    %v3259 = vmul.f32 %v3251, 0.7978846
    %v3260 = vmul.f32 %v3252, 0.7978846
    %v3261 = vmul.f32 %v3253, 0.7978846
    %v3262 = vmul.f32 %v3254, 0.7978846
    %v3263 = vmul.f32 %v3255, 0.7978846
    %v3264 = vmul.f32 %v3256, 0.7978846
    %v3265 = vtanh.pop %v3257
    %v3266 = vtanh.pop %v3258
    %v3267 = vtanh.pop %v3259
    %v3268 = vtanh.pop %v3260
    %v3269 = vtanh.pop %v3261
    %v3270 = vtanh.pop %v3262
    %v3271 = vtanh.pop %v3263
    %v3272 = vtanh.pop %v3264
    %v3273 = vadd.f32 %v3265, 1.0
    %v3274 = vadd.f32 %v3266, 1.0
    %v3275 = vadd.f32 %v3267, 1.0
    %v3276 = vadd.f32 %v3268, 1.0
    %v3277 = vadd.f32 %v3269, 1.0
    %v3278 = vadd.f32 %v3270, 1.0
    %v3279 = vadd.f32 %v3271, 1.0
    %v3280 = vadd.f32 %v3272, 1.0
    %v3281 = vmul.f32 %v3217, %v3273
    %v3282 = vmul.f32 %v3218, %v3274
    %v3283 = vmul.f32 %v3219, %v3275
    %v3284 = vmul.f32 %v3220, %v3276
    %v3285 = vmul.f32 %v3221, %v3277
    %v3286 = vmul.f32 %v3222, %v3278
    %v3287 = vmul.f32 %v3223, %v3279
    %v3288 = vmul.f32 %v3224, %v3280
    %v3289 = vpack.c.bf16 %v3285, %v3281
    %v3290 = vpack.c.bf16 %v3286, %v3282
    %v3291 = vpack.c.bf16 %v3287, %v3283
    %v3292 = vpack.c.bf16 %v3288, %v3284
    %s3293 = scalar_lea.vmem [#allocation17], 256
    %v3294 = vld [vmem:[%s3293] sm:$0xf]
    %v3295 = vld [vmem:[%s3293 + $0x4] sm:$0xf]
    %v3296 = vld [vmem:[%s3293 + $0x8] sm:$0xf]
    %v3297 = vld [vmem:[%s3293 + $0xc] sm:$0xf]
    %v3298 = vld [vmem:[%s3293 + $0x10] sm:$0xf]
    %v3299 = vld [vmem:[%s3293 + $0x14] sm:$0xf]
    %v3300 = vld [vmem:[%s3293 + $0x18] sm:$0xf]
    %v3301 = vld [vmem:[%s3293 + $0x1c] sm:$0xf]
    %v3302 = vld [vmem:[%s3293 + $0x20] sm:$0xf]
    %v3303 = vld [vmem:[%s3293 + $0x24] sm:$0xf]
    %v3304 = vld [vmem:[%s3293 + $0x28] sm:$0xf]
    %v3305 = vld [vmem:[%s3293 + $0x2c] sm:$0xf]
    %v3306 = vld [vmem:[%s3293 + $0x30] sm:$0xf]
    %v3307 = vld [vmem:[%s3293 + $0x34] sm:$0xf]
    %v3308 = vld [vmem:[%s3293 + $0x38] sm:$0xf]
    %v3309 = vld [vmem:[%s3293 + $0x3c] sm:$0xf]
    %v3310 = vld [vmem:[%s3293 + $0x40] sm:$0xf]
    %v3311 = vld [vmem:[%s3293 + $0x44] sm:$0xf]
    %v3312 = vld [vmem:[%s3293 + $0x48] sm:$0xf]
    %v3313 = vld [vmem:[%s3293 + $0x4c] sm:$0xf]
    %v3314 = vld [vmem:[%s3293 + $0x50] sm:$0xf]
    %v3315 = vld [vmem:[%s3293 + $0x54] sm:$0xf]
    %v3316 = vld [vmem:[%s3293 + $0x58] sm:$0xf]
    %v3317 = vld [vmem:[%s3293 + $0x5c] sm:$0xf]
    %v3318 = vld [vmem:[%s3293 + $0x60] sm:$0xf]
    %v3319 = vld [vmem:[%s3293 + $0x64] sm:$0xf]
    %v3320 = vld [vmem:[%s3293 + $0x68] sm:$0xf]
    %v3321 = vld [vmem:[%s3293 + $0x6c] sm:$0xf]
    %v3322 = vld [vmem:[%s3293 + $0x70] sm:$0xf]
    %v3323 = vld [vmem:[%s3293 + $0x74] sm:$0xf]
    %v3324 = vld [vmem:[%s3293 + $0x78] sm:$0xf]
    %v3325 = vld [vmem:[%s3293 + $0x7c] sm:$0xf]
    %v3326 = vld [vmem:[%s3293 + $0x80] sm:$0xf]
    %v3327 = vld [vmem:[%s3293 + $0x84] sm:$0xf]
    %v3328 = vld [vmem:[%s3293 + $0x88] sm:$0xf]
    %v3329 = vld [vmem:[%s3293 + $0x8c] sm:$0xf]
    %v3330 = vld [vmem:[%s3293 + $0x90] sm:$0xf]
    %v3331 = vld [vmem:[%s3293 + $0x94] sm:$0xf]
    %v3332 = vld [vmem:[%s3293 + $0x98] sm:$0xf]
    %v3333 = vld [vmem:[%s3293 + $0x9c] sm:$0xf]
    %v3334 = vld [vmem:[%s3293 + $0xa0] sm:$0xf]
    %v3335 = vld [vmem:[%s3293 + $0xa4] sm:$0xf]
    %v3336 = vld [vmem:[%s3293 + $0xa8] sm:$0xf]
    %v3337 = vld [vmem:[%s3293 + $0xac] sm:$0xf]
    %v3338 = vld [vmem:[%s3293 + $0xb0] sm:$0xf]
    %v3339 = vld [vmem:[%s3293 + $0xb4] sm:$0xf]
    %v3340 = vld [vmem:[%s3293 + $0xb8] sm:$0xf]
    %v3341 = vld [vmem:[%s3293 + $0xbc] sm:$0xf]
    %v3342 = vld [vmem:[%s3293 + $0xc0] sm:$0xf]
    %v3343 = vld [vmem:[%s3293 + $0xc4] sm:$0xf]
    %v3344 = vld [vmem:[%s3293 + $0xc8] sm:$0xf]
    %v3345 = vld [vmem:[%s3293 + $0xcc] sm:$0xf]
    %v3346 = vld [vmem:[%s3293 + $0xd0] sm:$0xf]
    %v3347 = vld [vmem:[%s3293 + $0xd4] sm:$0xf]
    %v3348 = vld [vmem:[%s3293 + $0xd8] sm:$0xf]
    %v3349 = vld [vmem:[%s3293 + $0xdc] sm:$0xf]
    %v3350 = vld [vmem:[%s3293 + $0xe0] sm:$0xf]
    %v3351 = vld [vmem:[%s3293 + $0xe4] sm:$0xf]
    %v3352 = vld [vmem:[%s3293 + $0xe8] sm:$0xf]
    %v3353 = vld [vmem:[%s3293 + $0xec] sm:$0xf]
    %v3354 = vld [vmem:[%s3293 + $0xf0] sm:$0xf]
    %v3355 = vld [vmem:[%s3293 + $0xf4] sm:$0xf]
    %v3356 = vld [vmem:[%s3293 + $0xf8] sm:$0xf]
    %v3357 = vld [vmem:[%s3293 + $0xfc] sm:$0xf]
    %s3358 = scalar_lea.vmem [#allocation18], 1
    %v3359 = vld [vmem:[%s3358] sm:$0x1]
    %v3361 = vlaneseq
    %v3362 = vshrl.u32 %v3361, 7
    %v3363 = vsub.s32 0, %v3362
    %v3364 = vrot.slane %v3359, %v3363
    %v3430 = vunpack.c.l.b16 %v3294
    %v3431 = vunpack.c.l.b16 %v3295
    %v3432 = vunpack.c.l.b16 %v3296
    %v3433 = vunpack.c.l.b16 %v3297
    %v3434 = vunpack.c.l.b16 %v3298
    %v3435 = vunpack.c.l.b16 %v3299
    %v3436 = vunpack.c.l.b16 %v3300
    %v3437 = vunpack.c.l.b16 %v3301
    %v3438 = vunpack.c.l.b16 %v3302
    %v3439 = vunpack.c.l.b16 %v3303
    %v3440 = vunpack.c.l.b16 %v3304
    %v3441 = vunpack.c.l.b16 %v3305
    %v3442 = vunpack.c.l.b16 %v3306
    %v3443 = vunpack.c.l.b16 %v3307
    %v3444 = vunpack.c.l.b16 %v3308
    %v3445 = vunpack.c.l.b16 %v3309
    %v3446 = vunpack.c.l.b16 %v3310
    %v3447 = vunpack.c.l.b16 %v3311
    %v3448 = vunpack.c.l.b16 %v3312
    %v3449 = vunpack.c.l.b16 %v3313
    %v3450 = vunpack.c.l.b16 %v3314
    %v3451 = vunpack.c.l.b16 %v3315
    %v3452 = vunpack.c.l.b16 %v3316
    %v3453 = vunpack.c.l.b16 %v3317
    %v3454 = vunpack.c.l.b16 %v3318
    %v3455 = vunpack.c.l.b16 %v3319
    %v3456 = vunpack.c.l.b16 %v3320
    %v3457 = vunpack.c.l.b16 %v3321
    %v3458 = vunpack.c.l.b16 %v3322
    %v3459 = vunpack.c.l.b16 %v3323
    %v3460 = vunpack.c.l.b16 %v3324
    %v3461 = vunpack.c.l.b16 %v3325
    %v3462 = vunpack.c.l.b16 %v3326
    %v3463 = vunpack.c.l.b16 %v3327
    %v3464 = vunpack.c.l.b16 %v3328
    %v3465 = vunpack.c.l.b16 %v3329
    %v3466 = vunpack.c.l.b16 %v3330
    %v3467 = vunpack.c.l.b16 %v3331
    %v3468 = vunpack.c.l.b16 %v3332
    %v3469 = vunpack.c.l.b16 %v3333
    %v3470 = vunpack.c.l.b16 %v3334
    %v3471 = vunpack.c.l.b16 %v3335
    %v3472 = vunpack.c.l.b16 %v3336
    %v3473 = vunpack.c.l.b16 %v3337
    %v3474 = vunpack.c.l.b16 %v3338
    %v3475 = vunpack.c.l.b16 %v3339
    %v3476 = vunpack.c.l.b16 %v3340
    %v3477 = vunpack.c.l.b16 %v3341
    %v3478 = vunpack.c.l.b16 %v3342
    %v3479 = vunpack.c.l.b16 %v3343
    %v3480 = vunpack.c.l.b16 %v3344
    %v3481 = vunpack.c.l.b16 %v3345
    %v3482 = vunpack.c.l.b16 %v3346
    %v3483 = vunpack.c.l.b16 %v3347
    %v3484 = vunpack.c.l.b16 %v3348
    %v3485 = vunpack.c.l.b16 %v3349
    %v3486 = vunpack.c.l.b16 %v3350
    %v3487 = vunpack.c.l.b16 %v3351
    %v3488 = vunpack.c.l.b16 %v3352
    %v3489 = vunpack.c.l.b16 %v3353
    %v3490 = vunpack.c.l.b16 %v3354
    %v3491 = vunpack.c.l.b16 %v3355
    %v3492 = vunpack.c.l.b16 %v3356
    %v3493 = vunpack.c.l.b16 %v3357
    %v3494 = vpack.c.b16 %v3431, %v3430
    %v3495 = vpack.c.b16 %v3433, %v3432
    %v3496 = vpack.c.b16 %v3435, %v3434
    %v3497 = vpack.c.b16 %v3437, %v3436
    %v3498 = vpack.c.b16 %v3439, %v3438
    %v3499 = vpack.c.b16 %v3441, %v3440
    %v3500 = vpack.c.b16 %v3443, %v3442
    %v3501 = vpack.c.b16 %v3445, %v3444
    %v3502 = vpack.c.b16 %v3447, %v3446
    %v3503 = vpack.c.b16 %v3449, %v3448
    %v3504 = vpack.c.b16 %v3451, %v3450
    %v3505 = vpack.c.b16 %v3453, %v3452
    %v3506 = vpack.c.b16 %v3455, %v3454
    %v3507 = vpack.c.b16 %v3457, %v3456
    %v3508 = vpack.c.b16 %v3459, %v3458
    %v3509 = vpack.c.b16 %v3461, %v3460
    %v3510 = vpack.c.b16 %v3463, %v3462
    %v3511 = vpack.c.b16 %v3465, %v3464
    %v3512 = vpack.c.b16 %v3467, %v3466
    %v3513 = vpack.c.b16 %v3469, %v3468
    %v3514 = vpack.c.b16 %v3471, %v3470
    %v3515 = vpack.c.b16 %v3473, %v3472
    %v3516 = vpack.c.b16 %v3475, %v3474
    %v3517 = vpack.c.b16 %v3477, %v3476
    %v3518 = vpack.c.b16 %v3479, %v3478
    %v3519 = vpack.c.b16 %v3481, %v3480
    %v3520 = vpack.c.b16 %v3483, %v3482
    %v3521 = vpack.c.b16 %v3485, %v3484
    %v3522 = vpack.c.b16 %v3487, %v3486
    %v3523 = vpack.c.b16 %v3489, %v3488
    %v3524 = vpack.c.b16 %v3491, %v3490
    %v3525 = vpack.c.b16 %v3493, %v3492
    %3558 = vmatprep.subr.bf16.mxu0 0
    %3559 = vmatpush1.bf16.msra.mxu0 %v3494
    %3560 = vmatprep.subr.bf16.mxu0 0
    %3561 = vmatpush1.bf16.msra.mxu0 %v3495
    %3562 = vmatprep.subr.bf16.mxu0 0
    %3563 = vmatpush1.bf16.msra.mxu0 %v3496
    %3564 = vmatprep.subr.bf16.mxu0 0
    %3565 = vmatpush1.bf16.msra.mxu0 %v3497
    %3566 = vmatprep.subr.bf16.mxu0 0
    %3567 = vmatpush1.bf16.msra.mxu0 %v3498
    %3568 = vmatprep.subr.bf16.mxu0 0
    %3569 = vmatpush1.bf16.msra.mxu0 %v3499
    %3570 = vmatprep.subr.bf16.mxu0 0
    %3571 = vmatpush1.bf16.msra.mxu0 %v3500
    %3572 = vmatprep.subr.bf16.mxu0 0
    %3573 = vmatpush1.bf16.msra.mxu0 %v3501
    %3574 = vmatprep.subr.bf16.mxu0 0
    %3575 = vmatpush1.bf16.msra.mxu0 %v3502
    %3576 = vmatprep.subr.bf16.mxu0 0
    %3577 = vmatpush1.bf16.msra.mxu0 %v3503
    %3578 = vmatprep.subr.bf16.mxu0 0
    %3579 = vmatpush1.bf16.msra.mxu0 %v3504
    %3580 = vmatprep.subr.bf16.mxu0 0
    %3581 = vmatpush1.bf16.msra.mxu0 %v3505
    %3582 = vmatprep.subr.bf16.mxu0 0
    %3583 = vmatpush1.bf16.msra.mxu0 %v3506
    %3584 = vmatprep.subr.bf16.mxu0 0
    %3585 = vmatpush1.bf16.msra.mxu0 %v3507
    %3586 = vmatprep.subr.bf16.mxu0 0
    %3587 = vmatpush1.bf16.msra.mxu0 %v3508
    %3588 = vmatprep.subr.bf16.mxu0 0
    %3589 = vmatpush1.bf16.msra.mxu0 %v3509
    %3590 = vmatprep.mubr.bf16.mxu0 %v3290
    %3591 = vmatmul.mubr.bf16.gmra.mrb[0].mxu0 %v3289
    %v3592 = vpop.f32.mrb[0].mxu0
    %v3593 = vadd.f32 %v3364, %v3592
    %v3594 = vpop.f32.mrb[0].mxu0
    %v3595 = vpop.f32.mrb[0].mxu0
    %v3596 = vadd.f32 %v3364, %v3595
    %v3597 = vpop.f32.mrb[0].mxu0
    %3598 = vdwg.mxu0
    %3599 = vmatprep.subr.bf16.mxu0 0
    %3600 = vmatpush1.bf16.msra.mxu0 %v3510
    %3601 = vmatprep.subr.bf16.mxu0 0
    %3602 = vmatpush1.bf16.msra.mxu0 %v3511
    %3603 = vmatprep.subr.bf16.mxu0 0
    %3604 = vmatpush1.bf16.msra.mxu0 %v3512
    %3605 = vmatprep.subr.bf16.mxu0 0
    %3606 = vmatpush1.bf16.msra.mxu0 %v3513
    %3607 = vmatprep.subr.bf16.mxu0 0
    %3608 = vmatpush1.bf16.msra.mxu0 %v3514
    %3609 = vmatprep.subr.bf16.mxu0 0
    %3610 = vmatpush1.bf16.msra.mxu0 %v3515
    %3611 = vmatprep.subr.bf16.mxu0 0
    %3612 = vmatpush1.bf16.msra.mxu0 %v3516
    %3613 = vmatprep.subr.bf16.mxu0 0
    %3614 = vmatpush1.bf16.msra.mxu0 %v3517
    %3615 = vmatprep.subr.bf16.mxu0 0
    %3616 = vmatpush1.bf16.msra.mxu0 %v3518
    %3617 = vmatprep.subr.bf16.mxu0 0
    %3618 = vmatpush1.bf16.msra.mxu0 %v3519
    %3619 = vmatprep.subr.bf16.mxu0 0
    %3620 = vmatpush1.bf16.msra.mxu0 %v3520
    %3621 = vmatprep.subr.bf16.mxu0 0
    %3622 = vmatpush1.bf16.msra.mxu0 %v3521
    %3623 = vmatprep.subr.bf16.mxu0 0
    %3624 = vmatpush1.bf16.msra.mxu0 %v3522
    %3625 = vmatprep.subr.bf16.mxu0 0
    %3626 = vmatpush1.bf16.msra.mxu0 %v3523
    %3627 = vmatprep.subr.bf16.mxu0 0
    %3628 = vmatpush1.bf16.msra.mxu0 %v3524
    %3629 = vmatprep.subr.bf16.mxu0 0
    %3630 = vmatpush1.bf16.msra.mxu0 %v3525
    %3631 = vmatprep.mubr.bf16.mxu0 %v3292
    %3632 = vmatmul.mubr.bf16.gmra.mrb[0].mxu0 %v3291
    %v3633 = vpop.f32.mrb[0].mxu0
    %v3634 = vadd.f32 %v3593, %v3633
    %v3635 = vpop.f32.mrb[0].mxu0
    %v3636 = vpop.f32.mrb[0].mxu0
    %v3637 = vadd.f32 %v3596, %v3636
    %v3638 = vpop.f32.mrb[0].mxu0
    %3639 = vdwg.mxu0
    %v3640 = vadd.f32 %v2912, %v3634
    %v3641 = vadd.f32 %v2913, %v3637
    %s3642 = scalar_lea.vmem [#allocation20], 1
    %v3643 = vld [vmem:[%s3642] sm:$0x1]
    %s3644 = scalar_lea.vmem [#allocation21], 1
    %v3645 = vld [vmem:[%s3644] sm:$0x1]
    %3646 = vadd.xlane.f32.xlu0 %v3640
    %v3647 = vpop.xlane.xlu0 %3646
    %3648 = vadd.xlane.f32.xlu0 %v3641
    %v3649 = vpop.xlane.xlu0 %3648
    %v3650 = vmul.f32 %v3647, %v1166
    %v3651 = vmul.f32 %v3649, %v1166
    %v3652 = vsub.f32 %v3640, %v3650
    %v3653 = vsub.f32 %v3641, %v3651
    %v3654 = vmul.f32 %v3652, %v3652
    %v3655 = vmul.f32 %v3653, %v3653
    %3656 = vadd.xlane.f32.xlu0 %v3654
    %v3657 = vpop.xlane.xlu0 %3656
    %3658 = vadd.xlane.f32.xlu0 %v3655
    %v3659 = vpop.xlane.xlu0 %3658
    %v3660 = vmul.f32 %v3657, %v1166
    %v3661 = vmul.f32 %v3659, %v1166
    %v3662 = vadd.f32 %v3660, 1e-12
    %v3663 = vadd.f32 %v3661, 1e-12
    %v3664 = vrsqrt.pop %v3662
    %v3665 = vrsqrt.pop %v3663
    %v3666 = vmul.f32 %v3652, %v3664
    %v3667 = vmul.f32 %v3653, %v3665
    %v3669 = vlaneseq
    %v3670 = vshrl.u32 %v3669, 7
    %v3671 = vsub.s32 0, %v3670
    %v3672 = vrot.slane %v3643, %v3671
    %v3674 = vmul.f32 %v3666, %v3672
    %v3675 = vmul.f32 %v3667, %v3672
    %v3677 = vlaneseq
    %v3678 = vshrl.u32 %v3677, 7
    %v3679 = vsub.s32 0, %v3678
    %v3680 = vrot.slane %v3645, %v3679
    %v3682 = vadd.f32 %v3674, %v3680
    %v3683 = vadd.f32 %v3675, %v3680
    %3684 = vst [vmem:[#allocation2] sm:$0xff] %v3682
    %3685 = vst [vmem:[#allocation2 + $0x8] sm:$0xff] %v3683
    %v3686 = vld [vmem:[#allocation2] ss:$8 sm:$0x3]
    %v3687 = vpack.c.bf16 %v3686, %v3686
    %v3688 = vld [vmem:[#allocation23] sm:$0xf]
    %v3689 = vld [vmem:[#allocation23 + $0x4] sm:$0xf]
    %v3690 = vld [vmem:[#allocation23 + $0x8] sm:$0xf]
    %v3691 = vld [vmem:[#allocation23 + $0xc] sm:$0xf]
    %v3692 = vld [vmem:[#allocation23 + $0x10] sm:$0xf]
    %v3693 = vld [vmem:[#allocation23 + $0x14] sm:$0xf]
    %v3694 = vld [vmem:[#allocation23 + $0x18] sm:$0xf]
    %v3695 = vld [vmem:[#allocation23 + $0x1c] sm:$0xf]
    %v3696 = vld [vmem:[#allocation23 + $0x20] sm:$0xf]
    %v3697 = vld [vmem:[#allocation23 + $0x24] sm:$0xf]
    %v3698 = vld [vmem:[#allocation23 + $0x28] sm:$0xf]
    %v3699 = vld [vmem:[#allocation23 + $0x2c] sm:$0xf]
    %v3700 = vld [vmem:[#allocation23 + $0x30] sm:$0xf]
    %v3701 = vld [vmem:[#allocation23 + $0x34] sm:$0xf]
    %v3702 = vld [vmem:[#allocation23 + $0x38] sm:$0xf]
    %v3703 = vld [vmem:[#allocation23 + $0x3c] sm:$0xf]
    %v3704 = vld [vmem:[#allocation24] sm:$0x1]
    %v3706 = vlaneseq
    %v3707 = vshrl.u32 %v3706, 7
    %v3708 = vsub.s32 0, %v3707
    %v3709 = vrot.slane %v3704, %v3708
    %v3727 = vunpack.c.l.b16 %v3688
    %v3728 = vunpack.c.l.b16 %v3689
    %v3729 = vunpack.c.l.b16 %v3690
    %v3730 = vunpack.c.l.b16 %v3691
    %v3731 = vunpack.c.l.b16 %v3692
    %v3732 = vunpack.c.l.b16 %v3693
    %v3733 = vunpack.c.l.b16 %v3694
    %v3734 = vunpack.c.l.b16 %v3695
    %v3735 = vunpack.c.l.b16 %v3696
    %v3736 = vunpack.c.l.b16 %v3697
    %v3737 = vunpack.c.l.b16 %v3698
    %v3738 = vunpack.c.l.b16 %v3699
    %v3739 = vunpack.c.l.b16 %v3700
    %v3740 = vunpack.c.l.b16 %v3701
    %v3741 = vunpack.c.l.b16 %v3702
    %v3742 = vunpack.c.l.b16 %v3703
    %v3743 = vpack.c.b16 %v3728, %v3727
    %v3744 = vpack.c.b16 %v3730, %v3729
    %v3745 = vpack.c.b16 %v3732, %v3731
    %v3746 = vpack.c.b16 %v3734, %v3733
    %v3747 = vpack.c.b16 %v3736, %v3735
    %v3748 = vpack.c.b16 %v3738, %v3737
    %v3749 = vpack.c.b16 %v3740, %v3739
    %v3750 = vpack.c.b16 %v3742, %v3741
    %3759 = vmatprep.subr.bf16.mxu0 0
    %3760 = vmatpush1.bf16.msra.mxu0 %v3743
    %3761 = vmatprep.subr.bf16.mxu0 0
    %3762 = vmatpush1.bf16.msra.mxu0 %v3744
    %3763 = vmatprep.subr.bf16.mxu0 0
    %3764 = vmatpush1.bf16.msra.mxu0 %v3745
    %3765 = vmatprep.subr.bf16.mxu0 0
    %3766 = vmatpush1.bf16.msra.mxu0 %v3746
    %3767 = vmatprep.subr.bf16.mxu0 0
    %3768 = vmatpush1.bf16.msra.mxu0 %v3747
    %3769 = vmatprep.subr.bf16.mxu0 0
    %3770 = vmatpush1.bf16.msra.mxu0 %v3748
    %3771 = vmatprep.subr.bf16.mxu0 0
    %3772 = vmatpush1.bf16.msra.mxu0 %v3749
    %3773 = vmatprep.subr.bf16.mxu0 0
    %3774 = vmatpush1.bf16.msra.mxu0 %v3750
    %3775 = vmatprep.subr.bf16.mxu0 0
    %3776 = vmatpush1.bf16.msra.mxu0 0
    %3777 = vmatprep.subr.bf16.mxu0 0
    %3778 = vmatpush1.bf16.msra.mxu0 0
    %3779 = vmatprep.subr.bf16.mxu0 0
    %3780 = vmatpush1.bf16.msra.mxu0 0
    %3781 = vmatprep.subr.bf16.mxu0 0
    %3782 = vmatpush1.bf16.msra.mxu0 0
    %3783 = vmatprep.subr.bf16.mxu0 0
    %3784 = vmatpush1.bf16.msra.mxu0 0
    %3785 = vmatprep.subr.bf16.mxu0 0
    %3786 = vmatpush1.bf16.msra.mxu0 0
    %3787 = vmatprep.subr.bf16.mxu0 0
    %3788 = vmatpush1.bf16.msra.mxu0 0
    %3789 = vmatprep.subr.bf16.mxu0 0
    %3790 = vmatpush1.bf16.msra.mxu0 0
    %3791 = vmatprep.mubr.bf16.mxu0 0
    %3792 = vmatmul.mubr.bf16.gmra.mrb[0].mxu0 %v3687
    %v3793 = vpop.f32.mrb[0].mxu0
    %v3794 = vadd.f32 %v3709, %v3793
    %v3795 = vpop.f32.mrb[0].mxu0
    %v3796 = vpop.f32.mrb[0].mxu0
    %v3797 = vpop.f32.mrb[0].mxu0
    %3798 = vdwg.mxu0
    %v3799 = vtanh.pop %v3794
    %v3800 = vpack.c.bf16 %v3799, %v3799
    %v3801 = vld [vmem:[%s17] sm:$0xf]
    %v3802 = vld [vmem:[%s17 + $0x4] sm:$0xf]
    %v3803 = vld [vmem:[%s17 + $0x8] sm:$0xf]
    %v3804 = vld [vmem:[%s17 + $0xc] sm:$0xf]
    %v3805 = vld [vmem:[%s17 + $0x10] sm:$0xf]
    %v3806 = vld [vmem:[%s17 + $0x14] sm:$0xf]
    %v3807 = vld [vmem:[%s17 + $0x18] sm:$0xf]
    %v3808 = vld [vmem:[%s17 + $0x1c] sm:$0xf]
    %v3809 = vld [vmem:[%s17 + $0x20] sm:$0xf]
    %v3810 = vld [vmem:[%s17 + $0x24] sm:$0xf]
    %v3811 = vld [vmem:[%s17 + $0x28] sm:$0xf]
    %v3812 = vld [vmem:[%s17 + $0x2c] sm:$0xf]
    %v3813 = vld [vmem:[%s17 + $0x30] sm:$0xf]
    %v3814 = vld [vmem:[%s17 + $0x34] sm:$0xf]
    %v3815 = vld [vmem:[%s17 + $0x38] sm:$0xf]
    %v3816 = vld [vmem:[%s17 + $0x3c] sm:$0xf]
    %v3817 = vld [vmem:[%s18] sm:$0x1]
    %v3819 = vlaneseq
    %v3820 = vshrl.u32 %v3819, 7
    %v3821 = vsub.s32 0, %v3820
    %v3822 = vrot.slane %v3817, %v3821
    %v3840 = vunpack.c.l.b16 %v3801
    %v3841 = vunpack.c.l.b16 %v3802
    %v3842 = vunpack.c.l.b16 %v3803
    %v3843 = vunpack.c.l.b16 %v3804
    %v3844 = vunpack.c.l.b16 %v3805
    %v3845 = vunpack.c.l.b16 %v3806
    %v3846 = vunpack.c.l.b16 %v3807
    %v3847 = vunpack.c.l.b16 %v3808
    %v3848 = vunpack.c.l.b16 %v3809
    %v3849 = vunpack.c.l.b16 %v3810
    %v3850 = vunpack.c.l.b16 %v3811
    %v3851 = vunpack.c.l.b16 %v3812
    %v3852 = vunpack.c.l.b16 %v3813
    %v3853 = vunpack.c.l.b16 %v3814
    %v3854 = vunpack.c.l.b16 %v3815
    %v3855 = vunpack.c.l.b16 %v3816
    %v3856 = vpack.c.b16 %v3841, %v3840
    %v3857 = vpack.c.b16 %v3843, %v3842
    %v3858 = vpack.c.b16 %v3845, %v3844
    %v3859 = vpack.c.b16 %v3847, %v3846
    %v3860 = vpack.c.b16 %v3849, %v3848
    %v3861 = vpack.c.b16 %v3851, %v3850
    %v3862 = vpack.c.b16 %v3853, %v3852
    %v3863 = vpack.c.b16 %v3855, %v3854
    %3872 = vmatprep.subr.bf16.mxu0 0
    %3873 = vmatpush1.bf16.msra.mxu0 %v3856
    %3874 = vmatprep.subr.bf16.mxu0 0
    %3875 = vmatpush1.bf16.msra.mxu0 %v3857
    %3876 = vmatprep.subr.bf16.mxu0 0
    %3877 = vmatpush1.bf16.msra.mxu0 %v3858
    %3878 = vmatprep.subr.bf16.mxu0 0
    %3879 = vmatpush1.bf16.msra.mxu0 %v3859
    %3880 = vmatprep.subr.bf16.mxu0 0
    %3881 = vmatpush1.bf16.msra.mxu0 %v3860
    %3882 = vmatprep.subr.bf16.mxu0 0
    %3883 = vmatpush1.bf16.msra.mxu0 %v3861
    %3884 = vmatprep.subr.bf16.mxu0 0
    %3885 = vmatpush1.bf16.msra.mxu0 %v3862
    %3886 = vmatprep.subr.bf16.mxu0 0
    %3887 = vmatpush1.bf16.msra.mxu0 %v3863
    %3888 = vmatprep.subr.bf16.mxu0 0
    %3889 = vmatpush1.bf16.msra.mxu0 0
    %3890 = vmatprep.subr.bf16.mxu0 0
    %3891 = vmatpush1.bf16.msra.mxu0 0
    %3892 = vmatprep.subr.bf16.mxu0 0
    %3893 = vmatpush1.bf16.msra.mxu0 0
    %3894 = vmatprep.subr.bf16.mxu0 0
    %3895 = vmatpush1.bf16.msra.mxu0 0
    %3896 = vmatprep.subr.bf16.mxu0 0
    %3897 = vmatpush1.bf16.msra.mxu0 0
    %3898 = vmatprep.subr.bf16.mxu0 0
    %3899 = vmatpush1.bf16.msra.mxu0 0
    %3900 = vmatprep.subr.bf16.mxu0 0
    %3901 = vmatpush1.bf16.msra.mxu0 0
    %3902 = vmatprep.subr.bf16.mxu0 0
    %3903 = vmatpush1.bf16.msra.mxu0 0
    %3904 = vmatprep.mubr.bf16.mxu0 0
    %3905 = vmatmul.mubr.bf16.gmra.mrb[0].mxu0 %v3800
    %v3906 = vpop.f32.mrb[0].mxu0
    %v3907 = vadd.f32 %v3822, %v3906
    %v3908 = vpop.f32.mrb[0].mxu0
    %v3909 = vpop.f32.mrb[0].mxu0
    %v3910 = vpop.f32.mrb[0].mxu0
    %3911 = vdwg.mxu0
    %v3912 = vlaneseq
    %v3913 = vand.u32 %v3912, 127
    %vm3914 = vcmask 1041408
    %v3915 = vsel %vm3914, %v3907, -inf
    %3916 = vmax.xlane.f32.xlu0 %v3915
    %v3917 = vpop.xlane.xlu0 %3916
    %vm3918 = vcmp.eq.f32.partialorder %v3907, %v3917
    %v3919 = vsel %vm3918, %v3913, 128
    %v3920 = vsel %vm3914, %v3919, 2147483647
    %v3921 = vand.u32 %v3920, 65535
    %v3922 = vshra.s32 %v3920, 16
    %v3923 = vcvt.s32.f32 %v3921
    %v3924 = vcvt.s32.f32 %v3922
    %3925 = vmin.xlane.f32.xlu0 %v3924
    %v3926 = vpop.xlane.xlu0 %3925
    %vm3927 = vcmp.eq.f32.partialorder %v3924, %v3926
    %v3928 = vsel %vm3927, %v3923, inf
    %3929 = vmin.xlane.f32.xlu0 %v3928
    %v3930 = vpop.xlane.xlu0 %3929
    %v3931 = vcvt.f32.s32 %v3930
    %v3932 = vcvt.f32.s32 %v3926
    %v3933 = vshll.u32 %v3932, 16
    %v3934 = vadd.s32 %v3933, %v3931
    %v3935 = vld [vmem:[%s2] sm:$0x3]
    %v3936 = vsub.f32 %v3907, %v3917
    %v3937 = vmul.f32 %v3936, 1.442695
    %v3938 = vpow.pop %v3937
    %v3939 = vsel %vm3914, %v3938, 0.0
    %3940 = vadd.xlane.f32.xlu0 %v3939
    %v3941 = vpop.xlane.xlu0 %3940
    %v3942 = vlog2.pop %v3941
    %v3943 = vmul.f32 %v3942, 0.6931472
    %v3944 = vadd.f32 %v3917, %v3943
    %3945 = vset.pattern.permute.xlu0 0
    %3946 = vperm.xlu0 %3945, %v3935
    %v3947 = vpop.permute.xlu0 %3946
    %vm3948 = vcmp.eq.s32.totalorder %v3913, %v3947
    %v3949 = vsel %vm3948, 1, 0
    %v3950 = vcvt.s32.f32 %v3949
    %v3951 = vmul.f32 %v3907, %v3950
    %v3952 = vsel %vm3914, %v3951, 0.0
    %3953 = vadd.xlane.f32.xlu0 %v3952
    %v3954 = vpop.xlane.xlu0 %3953
    %vm3955 = vcmp.ne.s32.totalorder %v3935, 4294967295
    %v3956 = vsel %vm3955, 1, 0
    %v3957 = vcvt.s32.f32 %v3956
    %v3958 = vsub.f32 %v3944, %v3954
    %v3959 = vmul.f32 %v3958, %v3957
    %vm3960 = vcmask 1024
    %v3961 = vsel %vm3960, %v3959, 0.0
    %v3962 = vrot.slane %v3961, 4
    %v3963 = vadd.f32 %v3961, %v3962
    %v3964 = vrot.slane %v3963, 2
    %v3965 = vadd.f32 %v3963, %v3964
    %v3966 = vrot.slane %v3965, 1
    %v3967 = vadd.f32 %v3965, %v3966
    %v3968 = vsel %vm3960, %v3957, 0.0
    %v3969 = vrot.slane %v3968, 4
    %v3970 = vadd.f32 %v3968, %v3969
    %v3971 = vrot.slane %v3970, 2
    %v3972 = vadd.f32 %v3970, %v3971
    %v3973 = vrot.slane %v3972, 1
    %v3974 = vadd.f32 %v3972, %v3973
    %v3975 = vrcp.pop %v3974
    %v3976 = vmul.f32 %v3967, %v3975
    %vm3977 = vcmp.eq.s32.totalorder %v3913, 4
    %v3978 = vcvt.s32.f32 %v3934
    %v3979 = vsel %vm3977, %v3978, %v3907
    %vm3980 = vcmp.eq.s32.totalorder %v3913, 5
    %3982 = vset.pattern.permute.xlu0 0
    %3983 = vperm.xlu0 %3982, %v3976
    %v3984 = vpop.permute.xlu0 %3983
    %v3986 = vsel %vm3980, %v3984, %v3979
    %3987 = vst [vmem:[#allocation26] sm:$0x3] %v3986
    // Predicated region
    $region134: #{tpu_custom_call.1} parent=1 // pred_check
      _
    $region135: #{tpu_custom_call.1} parent=1 // pred_check_branch
      %3989 = sbr.rel (0) target = $region137
    $region136: #{tpu_custom_call.1} parent=1 // pred_region
      %s3991 = ssub.s32 32, 32
      %3992 = vsyncadd [#allocation5], %s3991
      %s3994 = sshll.u32 [#allocation26], 4
      %s3995 = int_to_ptr.vmem [resolvable:$true] %s3994
      %3997 = dma.vmem_to_hbm [thread:$0]  %s3995, 32, %s19, [#allocation5]
    $region137: #{tpu_custom_call.1} parent=1 // pred_fallthru
      _
    // Predicated region
    $region138: #{tpu_custom_call.1} parent=1 // pred_check
      _
    $region139: #{tpu_custom_call.1} parent=1 // pred_check_branch
      %3999 = sbr.rel (0) target = $region141
    $region140: #{tpu_custom_call.1} parent=1 // pred_region
      %4000 = dma.done [#allocation5], 32
    $region141: #{tpu_custom_call.1} parent=1 // pred_fallthru
      _
    %4001 = vsyncpa [#allocation4], 1
    %4002 = vsyncpa [#allocation7], 1
    %4003 = vsyncpa [#allocation10], 1
    %4004 = vsyncpa [#allocation13], 1
    %4005 = vsyncpa [#allocation16], 1
    %4006 = vsyncpa [#allocation19], 1
    %4007 = vsyncpa [#allocation22], 1
    %4008 = vsyncpa [#allocation25], 1
    %4009 = vsyncpa [#allocation5], 1

</llo_original>
